<compile_context>
chip_gen: v6e
topology: v6e:2x2x1
jax: 0.10.0
libtpu: 0.0.40
codegen_flags: <defaults>
</compile_context>

<pallas_src>
import functools

import jax
import jax.numpy as jnp
import numpy as np
from jax.experimental import pallas as pl
from jax.experimental.pallas import tpu as pltpu


def _shift_rows(x, s):
    """y[p] = x[p - s], zero-filled outside [0, n). `s` is a static int."""
    if s == 0:
        return x
    n = x.shape[0]
    pad = jnp.zeros((abs(s),) + x.shape[1:], x.dtype)
    if s > 0:
        return jnp.concatenate([pad, x[: n - s]], axis=0)
    return jnp.concatenate([x[-s:], pad], axis=0)


def _conv3x3(a, w_ref, b_ref, H, W):
    """3x3 same-padding conv on a flattened (H*W, C) activation.

    a:     (H*W, C) float32 (zero-padding semantics at the image border)
    w_ref: (3, 3*C, Cmid) bf16 weights, row index = dx*C + cin, leading dim = dy
    b_ref: (1, Cmid) float32 bias
    returns (H*W, Cmid) float32
    """
    HW, C = a.shape
    col = jax.lax.broadcasted_iota(jnp.int32, (HW, 1), 0) % W

    ab = a.astype(jnp.bfloat16)
    zero = jnp.zeros_like(ab)
    # dx-im2col: tap (w-1) and tap (w+1), masked at the left/right image edge.
    a_left = jnp.where(col >= 1, _shift_rows(ab, 1), zero)
    a_right = jnp.where(col <= W - 2, _shift_rows(ab, -1), zero)
    dcat = jnp.concatenate([a_left, ab, a_right], axis=-1)        # (HW, 3C)

    # One fat matmul per dy tap: (HW, 3C) x (3C, Cmid), f32 accumulate.
    p0 = jnp.dot(dcat, w_ref[0], preferred_element_type=jnp.float32)  # dy=0
    p1 = jnp.dot(dcat, w_ref[1], preferred_element_type=jnp.float32)  # dy=1
    p2 = jnp.dot(dcat, w_ref[2], preferred_element_type=jnp.float32)  # dy=2

    # dy handled as aligned row shifts (by W rows, W % 8 == 0) of the outputs.
    return p1 + _shift_rows(p0, W) + _shift_rows(p2, -W) + b_ref[...]


def _stage1_kernel(H, W, x_ref, w1_ref, b1_ref, w2_ref, b2_ref,
                   y1_ref, y2_ref, stats_ref):
    """Per-image: conv1, conv2 and BN partial statistics."""
    x = x_ref[0]                                      # (HW, Cin) f32
    y1 = _conv3x3(x, w1_ref, b1_ref, H, W)            # (HW, Cmid) f32
    y1_ref[0] = y1

    y2 = _conv3x3(jnp.maximum(y1, 0.0), w2_ref, b2_ref, H, W)
    y2_ref[0] = y2

    # Two-pass (centered) partial stats for this image; combined outside.
    m = jnp.mean(y2, axis=0, keepdims=True)                    # (1, Cmid)
    m2 = jnp.sum((y2 - m) ** 2, axis=0, keepdims=True)         # (1, Cmid)
    stats_ref[0] = jnp.concatenate([m, m2], axis=0)            # (2, Cmid)


def _stage2_kernel(H, W, y1_ref, y2_ref, scale_ref, shift_ref,
                   w3_ref, b3_ref, o_ref):
    """Per-image: BN affine, relu, conv3, residual add, final relu."""
    bn = y2_ref[0] * scale_ref[...] + shift_ref[...]
    a = jnp.maximum(bn, 0.0)
    y3 = _conv3x3(a, w3_ref, b3_ref, H, W)
    o_ref[0] = jnp.maximum(y1_ref[0] + y3, 0.0).astype(o_ref.dtype)


def _pack_conv_weights(w):
    # torch OIHW (Cout, Cin, 3, 3) -> (3, 3*Cin, Cout); row index = dx*Cin + cin
    wt = jnp.transpose(w, (2, 3, 1, 0))               # (3, 3, Cin, Cout)
    c_in, c_out = wt.shape[2], wt.shape[3]
    return wt.reshape(3, 3 * c_in, c_out).astype(jnp.bfloat16)


@jax.jit
def ftb_forward(x_nchw, w1, b1, w2, b2, w3, b3, gamma, beta):
    """x_nchw: (N, Cin, H, W). Conv weights in PyTorch OIHW layout."""
    N, Cin, H, W = x_nchw.shape
    Cmid = w1.shape[0]
    HW = H * W
    eps = 1e-5

    x2d = jnp.transpose(x_nchw, (0, 2, 3, 1)).reshape(N, HW, Cin)
    x2d = x2d.astype(jnp.float32)

    w1p = _pack_conv_weights(w1)
    w2p = _pack_conv_weights(w2)
    w3p = _pack_conv_weights(w3)
    b1r = b1.reshape(1, Cmid).astype(jnp.float32)
    b2r = b2.reshape(1, Cmid).astype(jnp.float32)
    b3r = b3.reshape(1, Cmid).astype(jnp.float32)

    cparams = pltpu.CompilerParams(
        dimension_semantics=("parallel",),
        vmem_limit_bytes=48 * 1024 * 1024,
    )

    def full3(shape):
        return pl.BlockSpec(shape, lambda n: (0, 0, 0))

    def full2(shape):
        return pl.BlockSpec(shape, lambda n: (0, 0))

    def per_n(shape):
        return pl.BlockSpec((1,) + tuple(shape[1:]), lambda n: (n, 0, 0))

    # ---- stage 1: conv1 + conv2 + per-image BN partial stats ----
    y1, y2, stats = pl.pallas_call(
        functools.partial(_stage1_kernel, H, W),
        grid=(N,),
        in_specs=[
            per_n(x2d.shape),
            full3(w1p.shape), full2(b1r.shape),
            full3(w2p.shape), full2(b2r.shape),
        ],
        out_specs=[
            per_n((N, HW, Cmid)),
            per_n((N, HW, Cmid)),
            per_n((N, 2, Cmid)),
        ],
        out_shape=[
            jax.ShapeDtypeStruct((N, HW, Cmid), jnp.float32),
            jax.ShapeDtypeStruct((N, HW, Cmid), jnp.float32),
            jax.ShapeDtypeStruct((N, 2, Cmid), jnp.float32),
        ],
        compiler_params=cparams,
    )(x2d, w1p, b1r, w2p, b2r)

    # ---- combine per-image BN partials (parallel-variance combination) ----
    tile_mean = stats[:, 0, :]                        # (N, Cmid)
    tile_m2 = stats[:, 1, :]                          # (N, Cmid)
    mean = jnp.mean(tile_mean, axis=0)                # equal counts per tile
    var = (jnp.sum(tile_m2, axis=0)
           + HW * jnp.sum((tile_mean - mean) ** 2, axis=0)) / (N * HW)
    inv = jax.lax.rsqrt(var + eps)
    g32 = gamma.astype(jnp.float32)
    scale = (g32 * inv).reshape(1, Cmid)
    shift = (beta.astype(jnp.float32) - mean * g32 * inv).reshape(1, Cmid)

    # ---- stage 2: BN affine + relu + conv3 + residual + relu ----
    out2d = pl.pallas_call(
        functools.partial(_stage2_kernel, H, W),
        grid=(N,),
        in_specs=[
            per_n(y1.shape), per_n(y2.shape),
            full2(scale.shape), full2(shift.shape),
            full3(w3p.shape), full2(b3r.shape),
        ],
        out_specs=per_n((N, HW, Cmid)),
        out_shape=jax.ShapeDtypeStruct((N, HW, Cmid), jnp.float32),
        compiler_params=cparams,
    )(y1, y2, scale, shift, w3p, b3r)

    out = out2d.reshape(N, H, W, Cmid)
    return jnp.transpose(out, (0, 3, 1, 2))           # back to NCHW


# ---------------- pure-JAX reference (for validation) ----------------
def ftb_reference(x_nchw, w1, b1, w2, b2, w3, b3, gamma, beta, eps=1e-5):
    dn = jax.lax.conv_dimension_numbers(x_nchw.shape, w1.shape,
                                        ('NCHW', 'OIHW', 'NCHW'))

    def conv(x, w, b):
        y = jax.lax.conv_general_dilated(x, w, (1, 1), ((1, 1), (1, 1)),
                                         dimension_numbers=dn)
        return y + b.reshape(1, -1, 1, 1)

    y1 = conv(x_nchw, w1, b1)
    y2 = conv(jnp.maximum(y1, 0.0), w2, b2)
    mean = jnp.mean(y2, axis=(0, 2, 3), keepdims=True)
    var = jnp.mean((y2 - mean) ** 2, axis=(0, 2, 3), keepdims=True)
    bn = (y2 - mean) * jax.lax.rsqrt(var + eps)
    bn = bn * gamma.reshape(1, -1, 1, 1) + beta.reshape(1, -1, 1, 1)
    y3 = conv(jnp.maximum(bn, 0.0), w3, b3)
    return jnp.maximum(y1 + y3, 0.0)


if __name__ == "__main__":
    # Small shapes consistent with FTB(inchannels, midchannels).
    N, Cin, H, W = 2, 8, 16, 16
    Cmid = 32

    key = jax.random.PRNGKey(0)
    k1, k2, k3, kx = jax.random.split(key, 4)

    # init_params(): conv weights ~ N(0, 0.01), conv biases = 0,
    # BN weight = 1, BN bias = 0.
    w1 = 0.01 * jax.random.normal(k1, (Cmid, Cin, 3, 3), jnp.float32)
    w2 = 0.01 * jax.random.normal(k2, (Cmid, Cmid, 3, 3), jnp.float32)
    w3 = 0.01 * jax.random.normal(k3, (Cmid, Cmid, 3, 3), jnp.float32)
    b1 = jnp.zeros((Cmid,), jnp.float32)
    b2 = jnp.zeros((Cmid,), jnp.float32)
    b3 = jnp.zeros((Cmid,), jnp.float32)
    gamma = jnp.ones((Cmid,), jnp.float32)
    beta = jnp.zeros((Cmid,), jnp.float32)

    x = jax.random.normal(kx, (N, Cin, H, W), jnp.float32)

    out = jax.block_until_ready(
        ftb_forward(x, w1, b1, w2, b2, w3, b3, gamma, beta))

    ref = ftb_reference(x, w1, b1, w2, b2, w3, b3, gamma, beta)
    # bf16 MXU operands (f32 accumulate) + BN normalization need a slightly
    # larger atol than a pure-f32 path; still far below any structural error.
    np.testing.assert_allclose(np.asarray(out), np.asarray(ref),
                               rtol=2e-2, atol=5e-3)

    print("KERNEL_OK")
</pallas_src>

<mosaic_0001>
module attributes {stable_mosaic.version = 11 : i64} {
  func.func @_stage1_kernel(%arg0: i32, %arg1: memref<1x256x8xf32, #tpu.memory_space<vmem>>, %arg2: memref<3x24x32xbf16, #tpu.memory_space<vmem>>, %arg3: memref<1x32xf32, #tpu.memory_space<vmem>>, %arg4: memref<3x96x32xbf16, #tpu.memory_space<vmem>>, %arg5: memref<1x32xf32, #tpu.memory_space<vmem>>, %arg6: memref<1x256x32xf32, #tpu.memory_space<vmem>>, %arg7: memref<1x256x32xf32, #tpu.memory_space<vmem>>, %arg8: memref<1x2x32xf32, #tpu.memory_space<vmem>>) attributes {dimension_semantics = [#tpu.dimension_semantics<parallel>], iteration_bounds = array<i64: 2>, scalar_prefetch = 0 : i64, scratch_operands = 0 : i64, tpu.core_type = #tpu.core_type<tc>, window_params = [{transform_indices = @transform_0, window_bounds = array<i64: 1, 256, 8>}, {pipeline_mode = #tpu.pipeline_mode<synchronous>, transform_indices = @transform_1, window_bounds = array<i64: 3, 24, 32>}, {pipeline_mode = #tpu.pipeline_mode<synchronous>, transform_indices = @transform_2, window_bounds = array<i64: 1, 32>}, {pipeline_mode = #tpu.pipeline_mode<synchronous>, transform_indices = @transform_3, window_bounds = array<i64: 3, 96, 32>}, {pipeline_mode = #tpu.pipeline_mode<synchronous>, transform_indices = @transform_4, window_bounds = array<i64: 1, 32>}, {transform_indices = @transform_5, window_bounds = array<i64: 1, 256, 32>}, {transform_indices = @transform_6, window_bounds = array<i64: 1, 256, 32>}, {transform_indices = @transform_7, window_bounds = array<i64: 1, 2, 32>}]} {
    %c0 = arith.constant 0 : index
    %c0_0 = arith.constant 0 : index
    %c0_1 = arith.constant 0 : index
    %0 = vector.load %arg1[%c0, %c0_0, %c0_1] : memref<1x256x8xf32, #tpu.memory_space<vmem>>, vector<1x256x8xf32>
    %1 = vector.shape_cast %0 : vector<1x256x8xf32> to vector<256x8xf32>
    %2 = tpu.iota {dimensions = array<i32: 0>} : vector<256x1xi32>
    %c16_i32 = arith.constant 16 : i32
    %c0_i32 = arith.constant 0 : i32
    %3 = arith.cmpi eq, %c16_i32, %c0_i32 : i32
    %c1_i32 = arith.constant 1 : i32
    %4 = arith.select %3, %c1_i32, %c16_i32 : i32
    %5 = vector.broadcast %4 : i32 to vector<256x1xi32>
    %6 = arith.remsi %2, %5 : vector<256x1xi32>
    %c0_i32_2 = arith.constant 0 : i32
    %7 = vector.broadcast %c0_i32_2 : i32 to vector<256x1xi32>
    %8 = arith.cmpi ne, %6, %7 : vector<256x1xi32>
    %c0_i32_3 = arith.constant 0 : i32
    %9 = vector.broadcast %c0_i32_3 : i32 to vector<256x1xi32>
    %10 = arith.cmpi slt, %6, %9 : vector<256x1xi32>
    %c0_i32_4 = arith.constant 0 : i32
    %11 = arith.cmpi slt, %4, %c0_i32_4 : i32
    %12 = vector.broadcast %11 : i1 to vector<256x1xi1>
    %13 = vector.broadcast %12 : vector<256x1xi1> to vector<256x1xi1>
    %14 = arith.xori %10, %13 : vector<256x1xi1>
    %15 = arith.andi %14, %8 : vector<256x1xi1>
    %16 = vector.broadcast %4 : i32 to vector<256x1xi32>
    %17 = arith.addi %6, %16 : vector<256x1xi32>
    %18 = arith.select %15, %17, %6 : vector<256x1xi1>, vector<256x1xi32>
    %19 = arith.truncf %1 : vector<256x8xf32> to vector<256x8xbf16>
    %cst = arith.constant 0.000000e+00 : bf16
    %20 = vector.broadcast %cst : bf16 to vector<256x8xbf16>
    %c1_i32_5 = arith.constant 1 : i32
    %21 = vector.broadcast %c1_i32_5 : i32 to vector<256x1xi32>
    %22 = arith.cmpi sge, %18, %21 : vector<256x1xi32>
    %cst_6 = arith.constant 0.000000e+00 : bf16
    %23 = vector.broadcast %cst_6 : bf16 to vector<1x8xbf16>
    %24 = vector.extract_strided_slice %19 {offsets = [0, 0], sizes = [255, 8], strides = [1, 1]} : vector<256x8xbf16> to vector<255x8xbf16>
    %25 = tpu.concatenate %23, %24 in 0 : vector<1x8xbf16>, vector<255x8xbf16> -> vector<256x8xbf16>
    %26 = vector.shape_cast %22 : vector<256x1xi1> to vector<256x1xi1>
    %27 = vector.broadcast %26 : vector<256x1xi1> to vector<256x8xi1>
    %28 = arith.select %27, %25, %20 : vector<256x8xi1>, vector<256x8xbf16>
    %c14_i32 = arith.constant 14 : i32
    %29 = vector.broadcast %c14_i32 : i32 to vector<256x1xi32>
    %30 = arith.cmpi sle, %18, %29 : vector<256x1xi32>
    %cst_7 = arith.constant 0.000000e+00 : bf16
    %31 = vector.broadcast %cst_7 : bf16 to vector<1x8xbf16>
    %32 = vector.extract_strided_slice %19 {offsets = [1, 0], sizes = [255, 8], strides = [1, 1]} : vector<256x8xbf16> to vector<255x8xbf16>
    %33 = tpu.concatenate %32, %31 in 0 : vector<255x8xbf16>, vector<1x8xbf16> -> vector<256x8xbf16>
    %34 = vector.shape_cast %30 : vector<256x1xi1> to vector<256x1xi1>
    %35 = vector.broadcast %34 : vector<256x1xi1> to vector<256x8xi1>
    %36 = arith.select %35, %33, %20 : vector<256x8xi1>, vector<256x8xbf16>
    %37 = tpu.concatenate %28, %19, %36 in 1 : vector<256x8xbf16>, vector<256x8xbf16>, vector<256x8xbf16> -> vector<256x24xbf16>
    %c0_8 = arith.constant 0 : index
    %c0_9 = arith.constant 0 : index
    %c0_10 = arith.constant 0 : index
    %38 = vector.load %arg2[%c0_8, %c0_9, %c0_10] : memref<3x24x32xbf16, #tpu.memory_space<vmem>>, vector<1x24x32xbf16>
    %39 = vector.shape_cast %38 : vector<1x24x32xbf16> to vector<24x32xbf16>
    %cst_11 = arith.constant dense<0.000000e+00> : vector<256x32xf32>
    %40 = tpu.matmul %37, %39, %cst_11 {dimension_numbers = #tpu.dot_dimension_numbers<[1], [0], [0], [1], [0, 0, 1, 1], [], []>} : vector<256x24xbf16>, vector<24x32xbf16>, vector<256x32xf32> -> vector<256x32xf32>
    %c1 = arith.constant 1 : index
    %c0_12 = arith.constant 0 : index
    %c0_13 = arith.constant 0 : index
    %41 = vector.load %arg2[%c1, %c0_12, %c0_13] : memref<3x24x32xbf16, #tpu.memory_space<vmem>>, vector<1x24x32xbf16>
    %42 = vector.shape_cast %41 : vector<1x24x32xbf16> to vector<24x32xbf16>
    %cst_14 = arith.constant dense<0.000000e+00> : vector<256x32xf32>
    %43 = tpu.matmul %37, %42, %cst_14 {dimension_numbers = #tpu.dot_dimension_numbers<[1], [0], [0], [1], [0, 0, 1, 1], [], []>} : vector<256x24xbf16>, vector<24x32xbf16>, vector<256x32xf32> -> vector<256x32xf32>
    %c2 = arith.constant 2 : index
    %c0_15 = arith.constant 0 : index
    %c0_16 = arith.constant 0 : index
    %44 = vector.load %arg2[%c2, %c0_15, %c0_16] : memref<3x24x32xbf16, #tpu.memory_space<vmem>>, vector<1x24x32xbf16>
    %45 = vector.shape_cast %44 : vector<1x24x32xbf16> to vector<24x32xbf16>
    %cst_17 = arith.constant dense<0.000000e+00> : vector<256x32xf32>
    %46 = tpu.matmul %37, %45, %cst_17 {dimension_numbers = #tpu.dot_dimension_numbers<[1], [0], [0], [1], [0, 0, 1, 1], [], []>} : vector<256x24xbf16>, vector<24x32xbf16>, vector<256x32xf32> -> vector<256x32xf32>
    %cst_18 = arith.constant 0.000000e+00 : f32
    %47 = vector.broadcast %cst_18 : f32 to vector<16x32xf32>
    %48 = vector.extract_strided_slice %40 {offsets = [0, 0], sizes = [240, 32], strides = [1, 1]} : vector<256x32xf32> to vector<240x32xf32>
    %49 = tpu.concatenate %47, %48 in 0 : vector<16x32xf32>, vector<240x32xf32> -> vector<256x32xf32>
    %50 = arith.addf %43, %49 : vector<256x32xf32>
    %cst_19 = arith.constant 0.000000e+00 : f32
    %51 = vector.broadcast %cst_19 : f32 to vector<16x32xf32>
    %52 = vector.extract_strided_slice %46 {offsets = [16, 0], sizes = [240, 32], strides = [1, 1]} : vector<256x32xf32> to vector<240x32xf32>
    %53 = tpu.concatenate %52, %51 in 0 : vector<240x32xf32>, vector<16x32xf32> -> vector<256x32xf32>
    %54 = arith.addf %50, %53 : vector<256x32xf32>
    %c0_20 = arith.constant 0 : index
    %c0_21 = arith.constant 0 : index
    %55 = vector.load %arg3[%c0_20, %c0_21] : memref<1x32xf32, #tpu.memory_space<vmem>>, vector<1x32xf32>
    %56 = vector.broadcast %55 : vector<1x32xf32> to vector<256x32xf32>
    %57 = arith.addf %54, %56 : vector<256x32xf32>
    %c0_22 = arith.constant 0 : index
    %c0_23 = arith.constant 0 : index
    %c0_24 = arith.constant 0 : index
    %58 = vector.load %arg6[%c0_22, %c0_23, %c0_24] : memref<1x256x32xf32, #tpu.memory_space<vmem>>, vector<1x256x32xf32>
    %59 = vector.shape_cast %58 : vector<1x256x32xf32> to vector<256x32xf32>
    %60 = vector.shape_cast %57 : vector<256x32xf32> to vector<1x256x32xf32>
    tpu.vector_store %arg6[%c0_22, %c0_23, %c0_24], %60 {strides = array<i32>} : memref<1x256x32xf32, #tpu.memory_space<vmem>>, vector<1x256x32xf32>,
    %cst_25 = arith.constant 0.000000e+00 : f32
    %61 = vector.broadcast %cst_25 : f32 to vector<256x32xf32>
    %62 = arith.maximumf %57, %61 : vector<256x32xf32>
    %63 = tpu.iota {dimensions = array<i32: 0>} : vector<256x1xi32>
    %c16_i32_26 = arith.constant 16 : i32
    %c0_i32_27 = arith.constant 0 : i32
    %64 = arith.cmpi eq, %c16_i32_26, %c0_i32_27 : i32
    %c1_i32_28 = arith.constant 1 : i32
    %65 = arith.select %64, %c1_i32_28, %c16_i32_26 : i32
    %66 = vector.broadcast %65 : i32 to vector<256x1xi32>
    %67 = arith.remsi %63, %66 : vector<256x1xi32>
    %c0_i32_29 = arith.constant 0 : i32
    %68 = vector.broadcast %c0_i32_29 : i32 to vector<256x1xi32>
    %69 = arith.cmpi ne, %67, %68 : vector<256x1xi32>
    %c0_i32_30 = arith.constant 0 : i32
    %70 = vector.broadcast %c0_i32_30 : i32 to vector<256x1xi32>
    %71 = arith.cmpi slt, %67, %70 : vector<256x1xi32>
    %c0_i32_31 = arith.constant 0 : i32
    %72 = arith.cmpi slt, %65, %c0_i32_31 : i32
    %73 = vector.broadcast %72 : i1 to vector<256x1xi1>
    %74 = vector.broadcast %73 : vector<256x1xi1> to vector<256x1xi1>
    %75 = arith.xori %71, %74 : vector<256x1xi1>
    %76 = arith.andi %75, %69 : vector<256x1xi1>
    %77 = vector.broadcast %65 : i32 to vector<256x1xi32>
    %78 = arith.addi %67, %77 : vector<256x1xi32>
    %79 = arith.select %76, %78, %67 : vector<256x1xi1>, vector<256x1xi32>
    %80 = arith.truncf %62 : vector<256x32xf32> to vector<256x32xbf16>
    %cst_32 = arith.constant 0.000000e+00 : bf16
    %81 = vector.broadcast %cst_32 : bf16 to vector<256x32xbf16>
    %c1_i32_33 = arith.constant 1 : i32
    %82 = vector.broadcast %c1_i32_33 : i32 to vector<256x1xi32>
    %83 = arith.cmpi sge, %79, %82 : vector<256x1xi32>
    %cst_34 = arith.constant 0.000000e+00 : bf16
    %84 = vector.broadcast %cst_34 : bf16 to vector<1x32xbf16>
    %85 = vector.extract_strided_slice %80 {offsets = [0, 0], sizes = [255, 32], strides = [1, 1]} : vector<256x32xbf16> to vector<255x32xbf16>
    %86 = tpu.concatenate %84, %85 in 0 : vector<1x32xbf16>, vector<255x32xbf16> -> vector<256x32xbf16>
    %87 = vector.shape_cast %83 : vector<256x1xi1> to vector<256x1xi1>
    %88 = vector.broadcast %87 : vector<256x1xi1> to vector<256x32xi1>
    %89 = arith.select %88, %86, %81 : vector<256x32xi1>, vector<256x32xbf16>
    %c14_i32_35 = arith.constant 14 : i32
    %90 = vector.broadcast %c14_i32_35 : i32 to vector<256x1xi32>
    %91 = arith.cmpi sle, %79, %90 : vector<256x1xi32>
    %cst_36 = arith.constant 0.000000e+00 : bf16
    %92 = vector.broadcast %cst_36 : bf16 to vector<1x32xbf16>
    %93 = vector.extract_strided_slice %80 {offsets = [1, 0], sizes = [255, 32], strides = [1, 1]} : vector<256x32xbf16> to vector<255x32xbf16>
    %94 = tpu.concatenate %93, %92 in 0 : vector<255x32xbf16>, vector<1x32xbf16> -> vector<256x32xbf16>
    %95 = vector.shape_cast %91 : vector<256x1xi1> to vector<256x1xi1>
    %96 = vector.broadcast %95 : vector<256x1xi1> to vector<256x32xi1>
    %97 = arith.select %96, %94, %81 : vector<256x32xi1>, vector<256x32xbf16>
    %98 = tpu.concatenate %89, %80, %97 in 1 : vector<256x32xbf16>, vector<256x32xbf16>, vector<256x32xbf16> -> vector<256x96xbf16>
    %c0_37 = arith.constant 0 : index
    %c0_38 = arith.constant 0 : index
    %c0_39 = arith.constant 0 : index
    %99 = vector.load %arg4[%c0_37, %c0_38, %c0_39] : memref<3x96x32xbf16, #tpu.memory_space<vmem>>, vector<1x96x32xbf16>
    %100 = vector.shape_cast %99 : vector<1x96x32xbf16> to vector<96x32xbf16>
    %cst_40 = arith.constant dense<0.000000e+00> : vector<256x32xf32>
    %101 = tpu.matmul %98, %100, %cst_40 {dimension_numbers = #tpu.dot_dimension_numbers<[1], [0], [0], [1], [0, 0, 1, 1], [], []>} : vector<256x96xbf16>, vector<96x32xbf16>, vector<256x32xf32> -> vector<256x32xf32>
    %c1_41 = arith.constant 1 : index
    %c0_42 = arith.constant 0 : index
    %c0_43 = arith.constant 0 : index
    %102 = vector.load %arg4[%c1_41, %c0_42, %c0_43] : memref<3x96x32xbf16, #tpu.memory_space<vmem>>, vector<1x96x32xbf16>
    %103 = vector.shape_cast %102 : vector<1x96x32xbf16> to vector<96x32xbf16>
    %cst_44 = arith.constant dense<0.000000e+00> : vector<256x32xf32>
    %104 = tpu.matmul %98, %103, %cst_44 {dimension_numbers = #tpu.dot_dimension_numbers<[1], [0], [0], [1], [0, 0, 1, 1], [], []>} : vector<256x96xbf16>, vector<96x32xbf16>, vector<256x32xf32> -> vector<256x32xf32>
    %c2_45 = arith.constant 2 : index
    %c0_46 = arith.constant 0 : index
    %c0_47 = arith.constant 0 : index
    %105 = vector.load %arg4[%c2_45, %c0_46, %c0_47] : memref<3x96x32xbf16, #tpu.memory_space<vmem>>, vector<1x96x32xbf16>
    %106 = vector.shape_cast %105 : vector<1x96x32xbf16> to vector<96x32xbf16>
    %cst_48 = arith.constant dense<0.000000e+00> : vector<256x32xf32>
    %107 = tpu.matmul %98, %106, %cst_48 {dimension_numbers = #tpu.dot_dimension_numbers<[1], [0], [0], [1], [0, 0, 1, 1], [], []>} : vector<256x96xbf16>, vector<96x32xbf16>, vector<256x32xf32> -> vector<256x32xf32>
    %cst_49 = arith.constant 0.000000e+00 : f32
    %108 = vector.broadcast %cst_49 : f32 to vector<16x32xf32>
    %109 = vector.extract_strided_slice %101 {offsets = [0, 0], sizes = [240, 32], strides = [1, 1]} : vector<256x32xf32> to vector<240x32xf32>
    %110 = tpu.concatenate %108, %109 in 0 : vector<16x32xf32>, vector<240x32xf32> -> vector<256x32xf32>
    %111 = arith.addf %104, %110 : vector<256x32xf32>
    %cst_50 = arith.constant 0.000000e+00 : f32
    %112 = vector.broadcast %cst_50 : f32 to vector<16x32xf32>
    %113 = vector.extract_strided_slice %107 {offsets = [16, 0], sizes = [240, 32], strides = [1, 1]} : vector<256x32xf32> to vector<240x32xf32>
    %114 = tpu.concatenate %113, %112 in 0 : vector<240x32xf32>, vector<16x32xf32> -> vector<256x32xf32>
    %115 = arith.addf %111, %114 : vector<256x32xf32>
    %c0_51 = arith.constant 0 : index
    %c0_52 = arith.constant 0 : index
    %116 = vector.load %arg5[%c0_51, %c0_52] : memref<1x32xf32, #tpu.memory_space<vmem>>, vector<1x32xf32>
    %117 = vector.broadcast %116 : vector<1x32xf32> to vector<256x32xf32>
    %118 = arith.addf %115, %117 : vector<256x32xf32>
    %c0_53 = arith.constant 0 : index
    %c0_54 = arith.constant 0 : index
    %c0_55 = arith.constant 0 : index
    %119 = vector.load %arg7[%c0_53, %c0_54, %c0_55] : memref<1x256x32xf32, #tpu.memory_space<vmem>>, vector<1x256x32xf32>
    %120 = vector.shape_cast %119 : vector<1x256x32xf32> to vector<256x32xf32>
    %121 = vector.shape_cast %118 : vector<256x32xf32> to vector<1x256x32xf32>
    tpu.vector_store %arg7[%c0_53, %c0_54, %c0_55], %121 {strides = array<i32>} : memref<1x256x32xf32, #tpu.memory_space<vmem>>, vector<1x256x32xf32>,
    %cst_56 = arith.constant dense<0.000000e+00> : vector<32xf32>
    %122 = vector.multi_reduction <add>, %118, %cst_56 [0] : vector<256x32xf32> to vector<32xf32>
    %123 = vector.shape_cast %122 : vector<32xf32> to vector<1x32xf32>
    %cst_57 = arith.constant 2.560000e+02 : f32
    %124 = vector.broadcast %cst_57 : f32 to vector<1x32xf32>
    %125 = arith.divf %123, %124 : vector<1x32xf32>
    %126 = vector.broadcast %125 : vector<1x32xf32> to vector<256x32xf32>
    %127 = arith.subf %118, %126 : vector<256x32xf32>
    %128 = arith.mulf %127, %127 : vector<256x32xf32>
    %cst_58 = arith.constant dense<0.000000e+00> : vector<32xf32>
    %129 = vector.multi_reduction <add>, %128, %cst_58 [0] : vector<256x32xf32> to vector<32xf32>
    %130 = vector.shape_cast %129 : vector<32xf32> to vector<1x32xf32>
    %131 = tpu.concatenate %125, %130 in 0 : vector<1x32xf32>, vector<1x32xf32> -> vector<2x32xf32>
    %c0_59 = arith.constant 0 : index
    %c0_60 = arith.constant 0 : index
    %c0_61 = arith.constant 0 : index
    %132 = vector.load %arg8[%c0_59, %c0_60, %c0_61] : memref<1x2x32xf32, #tpu.memory_space<vmem>>, vector<1x2x32xf32>
    %133 = vector.shape_cast %132 : vector<1x2x32xf32> to vector<2x32xf32>
    %134 = vector.shape_cast %131 : vector<2x32xf32> to vector<1x2x32xf32>
    tpu.vector_store %arg8[%c0_59, %c0_60, %c0_61], %134 {strides = array<i32>} : memref<1x2x32xf32, #tpu.memory_space<vmem>>, vector<1x2x32xf32>,
    return
  }
  func.func @transform_0(%arg0: i32) -> (i32, i32, i32) {
    %c0_i32 = arith.constant 0 : i32
    %c0_i32_0 = arith.constant 0 : i32
    %c0_i32_1 = arith.constant 0 : i32
    return %arg0, %c0_i32, %c0_i32_0 : i32, i32, i32
  }
  func.func @transform_1(%arg0: i32) -> (i32, i32, i32) {
    %c0_i32 = arith.constant 0 : i32
    %c0_i32_0 = arith.constant 0 : i32
    %c0_i32_1 = arith.constant 0 : i32
    %c0_i32_2 = arith.constant 0 : i32
    return %c0_i32, %c0_i32_0, %c0_i32_1 : i32, i32, i32
  }
  func.func @transform_2(%arg0: i32) -> (i32, i32) {
    %c0_i32 = arith.constant 0 : i32
    %c0_i32_0 = arith.constant 0 : i32
    %c0_i32_1 = arith.constant 0 : i32
    return %c0_i32, %c0_i32_0 : i32, i32
  }
  func.func @transform_3(%arg0: i32) -> (i32, i32, i32) {
    %c0_i32 = arith.constant 0 : i32
    %c0_i32_0 = arith.constant 0 : i32
    %c0_i32_1 = arith.constant 0 : i32
    %c0_i32_2 = arith.constant 0 : i32
    return %c0_i32, %c0_i32_0, %c0_i32_1 : i32, i32, i32
  }
  func.func @transform_4(%arg0: i32) -> (i32, i32) {
    %c0_i32 = arith.constant 0 : i32
    %c0_i32_0 = arith.constant 0 : i32
    %c0_i32_1 = arith.constant 0 : i32
    return %c0_i32, %c0_i32_0 : i32, i32
  }
  func.func @transform_5(%arg0: i32) -> (i32, i32, i32) {
    %c0_i32 = arith.constant 0 : i32
    %c0_i32_0 = arith.constant 0 : i32
    %c0_i32_1 = arith.constant 0 : i32
    return %arg0, %c0_i32, %c0_i32_0 : i32, i32, i32
  }
  func.func @transform_6(%arg0: i32) -> (i32, i32, i32) {
    %c0_i32 = arith.constant 0 : i32
    %c0_i32_0 = arith.constant 0 : i32
    %c0_i32_1 = arith.constant 0 : i32
    return %arg0, %c0_i32, %c0_i32_0 : i32, i32, i32
  }
  func.func @transform_7(%arg0: i32) -> (i32, i32, i32) {
    %c0_i32 = arith.constant 0 : i32
    %c0_i32_0 = arith.constant 0 : i32
    %c0_i32_1 = arith.constant 0 : i32
    return %arg0, %c0_i32, %c0_i32_0 : i32, i32, i32
  }
}

module attributes {stable_mosaic.version = 11 : i64} {
  func.func @_stage2_kernel(%arg0: i32, %arg1: memref<1x256x32xf32, #tpu.memory_space<vmem>>, %arg2: memref<1x256x32xf32, #tpu.memory_space<vmem>>, %arg3: memref<1x32xf32, #tpu.memory_space<vmem>>, %arg4: memref<1x32xf32, #tpu.memory_space<vmem>>, %arg5: memref<3x96x32xbf16, #tpu.memory_space<vmem>>, %arg6: memref<1x32xf32, #tpu.memory_space<vmem>>, %arg7: memref<1x256x32xf32, #tpu.memory_space<vmem>>) attributes {dimension_semantics = [#tpu.dimension_semantics<parallel>], iteration_bounds = array<i64: 2>, scalar_prefetch = 0 : i64, scratch_operands = 0 : i64, tpu.core_type = #tpu.core_type<tc>, window_params = [{transform_indices = @transform_0, window_bounds = array<i64: 1, 256, 32>}, {transform_indices = @transform_1, window_bounds = array<i64: 1, 256, 32>}, {pipeline_mode = #tpu.pipeline_mode<synchronous>, transform_indices = @transform_2, window_bounds = array<i64: 1, 32>}, {pipeline_mode = #tpu.pipeline_mode<synchronous>, transform_indices = @transform_3, window_bounds = array<i64: 1, 32>}, {pipeline_mode = #tpu.pipeline_mode<synchronous>, transform_indices = @transform_4, window_bounds = array<i64: 3, 96, 32>}, {pipeline_mode = #tpu.pipeline_mode<synchronous>, transform_indices = @transform_5, window_bounds = array<i64: 1, 32>}, {transform_indices = @transform_6, window_bounds = array<i64: 1, 256, 32>}]} {
    %c0 = arith.constant 0 : index
    %c0_0 = arith.constant 0 : index
    %c0_1 = arith.constant 0 : index
    %0 = vector.load %arg2[%c0, %c0_0, %c0_1] : memref<1x256x32xf32, #tpu.memory_space<vmem>>, vector<1x256x32xf32>
    %1 = vector.shape_cast %0 : vector<1x256x32xf32> to vector<256x32xf32>
    %c0_2 = arith.constant 0 : index
    %c0_3 = arith.constant 0 : index
    %2 = vector.load %arg3[%c0_2, %c0_3] : memref<1x32xf32, #tpu.memory_space<vmem>>, vector<1x32xf32>
    %3 = vector.broadcast %2 : vector<1x32xf32> to vector<256x32xf32>
    %4 = arith.mulf %1, %3 : vector<256x32xf32>
    %c0_4 = arith.constant 0 : index
    %c0_5 = arith.constant 0 : index
    %5 = vector.load %arg4[%c0_4, %c0_5] : memref<1x32xf32, #tpu.memory_space<vmem>>, vector<1x32xf32>
    %6 = vector.broadcast %5 : vector<1x32xf32> to vector<256x32xf32>
    %7 = arith.addf %4, %6 : vector<256x32xf32>
    %cst = arith.constant 0.000000e+00 : f32
    %8 = vector.broadcast %cst : f32 to vector<256x32xf32>
    %9 = arith.maximumf %7, %8 : vector<256x32xf32>
    %10 = tpu.iota {dimensions = array<i32: 0>} : vector<256x1xi32>
    %c16_i32 = arith.constant 16 : i32
    %c0_i32 = arith.constant 0 : i32
    %11 = arith.cmpi eq, %c16_i32, %c0_i32 : i32
    %c1_i32 = arith.constant 1 : i32
    %12 = arith.select %11, %c1_i32, %c16_i32 : i32
    %13 = vector.broadcast %12 : i32 to vector<256x1xi32>
    %14 = arith.remsi %10, %13 : vector<256x1xi32>
    %c0_i32_6 = arith.constant 0 : i32
    %15 = vector.broadcast %c0_i32_6 : i32 to vector<256x1xi32>
    %16 = arith.cmpi ne, %14, %15 : vector<256x1xi32>
    %c0_i32_7 = arith.constant 0 : i32
    %17 = vector.broadcast %c0_i32_7 : i32 to vector<256x1xi32>
    %18 = arith.cmpi slt, %14, %17 : vector<256x1xi32>
    %c0_i32_8 = arith.constant 0 : i32
    %19 = arith.cmpi slt, %12, %c0_i32_8 : i32
    %20 = vector.broadcast %19 : i1 to vector<256x1xi1>
    %21 = vector.broadcast %20 : vector<256x1xi1> to vector<256x1xi1>
    %22 = arith.xori %18, %21 : vector<256x1xi1>
    %23 = arith.andi %22, %16 : vector<256x1xi1>
    %24 = vector.broadcast %12 : i32 to vector<256x1xi32>
    %25 = arith.addi %14, %24 : vector<256x1xi32>
    %26 = arith.select %23, %25, %14 : vector<256x1xi1>, vector<256x1xi32>
    %27 = arith.truncf %9 : vector<256x32xf32> to vector<256x32xbf16>
    %cst_9 = arith.constant 0.000000e+00 : bf16
    %28 = vector.broadcast %cst_9 : bf16 to vector<256x32xbf16>
    %c1_i32_10 = arith.constant 1 : i32
    %29 = vector.broadcast %c1_i32_10 : i32 to vector<256x1xi32>
    %30 = arith.cmpi sge, %26, %29 : vector<256x1xi32>
    %cst_11 = arith.constant 0.000000e+00 : bf16
    %31 = vector.broadcast %cst_11 : bf16 to vector<1x32xbf16>
    %32 = vector.extract_strided_slice %27 {offsets = [0, 0], sizes = [255, 32], strides = [1, 1]} : vector<256x32xbf16> to vector<255x32xbf16>
    %33 = tpu.concatenate %31, %32 in 0 : vector<1x32xbf16>, vector<255x32xbf16> -> vector<256x32xbf16>
    %34 = vector.shape_cast %30 : vector<256x1xi1> to vector<256x1xi1>
    %35 = vector.broadcast %34 : vector<256x1xi1> to vector<256x32xi1>
    %36 = arith.select %35, %33, %28 : vector<256x32xi1>, vector<256x32xbf16>
    %c14_i32 = arith.constant 14 : i32
    %37 = vector.broadcast %c14_i32 : i32 to vector<256x1xi32>
    %38 = arith.cmpi sle, %26, %37 : vector<256x1xi32>
    %cst_12 = arith.constant 0.000000e+00 : bf16
    %39 = vector.broadcast %cst_12 : bf16 to vector<1x32xbf16>
    %40 = vector.extract_strided_slice %27 {offsets = [1, 0], sizes = [255, 32], strides = [1, 1]} : vector<256x32xbf16> to vector<255x32xbf16>
    %41 = tpu.concatenate %40, %39 in 0 : vector<255x32xbf16>, vector<1x32xbf16> -> vector<256x32xbf16>
    %42 = vector.shape_cast %38 : vector<256x1xi1> to vector<256x1xi1>
    %43 = vector.broadcast %42 : vector<256x1xi1> to vector<256x32xi1>
    %44 = arith.select %43, %41, %28 : vector<256x32xi1>, vector<256x32xbf16>
    %45 = tpu.concatenate %36, %27, %44 in 1 : vector<256x32xbf16>, vector<256x32xbf16>, vector<256x32xbf16> -> vector<256x96xbf16>
    %c0_13 = arith.constant 0 : index
    %c0_14 = arith.constant 0 : index
    %c0_15 = arith.constant 0 : index
    %46 = vector.load %arg5[%c0_13, %c0_14, %c0_15] : memref<3x96x32xbf16, #tpu.memory_space<vmem>>, vector<1x96x32xbf16>
    %47 = vector.shape_cast %46 : vector<1x96x32xbf16> to vector<96x32xbf16>
    %cst_16 = arith.constant dense<0.000000e+00> : vector<256x32xf32>
    %48 = tpu.matmul %45, %47, %cst_16 {dimension_numbers = #tpu.dot_dimension_numbers<[1], [0], [0], [1], [0, 0, 1, 1], [], []>} : vector<256x96xbf16>, vector<96x32xbf16>, vector<256x32xf32> -> vector<256x32xf32>
    %c1 = arith.constant 1 : index
    %c0_17 = arith.constant 0 : index
    %c0_18 = arith.constant 0 : index
    %49 = vector.load %arg5[%c1, %c0_17, %c0_18] : memref<3x96x32xbf16, #tpu.memory_space<vmem>>, vector<1x96x32xbf16>
    %50 = vector.shape_cast %49 : vector<1x96x32xbf16> to vector<96x32xbf16>
    %cst_19 = arith.constant dense<0.000000e+00> : vector<256x32xf32>
    %51 = tpu.matmul %45, %50, %cst_19 {dimension_numbers = #tpu.dot_dimension_numbers<[1], [0], [0], [1], [0, 0, 1, 1], [], []>} : vector<256x96xbf16>, vector<96x32xbf16>, vector<256x32xf32> -> vector<256x32xf32>
    %c2 = arith.constant 2 : index
    %c0_20 = arith.constant 0 : index
    %c0_21 = arith.constant 0 : index
    %52 = vector.load %arg5[%c2, %c0_20, %c0_21] : memref<3x96x32xbf16, #tpu.memory_space<vmem>>, vector<1x96x32xbf16>
    %53 = vector.shape_cast %52 : vector<1x96x32xbf16> to vector<96x32xbf16>
    %cst_22 = arith.constant dense<0.000000e+00> : vector<256x32xf32>
    %54 = tpu.matmul %45, %53, %cst_22 {dimension_numbers = #tpu.dot_dimension_numbers<[1], [0], [0], [1], [0, 0, 1, 1], [], []>} : vector<256x96xbf16>, vector<96x32xbf16>, vector<256x32xf32> -> vector<256x32xf32>
    %cst_23 = arith.constant 0.000000e+00 : f32
    %55 = vector.broadcast %cst_23 : f32 to vector<16x32xf32>
    %56 = vector.extract_strided_slice %48 {offsets = [0, 0], sizes = [240, 32], strides = [1, 1]} : vector<256x32xf32> to vector<240x32xf32>
    %57 = tpu.concatenate %55, %56 in 0 : vector<16x32xf32>, vector<240x32xf32> -> vector<256x32xf32>
    %58 = arith.addf %51, %57 : vector<256x32xf32>
    %cst_24 = arith.constant 0.000000e+00 : f32
    %59 = vector.broadcast %cst_24 : f32 to vector<16x32xf32>
    %60 = vector.extract_strided_slice %54 {offsets = [16, 0], sizes = [240, 32], strides = [1, 1]} : vector<256x32xf32> to vector<240x32xf32>
    %61 = tpu.concatenate %60, %59 in 0 : vector<240x32xf32>, vector<16x32xf32> -> vector<256x32xf32>
    %62 = arith.addf %58, %61 : vector<256x32xf32>
    %c0_25 = arith.constant 0 : index
    %c0_26 = arith.constant 0 : index
    %63 = vector.load %arg6[%c0_25, %c0_26] : memref<1x32xf32, #tpu.memory_space<vmem>>, vector<1x32xf32>
    %64 = vector.broadcast %63 : vector<1x32xf32> to vector<256x32xf32>
    %65 = arith.addf %62, %64 : vector<256x32xf32>
    %c0_27 = arith.constant 0 : index
    %c0_28 = arith.constant 0 : index
    %c0_29 = arith.constant 0 : index
    %66 = vector.load %arg1[%c0_27, %c0_28, %c0_29] : memref<1x256x32xf32, #tpu.memory_space<vmem>>, vector<1x256x32xf32>
    %67 = vector.shape_cast %66 : vector<1x256x32xf32> to vector<256x32xf32>
    %68 = arith.addf %67, %65 : vector<256x32xf32>
    %cst_30 = arith.constant 0.000000e+00 : f32
    %69 = vector.broadcast %cst_30 : f32 to vector<256x32xf32>
    %70 = arith.maximumf %68, %69 : vector<256x32xf32>
    %c0_31 = arith.constant 0 : index
    %c0_32 = arith.constant 0 : index
    %c0_33 = arith.constant 0 : index
    %71 = vector.load %arg7[%c0_31, %c0_32, %c0_33] : memref<1x256x32xf32, #tpu.memory_space<vmem>>, vector<1x256x32xf32>
    %72 = vector.shape_cast %71 : vector<1x256x32xf32> to vector<256x32xf32>
    %73 = vector.shape_cast %70 : vector<256x32xf32> to vector<1x256x32xf32>
    tpu.vector_store %arg7[%c0_31, %c0_32, %c0_33], %73 {strides = array<i32>} : memref<1x256x32xf32, #tpu.memory_space<vmem>>, vector<1x256x32xf32>,
    return
  }
  func.func @transform_0(%arg0: i32) -> (i32, i32, i32) {
    %c0_i32 = arith.constant 0 : i32
    %c0_i32_0 = arith.constant 0 : i32
    %c0_i32_1 = arith.constant 0 : i32
    return %arg0, %c0_i32, %c0_i32_0 : i32, i32, i32
  }
  func.func @transform_1(%arg0: i32) -> (i32, i32, i32) {
    %c0_i32 = arith.constant 0 : i32
    %c0_i32_0 = arith.constant 0 : i32
    %c0_i32_1 = arith.constant 0 : i32
    return %arg0, %c0_i32, %c0_i32_0 : i32, i32, i32
  }
  func.func @transform_2(%arg0: i32) -> (i32, i32) {
    %c0_i32 = arith.constant 0 : i32
    %c0_i32_0 = arith.constant 0 : i32
    %c0_i32_1 = arith.constant 0 : i32
    return %c0_i32, %c0_i32_0 : i32, i32
  }
  func.func @transform_3(%arg0: i32) -> (i32, i32) {
    %c0_i32 = arith.constant 0 : i32
    %c0_i32_0 = arith.constant 0 : i32
    %c0_i32_1 = arith.constant 0 : i32
    return %c0_i32, %c0_i32_0 : i32, i32
  }
  func.func @transform_4(%arg0: i32) -> (i32, i32, i32) {
    %c0_i32 = arith.constant 0 : i32
    %c0_i32_0 = arith.constant 0 : i32
    %c0_i32_1 = arith.constant 0 : i32
    %c0_i32_2 = arith.constant 0 : i32
    return %c0_i32, %c0_i32_0, %c0_i32_1 : i32, i32, i32
  }
  func.func @transform_5(%arg0: i32) -> (i32, i32) {
    %c0_i32 = arith.constant 0 : i32
    %c0_i32_0 = arith.constant 0 : i32
    %c0_i32_1 = arith.constant 0 : i32
    return %c0_i32, %c0_i32_0 : i32, i32
  }
  func.func @transform_6(%arg0: i32) -> (i32, i32, i32) {
    %c0_i32 = arith.constant 0 : i32
    %c0_i32_0 = arith.constant 0 : i32
    %c0_i32_1 = arith.constant 0 : i32
    return %arg0, %c0_i32, %c0_i32_0 : i32, i32, i32
  }
}

</mosaic_0001>

<llo_original>
// kernel: ftb_forward.3
$region0: #{ftb_forward.3}
  #allocation0 [shape = 'u32[]', space=smem, size = 0x4, offset = 0x4, fixed_abs, tag = 'smem constant byte address 0x4 - core index']
  #allocation1 [shape = 'u32[144,128]{1,0:T(1,128)}', space=vmem, size = 0x12000, scoped, tag = 'internal scratch']
  %s0 = inlined_call_operand.vmem [shape: f32[2,256,32], index: 0, kind: input, shape index: {}]
  %s1 = inlined_call_operand.vmem [shape: f32[2,256,32], index: 1, kind: input, shape index: {}]
  %s2 = inlined_call_operand.vmem [shape: f32[1,32], index: 2, kind: input, shape index: {}]
  %s3 = inlined_call_operand.vmem [shape: f32[1,32], index: 3, kind: input, shape index: {}]
  %s4 = inlined_call_operand.vmem [shape: bf16[3,96,32], index: 4, kind: input, shape index: {}]
  %s5 = inlined_call_operand.vmem [shape: f32[1,32], index: 5, kind: input, shape index: {}]
  %s6 = inlined_call_operand.hbm [shape: f32[2,256,32], index: 6, kind: output, shape index: {}]
  %s7 = sld [smem:[#allocation0]]
  $region57: #{ftb_forward.3} parent=0
    _
  %s9 = ssub.s32 1, %s7
  %s10 = scalar_select 0, %s9, %s7
  $region1: #{ftb_forward.3} parent=0
    #allocation2 [shape = 'u8[262144]{0}', space=vmem, size = 0x40000, scoped, tag = 'output window, operand 0']
    #allocation3 [shape = 's32[2]{0}', space=sflag, size = 0x8, scoped, tag = 'scoped memory for ftb_forward.3']
    %11 = vsyncpa [#allocation3], 0
    %s12 = scalar_lea.sflag [#allocation3], 1
    %13 = vsyncpa %s12, 0
    loop: start=0, step=1, limit=4
    $region2: #{ftb_forward.3} parent=1 // loop_pre_header
      _
    $region3: #{ftb_forward.3} parent=1 // loop_header
      %s15 = sphi 0, %s19
      %p16 = scmp.ge.s32.totalorder %s15, 4
      %s25 = sphi 0, %s27
      %s28 = sphi 0, %s25
      %s29 = sphi 0, %s28
      %s45 = sphi 0, %s29
      %s51 = sphi 0, %s53
      %s54 = sphi 0, %s51
      %s55 = sphi 0, %s54
      %s71 = sphi 0, %s55
      %s75 = sphi 0, %s75
      %s77 = sphi 0, %s75
      %s78 = sphi 0, %s77
      %s92 = sphi 0, %s78
      %s96 = sphi 0, %s96
      %s98 = sphi 0, %s96
      %s99 = sphi 0, %s98
      %s113 = sphi 0, %s99
      %s117 = sphi 0, %s117
      %s119 = sphi 0, %s117
      %s120 = sphi 0, %s119
      %s134 = sphi 0, %s120
      %s138 = sphi 0, %s138
      %s140 = sphi 0, %s138
      %s141 = sphi 0, %s140
      %s155 = sphi 0, %s141
      %s161 = sphi 0, %s163
      %s164 = sphi 0, %s161
      %s165 = sphi 0, %s164
      %s181 = sphi 0, %s165
    $region4: #{ftb_forward.3} parent=1 // loop_header_branch
      %18 = sbr.rel (%p16) target = $region8
    $region5: #{ftb_forward.3} parent=1 // loop_body
      %s20 = ssub.s32 %s15, 1
      %s21 = ssub.s32 %s15, 2
      %s22 = sadd.s32 %s15, 1
      %s23 = ssub.s32 %s15, %s22
      %p24 = scmp.eq.s32.totalorder %s23, 0
      %s26 = sadd.s32 %s25, 1
      %s27 = scalar_select %p24, %s25, %s26
      %p30 = pneg %p24
      %p31 = scmp.eq.s32.totalorder %s15, 1
      %p32 = por %p30, %p31
      %p33 = scmp.ne.s32.totalorder %s25, %s28
      %p34 = scmp.eq.s32.totalorder %s15, 0
      %p35 = por %p33, %p34
      %p36 = scmp.ne.s32.totalorder %s25, %s28
      %p37 = scmp.eq.s32.totalorder %s20, 1
      %p38 = por %p36, %p37
      %p39 = scmp.ne.s32.totalorder %s28, %s29
      %p40 = scmp.eq.s32.totalorder %s20, 0
      %p41 = por %p39, %p40
      %p42 = scmp.ne.s32.totalorder %s28, %s29
      %p43 = scmp.eq.s32.totalorder %s21, 1
      %p44 = por %p42, %p43
      %p46 = scmp.ne.s32.totalorder %s29, %s45
      %p47 = scmp.eq.s32.totalorder %s21, 0
      %p48 = por %p46, %p47
      %s49 = ssub.s32 %s15, %s22
      %p50 = scmp.eq.s32.totalorder %s49, 0
      %s52 = sadd.s32 %s51, 1
      %s53 = scalar_select %p50, %s51, %s52
      %p56 = pneg %p50
      %p57 = scmp.eq.s32.totalorder %s15, 1
      %p58 = por %p56, %p57
      %p59 = scmp.ne.s32.totalorder %s51, %s54
      %p60 = scmp.eq.s32.totalorder %s15, 0
      %p61 = por %p59, %p60
      %p62 = scmp.ne.s32.totalorder %s51, %s54
      %p63 = scmp.eq.s32.totalorder %s20, 1
      %p64 = por %p62, %p63
      %p65 = scmp.ne.s32.totalorder %s54, %s55
      %p66 = scmp.eq.s32.totalorder %s20, 0
      %p67 = por %p65, %p66
      %p68 = scmp.ne.s32.totalorder %s54, %s55
      %p69 = scmp.eq.s32.totalorder %s21, 1
      %p70 = por %p68, %p69
      %p72 = scmp.ne.s32.totalorder %s55, %s71
      %p73 = scmp.eq.s32.totalorder %s21, 0
      %p74 = por %p72, %p73
      %s76 = sadd.s32 %s75, 1
      %p79 = scmp.eq.s32.totalorder %s15, 1
      %p80 = scmp.ne.s32.totalorder %s75, %s77
      %p81 = scmp.eq.s32.totalorder %s15, 0
      %p82 = por %p80, %p81
      %p83 = scmp.ne.s32.totalorder %s75, %s77
      %p84 = scmp.eq.s32.totalorder %s20, 1
      %p85 = por %p83, %p84
      %p86 = scmp.ne.s32.totalorder %s77, %s78
      %p87 = scmp.eq.s32.totalorder %s20, 0
      %p88 = por %p86, %p87
      %p89 = scmp.ne.s32.totalorder %s77, %s78
      %p90 = scmp.eq.s32.totalorder %s21, 1
      %p91 = por %p89, %p90
      %p93 = scmp.ne.s32.totalorder %s78, %s92
      %p94 = scmp.eq.s32.totalorder %s21, 0
      %p95 = por %p93, %p94
      %s97 = sadd.s32 %s96, 1
      %p100 = scmp.eq.s32.totalorder %s15, 1
      %p101 = scmp.ne.s32.totalorder %s96, %s98
      %p102 = scmp.eq.s32.totalorder %s15, 0
      %p103 = por %p101, %p102
      %p104 = scmp.ne.s32.totalorder %s96, %s98
      %p105 = scmp.eq.s32.totalorder %s20, 1
      %p106 = por %p104, %p105
      %p107 = scmp.ne.s32.totalorder %s98, %s99
      %p108 = scmp.eq.s32.totalorder %s20, 0
      %p109 = por %p107, %p108
      %p110 = scmp.ne.s32.totalorder %s98, %s99
      %p111 = scmp.eq.s32.totalorder %s21, 1
      %p112 = por %p110, %p111
      %p114 = scmp.ne.s32.totalorder %s99, %s113
      %p115 = scmp.eq.s32.totalorder %s21, 0
      %p116 = por %p114, %p115
      %s118 = sadd.s32 %s117, 1
      %p121 = scmp.eq.s32.totalorder %s15, 1
      %p122 = scmp.ne.s32.totalorder %s117, %s119
      %p123 = scmp.eq.s32.totalorder %s15, 0
      %p124 = por %p122, %p123
      %p125 = scmp.ne.s32.totalorder %s117, %s119
      %p126 = scmp.eq.s32.totalorder %s20, 1
      %p127 = por %p125, %p126
      %p128 = scmp.ne.s32.totalorder %s119, %s120
      %p129 = scmp.eq.s32.totalorder %s20, 0
      %p130 = por %p128, %p129
      %p131 = scmp.ne.s32.totalorder %s119, %s120
      %p132 = scmp.eq.s32.totalorder %s21, 1
      %p133 = por %p131, %p132
      %p135 = scmp.ne.s32.totalorder %s120, %s134
      %p136 = scmp.eq.s32.totalorder %s21, 0
      %p137 = por %p135, %p136
      %s139 = sadd.s32 %s138, 1
      %p142 = scmp.eq.s32.totalorder %s15, 1
      %p143 = scmp.ne.s32.totalorder %s138, %s140
      %p144 = scmp.eq.s32.totalorder %s15, 0
      %p145 = por %p143, %p144
      %p146 = scmp.ne.s32.totalorder %s138, %s140
      %p147 = scmp.eq.s32.totalorder %s20, 1
      %p148 = por %p146, %p147
      %p149 = scmp.ne.s32.totalorder %s140, %s141
      %p150 = scmp.eq.s32.totalorder %s20, 0
      %p151 = por %p149, %p150
      %p152 = scmp.ne.s32.totalorder %s140, %s141
      %p153 = scmp.eq.s32.totalorder %s21, 1
      %p154 = por %p152, %p153
      %p156 = scmp.ne.s32.totalorder %s141, %s155
      %p157 = scmp.eq.s32.totalorder %s21, 0
      %p158 = por %p156, %p157
      %s159 = ssub.s32 %s15, %s22
      %p160 = scmp.eq.s32.totalorder %s159, 0
      %s162 = sadd.s32 %s161, 1
      %s163 = scalar_select %p160, %s161, %s162
      %p166 = pneg %p160
      %p167 = scmp.eq.s32.totalorder %s15, 1
      %p168 = por %p166, %p167
      %p169 = scmp.ne.s32.totalorder %s161, %s164
      %p170 = scmp.eq.s32.totalorder %s15, 0
      %p171 = por %p169, %p170
      %p172 = scmp.ne.s32.totalorder %s161, %s164
      %p173 = scmp.eq.s32.totalorder %s20, 1
      %p174 = por %p172, %p173
      %p175 = scmp.ne.s32.totalorder %s164, %s165
      %p176 = scmp.eq.s32.totalorder %s20, 0
      %p177 = por %p175, %p176
      %p178 = scmp.ne.s32.totalorder %s164, %s165
      %p179 = scmp.eq.s32.totalorder %s21, 1
      %p180 = por %p178, %p179
      %p182 = scmp.ne.s32.totalorder %s165, %s181
      %p183 = scmp.eq.s32.totalorder %s21, 0
      %p184 = por %p182, %p183
      %p185 = scmp.le.s32.totalorder 1, %s15
      %p186 = scmp.lt.s32.totalorder %s15, 3
      %p187 = pnand %p185, %p186
      %p188 = pneg %p187
      // Predicated region
      $region9: #{ftb_forward.3} parent=5 // pred_check
        _
      $region10: #{ftb_forward.3} parent=5 // pred_check_branch
        %190 = sbr.rel (%p187) target = $region12
      $region11: #{ftb_forward.3} parent=5 // pred_region
        %s191 = ssub.s32 %s15, 1
        // Predicated region
        $region13: #{ftb_forward.3} parent=11 // pred_check
          %p192 = pneg %p88
        $region14: #{ftb_forward.3} parent=11 // pred_check_branch
          %194 = sbr.rel (%p192) target = $region16
        $region15: #{ftb_forward.3} parent=11 // pred_region
          _
        $region16: #{ftb_forward.3} parent=11 // pred_fallthru
          _
        // Predicated region
        $region17: #{ftb_forward.3} parent=11 // pred_check
          %p195 = pneg %p109
        $region18: #{ftb_forward.3} parent=11 // pred_check_branch
          %197 = sbr.rel (%p195) target = $region20
        $region19: #{ftb_forward.3} parent=11 // pred_region
          _
        $region20: #{ftb_forward.3} parent=11 // pred_fallthru
          _
        // Predicated region
        $region21: #{ftb_forward.3} parent=11 // pred_check
          %p198 = pneg %p130
        $region22: #{ftb_forward.3} parent=11 // pred_check_branch
          %200 = sbr.rel (%p198) target = $region24
        $region23: #{ftb_forward.3} parent=11 // pred_region
          _
        $region24: #{ftb_forward.3} parent=11 // pred_fallthru
          _
        // Predicated region
        $region25: #{ftb_forward.3} parent=11 // pred_check
          %p201 = pneg %p151
        $region26: #{ftb_forward.3} parent=11 // pred_check_branch
          %203 = sbr.rel (%p201) target = $region28
        $region27: #{ftb_forward.3} parent=11 // pred_region
          _
        $region28: #{ftb_forward.3} parent=11 // pred_fallthru
          _
      $region12: #{ftb_forward.3} parent=5 // pred_fallthru
        _
      %p204 = scmp.lt.s32.totalorder %s15, 2
      // Predicated region
      $region29: #{ftb_forward.3} parent=5 // pred_check
        %p205 = pneg %p204
      $region30: #{ftb_forward.3} parent=5 // pred_check_branch
        %207 = sbr.rel (%p205) target = $region32
      $region31: #{ftb_forward.3} parent=5 // pred_region
        // Predicated region
        $region33: #{ftb_forward.3} parent=31 // pred_check
          %p208 = pneg %p35
        $region34: #{ftb_forward.3} parent=31 // pred_check_branch
          %210 = sbr.rel (%p208) target = $region36
        $region35: #{ftb_forward.3} parent=31 // pred_region
          %p211 = scmp.lt.s32.totalorder %s15, 1
          %s212 = scalar_select %p211, %s15, 1
          %s213 = smul.addr %s212, 32
          %s214 = smul.addr %s213, 8
          %s215 = scalar_lea.vmem %s0, %s214
        $region36: #{ftb_forward.3} parent=31 // pred_fallthru
          _
        // Predicated region
        $region37: #{ftb_forward.3} parent=31 // pred_check
          %p216 = pneg %p61
        $region38: #{ftb_forward.3} parent=31 // pred_check_branch
          %218 = sbr.rel (%p216) target = $region40
        $region39: #{ftb_forward.3} parent=31 // pred_region
          %p219 = scmp.lt.s32.totalorder %s15, 1
          %s220 = scalar_select %p219, %s15, 1
          %s221 = smul.addr %s220, 32
          %s222 = smul.addr %s221, 8
          %s223 = scalar_lea.vmem %s1, %s222
        $region40: #{ftb_forward.3} parent=31 // pred_fallthru
          _
      $region32: #{ftb_forward.3} parent=5 // pred_fallthru
        _
      %p224 = scmp.le.s32.totalorder 1, %s15
      %p225 = scmp.lt.s32.totalorder %s15, 3
      %p226 = pnand %p224, %p225
      %p227 = pneg %p226
      // Predicated region
      $region41: #{ftb_forward.3} parent=5 // pred_check
        _
      $region42: #{ftb_forward.3} parent=5 // pred_check_branch
        %229 = sbr.rel (%p226) target = $region44
      $region43: #{ftb_forward.3} parent=5 // pred_region
        %s230 = ssub.s32 %s15, 1
        %p231 = scmp.lt.s32.totalorder %s20, 1
        %s232 = scalar_select %p231, %s20, 1
        %s233 = smul.addr %s232, 32
        %s234 = smul.addr %s233, 8
        %s235 = scalar_lea.vmem %s0, %s234
        %p236 = pneg %p41
        %p237 = pneg %p38
        %p238 = scmp.lt.s32.totalorder %s20, 1
        %s239 = scalar_select %p238, %s20, 1
        %s240 = smul.addr %s239, 32
        %s241 = smul.addr %s240, 8
        %s242 = scalar_lea.vmem %s1, %s241
        %p243 = pneg %p67
        %p244 = pneg %p64
        %p245 = pneg %p88
        %p246 = pneg %p85
        %p247 = pneg %p109
        %p248 = pneg %p106
        %p249 = pneg %p130
        %p250 = pneg %p127
        %p251 = pneg %p151
        %p252 = pneg %p148
        %p253 = pneg %p177
        %p254 = pneg %p174
        %s255 = sand.u32 %s164, 1
        %s256 = scalar_lea.sflag [#allocation3], %s255
        %s257 = sand.u32 %s164, 1
        %s258 = smul.addr %s257, 256
        %s259 = scalar_lea.vmem [#allocation2], %s258
        %p260 = scmp.lt.s32.totalorder %s20, 1
        %s261 = scalar_select %p260, %s20, 1
        %s262 = smul.addr %s261, 32
        %s263 = smul.addr %s262, 8
        %s264 = scalar_lea.vmem %s0, %s263
        %p265 = scmp.lt.s32.totalorder %s20, 1
        %s266 = scalar_select %p265, %s20, 1
        %s267 = smul.addr %s266, 32
        %s268 = smul.addr %s267, 8
        %s269 = scalar_lea.vmem %s1, %s268
        %v273 = vld [vmem:[%s269] sm:$0xff]
        %v274 = vld [vmem:[%s269 + $0x8] sm:$0xff]
        %v275 = vld [vmem:[%s269 + $0x10] sm:$0xff]
        %v276 = vld [vmem:[%s269 + $0x18] sm:$0xff]
        %v277 = vld [vmem:[%s269 + $0x20] sm:$0xff]
        %v278 = vld [vmem:[%s269 + $0x28] sm:$0xff]
        %v279 = vld [vmem:[%s269 + $0x30] sm:$0xff]
        %v280 = vld [vmem:[%s269 + $0x38] sm:$0xff]
        %v281 = vld [vmem:[%s269 + $0x40] sm:$0xff]
        %v282 = vld [vmem:[%s269 + $0x48] sm:$0xff]
        %v283 = vld [vmem:[%s269 + $0x50] sm:$0xff]
        %v284 = vld [vmem:[%s269 + $0x58] sm:$0xff]
        %v285 = vld [vmem:[%s269 + $0x60] sm:$0xff]
        %v286 = vld [vmem:[%s269 + $0x68] sm:$0xff]
        %v287 = vld [vmem:[%s269 + $0x70] sm:$0xff]
        %v288 = vld [vmem:[%s269 + $0x78] sm:$0xff]
        %v289 = vld [vmem:[%s269 + $0x80] sm:$0xff]
        %v290 = vld [vmem:[%s269 + $0x88] sm:$0xff]
        %v291 = vld [vmem:[%s269 + $0x90] sm:$0xff]
        %v292 = vld [vmem:[%s269 + $0x98] sm:$0xff]
        %v293 = vld [vmem:[%s269 + $0xa0] sm:$0xff]
        %v294 = vld [vmem:[%s269 + $0xa8] sm:$0xff]
        %v295 = vld [vmem:[%s269 + $0xb0] sm:$0xff]
        %v296 = vld [vmem:[%s269 + $0xb8] sm:$0xff]
        %v297 = vld [vmem:[%s269 + $0xc0] sm:$0xff]
        %v298 = vld [vmem:[%s269 + $0xc8] sm:$0xff]
        %v299 = vld [vmem:[%s269 + $0xd0] sm:$0xff]
        %v300 = vld [vmem:[%s269 + $0xd8] sm:$0xff]
        %v301 = vld [vmem:[%s269 + $0xe0] sm:$0xff]
        %v302 = vld [vmem:[%s269 + $0xe8] sm:$0xff]
        %v303 = vld [vmem:[%s269 + $0xf0] sm:$0xff]
        %v304 = vld [vmem:[%s269 + $0xf8] sm:$0xff]
        %v305 = vld [vmem:[%s2] sm:$0x1]
        %v307 = vlaneseq
        %v308 = vshrl.u32 %v307, 7
        %v309 = vsub.s32 0, %v308
        %v310 = vrot.slane %v305, %v309
        %v312 = vmul.f32 %v273, %v310
        %v313 = vmul.f32 %v274, %v310
        %v314 = vmul.f32 %v275, %v310
        %v315 = vmul.f32 %v276, %v310
        %v316 = vmul.f32 %v277, %v310
        %v317 = vmul.f32 %v278, %v310
        %v318 = vmul.f32 %v279, %v310
        %v319 = vmul.f32 %v280, %v310
        %v320 = vmul.f32 %v281, %v310
        %v321 = vmul.f32 %v282, %v310
        %v322 = vmul.f32 %v283, %v310
        %v323 = vmul.f32 %v284, %v310
        %v324 = vmul.f32 %v285, %v310
        %v325 = vmul.f32 %v286, %v310
        %v326 = vmul.f32 %v287, %v310
        %v327 = vmul.f32 %v288, %v310
        %v328 = vmul.f32 %v289, %v310
        %v329 = vmul.f32 %v290, %v310
        %v330 = vmul.f32 %v291, %v310
        %v331 = vmul.f32 %v292, %v310
        %v332 = vmul.f32 %v293, %v310
        %v333 = vmul.f32 %v294, %v310
        %v334 = vmul.f32 %v295, %v310
        %v335 = vmul.f32 %v296, %v310
        %v336 = vmul.f32 %v297, %v310
        %v337 = vmul.f32 %v298, %v310
        %v338 = vmul.f32 %v299, %v310
        %v339 = vmul.f32 %v300, %v310
        %v340 = vmul.f32 %v301, %v310
        %v341 = vmul.f32 %v302, %v310
        %v342 = vmul.f32 %v303, %v310
        %v343 = vmul.f32 %v304, %v310
        %v344 = vld [vmem:[%s3] sm:$0x1]
        %v346 = vlaneseq
        %v347 = vshrl.u32 %v346, 7
        %v348 = vsub.s32 0, %v347
        %v349 = vrot.slane %v344, %v348
        %v351 = vadd.f32 %v312, %v349
        %v352 = vadd.f32 %v313, %v349
        %v353 = vadd.f32 %v314, %v349
        %v354 = vadd.f32 %v315, %v349
        %v355 = vadd.f32 %v316, %v349
        %v356 = vadd.f32 %v317, %v349
        %v357 = vadd.f32 %v318, %v349
        %v358 = vadd.f32 %v319, %v349
        %v359 = vadd.f32 %v320, %v349
        %v360 = vadd.f32 %v321, %v349
        %v361 = vadd.f32 %v322, %v349
        %v362 = vadd.f32 %v323, %v349
        %v363 = vadd.f32 %v324, %v349
        %v364 = vadd.f32 %v325, %v349
        %v365 = vadd.f32 %v326, %v349
        %v366 = vadd.f32 %v327, %v349
        %v367 = vadd.f32 %v328, %v349
        %v368 = vadd.f32 %v329, %v349
        %v369 = vadd.f32 %v330, %v349
        %v370 = vadd.f32 %v331, %v349
        %v371 = vadd.f32 %v332, %v349
        %v372 = vadd.f32 %v333, %v349
        %v373 = vadd.f32 %v334, %v349
        %v374 = vadd.f32 %v335, %v349
        %v375 = vadd.f32 %v336, %v349
        %v376 = vadd.f32 %v337, %v349
        %v377 = vadd.f32 %v338, %v349
        %v378 = vadd.f32 %v339, %v349
        %v379 = vadd.f32 %v340, %v349
        %v380 = vadd.f32 %v341, %v349
        %v381 = vadd.f32 %v342, %v349
        %v382 = vadd.f32 %v343, %v349
        %v383 = vmax.f32 %v351, 0.0
        %v384 = vmax.f32 %v352, 0.0
        %v385 = vmax.f32 %v353, 0.0
        %v386 = vmax.f32 %v354, 0.0
        %v387 = vmax.f32 %v355, 0.0
        %v388 = vmax.f32 %v356, 0.0
        %v389 = vmax.f32 %v357, 0.0
        %v390 = vmax.f32 %v358, 0.0
        %v391 = vmax.f32 %v359, 0.0
        %v392 = vmax.f32 %v360, 0.0
        %v393 = vmax.f32 %v361, 0.0
        %v394 = vmax.f32 %v362, 0.0
        %v395 = vmax.f32 %v363, 0.0
        %v396 = vmax.f32 %v364, 0.0
        %v397 = vmax.f32 %v365, 0.0
        %v398 = vmax.f32 %v366, 0.0
        %v399 = vmax.f32 %v367, 0.0
        %v400 = vmax.f32 %v368, 0.0
        %v401 = vmax.f32 %v369, 0.0
        %v402 = vmax.f32 %v370, 0.0
        %v403 = vmax.f32 %v371, 0.0
        %v404 = vmax.f32 %v372, 0.0
        %v405 = vmax.f32 %v373, 0.0
        %v406 = vmax.f32 %v374, 0.0
        %v407 = vmax.f32 %v375, 0.0
        %v408 = vmax.f32 %v376, 0.0
        %v409 = vmax.f32 %v377, 0.0
        %v410 = vmax.f32 %v378, 0.0
        %v411 = vmax.f32 %v379, 0.0
        %v412 = vmax.f32 %v380, 0.0
        %v413 = vmax.f32 %v381, 0.0
        %v414 = vmax.f32 %v382, 0.0
        %v415 = vlaneseq
        %v416 = vshrl.u32 %v415, 7
        %v417 = vadd.s32 %v416, 8
        %v418 = vadd.s32 %v416, 16
        %v419 = vadd.s32 %v416, 24
        %v420 = vadd.s32 %v416, 32
        %v421 = vadd.s32 %v416, 40
        %v422 = vadd.s32 %v416, 48
        %v423 = vadd.s32 %v416, 56
        %v424 = vadd.s32 %v416, 64
        %v425 = vadd.s32 %v416, 72
        %v426 = vadd.s32 %v416, 80
        %v427 = vadd.s32 %v416, 88
        %v428 = vadd.s32 %v416, 96
        %v429 = vadd.s32 %v416, 104
        %v430 = vadd.s32 %v416, 112
        %v431 = vadd.s32 %v416, 120
        %v432 = vadd.s32 %v416, 128
        %v433 = vadd.s32 %v416, 136
        %v434 = vadd.s32 %v416, 144
        %v435 = vadd.s32 %v416, 152
        %v436 = vadd.s32 %v416, 160
        %v437 = vadd.s32 %v416, 168
        %v438 = vadd.s32 %v416, 176
        %v439 = vadd.s32 %v416, 184
        %v440 = vadd.s32 %v416, 192
        %v441 = vadd.s32 %v416, 200
        %v442 = vadd.s32 %v416, 208
        %v443 = vadd.s32 %v416, 216
        %v444 = vadd.s32 %v416, 224
        %v445 = vadd.s32 %v416, 232
        %v446 = vadd.s32 %v416, 240
        %v447 = vadd.s32 %v416, 248
        %vm448 = vcmp.lt.s32.totalorder %v416, 0
        %v449 = vsub.s32 0, %v416
        %v450 = vsel %vm448, %v449, %v416
        %v451 = vshrl.u32 %v450, 4
        %v452 = vand.u32 %v450, 15
        %v453 = vsub.s32 0, %v452
        %v454 = vsel %vm448, %v453, %v452
        %vm455 = vcmp.lt.s32.totalorder %v417, 0
        %v456 = vsub.s32 0, %v417
        %v457 = vsel %vm455, %v456, %v417
        %v458 = vshrl.u32 %v457, 4
        %v459 = vand.u32 %v457, 15
        %v460 = vsub.s32 0, %v459
        %v461 = vsel %vm455, %v460, %v459
        %vm462 = vcmp.lt.s32.totalorder %v418, 0
        %v463 = vsub.s32 0, %v418
        %v464 = vsel %vm462, %v463, %v418
        %v465 = vshrl.u32 %v464, 4
        %v466 = vand.u32 %v464, 15
        %v467 = vsub.s32 0, %v466
        %v468 = vsel %vm462, %v467, %v466
        %vm469 = vcmp.lt.s32.totalorder %v419, 0
        %v470 = vsub.s32 0, %v419
        %v471 = vsel %vm469, %v470, %v419
        %v472 = vshrl.u32 %v471, 4
        %v473 = vand.u32 %v471, 15
        %v474 = vsub.s32 0, %v473
        %v475 = vsel %vm469, %v474, %v473
        %vm476 = vcmp.lt.s32.totalorder %v420, 0
        %v477 = vsub.s32 0, %v420
        %v478 = vsel %vm476, %v477, %v420
        %v479 = vshrl.u32 %v478, 4
        %v480 = vand.u32 %v478, 15
        %v481 = vsub.s32 0, %v480
        %v482 = vsel %vm476, %v481, %v480
        %vm483 = vcmp.lt.s32.totalorder %v421, 0
        %v484 = vsub.s32 0, %v421
        %v485 = vsel %vm483, %v484, %v421
        %v486 = vshrl.u32 %v485, 4
        %v487 = vand.u32 %v485, 15
        %v488 = vsub.s32 0, %v487
        %v489 = vsel %vm483, %v488, %v487
        %vm490 = vcmp.lt.s32.totalorder %v422, 0
        %v491 = vsub.s32 0, %v422
        %v492 = vsel %vm490, %v491, %v422
        %v493 = vshrl.u32 %v492, 4
        %v494 = vand.u32 %v492, 15
        %v495 = vsub.s32 0, %v494
        %v496 = vsel %vm490, %v495, %v494
        %vm497 = vcmp.lt.s32.totalorder %v423, 0
        %v498 = vsub.s32 0, %v423
        %v499 = vsel %vm497, %v498, %v423
        %v500 = vshrl.u32 %v499, 4
        %v501 = vand.u32 %v499, 15
        %v502 = vsub.s32 0, %v501
        %v503 = vsel %vm497, %v502, %v501
        %vm504 = vcmp.lt.s32.totalorder %v424, 0
        %v505 = vsub.s32 0, %v424
        %v506 = vsel %vm504, %v505, %v424
        %v507 = vshrl.u32 %v506, 4
        %v508 = vand.u32 %v506, 15
        %v509 = vsub.s32 0, %v508
        %v510 = vsel %vm504, %v509, %v508
        %vm511 = vcmp.lt.s32.totalorder %v425, 0
        %v512 = vsub.s32 0, %v425
        %v513 = vsel %vm511, %v512, %v425
        %v514 = vshrl.u32 %v513, 4
        %v515 = vand.u32 %v513, 15
        %v516 = vsub.s32 0, %v515
        %v517 = vsel %vm511, %v516, %v515
        %vm518 = vcmp.lt.s32.totalorder %v426, 0
        %v519 = vsub.s32 0, %v426
        %v520 = vsel %vm518, %v519, %v426
        %v521 = vshrl.u32 %v520, 4
        %v522 = vand.u32 %v520, 15
        %v523 = vsub.s32 0, %v522
        %v524 = vsel %vm518, %v523, %v522
        %vm525 = vcmp.lt.s32.totalorder %v427, 0
        %v526 = vsub.s32 0, %v427
        %v527 = vsel %vm525, %v526, %v427
        %v528 = vshrl.u32 %v527, 4
        %v529 = vand.u32 %v527, 15
        %v530 = vsub.s32 0, %v529
        %v531 = vsel %vm525, %v530, %v529
        %vm532 = vcmp.lt.s32.totalorder %v428, 0
        %v533 = vsub.s32 0, %v428
        %v534 = vsel %vm532, %v533, %v428
        %v535 = vshrl.u32 %v534, 4
        %v536 = vand.u32 %v534, 15
        %v537 = vsub.s32 0, %v536
        %v538 = vsel %vm532, %v537, %v536
        %vm539 = vcmp.lt.s32.totalorder %v429, 0
        %v540 = vsub.s32 0, %v429
        %v541 = vsel %vm539, %v540, %v429
        %v542 = vshrl.u32 %v541, 4
        %v543 = vand.u32 %v541, 15
        %v544 = vsub.s32 0, %v543
        %v545 = vsel %vm539, %v544, %v543
        %vm546 = vcmp.lt.s32.totalorder %v430, 0
        %v547 = vsub.s32 0, %v430
        %v548 = vsel %vm546, %v547, %v430
        %v549 = vshrl.u32 %v548, 4
        %v550 = vand.u32 %v548, 15
        %v551 = vsub.s32 0, %v550
        %v552 = vsel %vm546, %v551, %v550
        %vm553 = vcmp.lt.s32.totalorder %v431, 0
        %v554 = vsub.s32 0, %v431
        %v555 = vsel %vm553, %v554, %v431
        %v556 = vshrl.u32 %v555, 4
        %v557 = vand.u32 %v555, 15
        %v558 = vsub.s32 0, %v557
        %v559 = vsel %vm553, %v558, %v557
        %vm560 = vcmp.lt.s32.totalorder %v432, 0
        %v561 = vsub.s32 0, %v432
        %v562 = vsel %vm560, %v561, %v432
        %v563 = vshrl.u32 %v562, 4
        %v564 = vand.u32 %v562, 15
        %v565 = vsub.s32 0, %v564
        %v566 = vsel %vm560, %v565, %v564
        %vm567 = vcmp.lt.s32.totalorder %v433, 0
        %v568 = vsub.s32 0, %v433
        %v569 = vsel %vm567, %v568, %v433
        %v570 = vshrl.u32 %v569, 4
        %v571 = vand.u32 %v569, 15
        %v572 = vsub.s32 0, %v571
        %v573 = vsel %vm567, %v572, %v571
        %vm574 = vcmp.lt.s32.totalorder %v434, 0
        %v575 = vsub.s32 0, %v434
        %v576 = vsel %vm574, %v575, %v434
        %v577 = vshrl.u32 %v576, 4
        %v578 = vand.u32 %v576, 15
        %v579 = vsub.s32 0, %v578
        %v580 = vsel %vm574, %v579, %v578
        %vm581 = vcmp.lt.s32.totalorder %v435, 0
        %v582 = vsub.s32 0, %v435
        %v583 = vsel %vm581, %v582, %v435
        %v584 = vshrl.u32 %v583, 4
        %v585 = vand.u32 %v583, 15
        %v586 = vsub.s32 0, %v585
        %v587 = vsel %vm581, %v586, %v585
        %vm588 = vcmp.lt.s32.totalorder %v436, 0
        %v589 = vsub.s32 0, %v436
        %v590 = vsel %vm588, %v589, %v436
        %v591 = vshrl.u32 %v590, 4
        %v592 = vand.u32 %v590, 15
        %v593 = vsub.s32 0, %v592
        %v594 = vsel %vm588, %v593, %v592
        %vm595 = vcmp.lt.s32.totalorder %v437, 0
        %v596 = vsub.s32 0, %v437
        %v597 = vsel %vm595, %v596, %v437
        %v598 = vshrl.u32 %v597, 4
        %v599 = vand.u32 %v597, 15
        %v600 = vsub.s32 0, %v599
        %v601 = vsel %vm595, %v600, %v599
        %vm602 = vcmp.lt.s32.totalorder %v438, 0
        %v603 = vsub.s32 0, %v438
        %v604 = vsel %vm602, %v603, %v438
        %v605 = vshrl.u32 %v604, 4
        %v606 = vand.u32 %v604, 15
        %v607 = vsub.s32 0, %v606
        %v608 = vsel %vm602, %v607, %v606
        %vm609 = vcmp.lt.s32.totalorder %v439, 0
        %v610 = vsub.s32 0, %v439
        %v611 = vsel %vm609, %v610, %v439
        %v612 = vshrl.u32 %v611, 4
        %v613 = vand.u32 %v611, 15
        %v614 = vsub.s32 0, %v613
        %v615 = vsel %vm609, %v614, %v613
        %vm616 = vcmp.lt.s32.totalorder %v440, 0
        %v617 = vsub.s32 0, %v440
        %v618 = vsel %vm616, %v617, %v440
        %v619 = vshrl.u32 %v618, 4
        %v620 = vand.u32 %v618, 15
        %v621 = vsub.s32 0, %v620
        %v622 = vsel %vm616, %v621, %v620
        %vm623 = vcmp.lt.s32.totalorder %v441, 0
        %v624 = vsub.s32 0, %v441
        %v625 = vsel %vm623, %v624, %v441
        %v626 = vshrl.u32 %v625, 4
        %v627 = vand.u32 %v625, 15
        %v628 = vsub.s32 0, %v627
        %v629 = vsel %vm623, %v628, %v627
        %vm630 = vcmp.lt.s32.totalorder %v442, 0
        %v631 = vsub.s32 0, %v442
        %v632 = vsel %vm630, %v631, %v442
        %v633 = vshrl.u32 %v632, 4
        %v634 = vand.u32 %v632, 15
        %v635 = vsub.s32 0, %v634
        %v636 = vsel %vm630, %v635, %v634
        %vm637 = vcmp.lt.s32.totalorder %v443, 0
        %v638 = vsub.s32 0, %v443
        %v639 = vsel %vm637, %v638, %v443
        %v640 = vshrl.u32 %v639, 4
        %v641 = vand.u32 %v639, 15
        %v642 = vsub.s32 0, %v641
        %v643 = vsel %vm637, %v642, %v641
        %vm644 = vcmp.lt.s32.totalorder %v444, 0
        %v645 = vsub.s32 0, %v444
        %v646 = vsel %vm644, %v645, %v444
        %v647 = vshrl.u32 %v646, 4
        %v648 = vand.u32 %v646, 15
        %v649 = vsub.s32 0, %v648
        %v650 = vsel %vm644, %v649, %v648
        %vm651 = vcmp.lt.s32.totalorder %v445, 0
        %v652 = vsub.s32 0, %v445
        %v653 = vsel %vm651, %v652, %v445
        %v654 = vshrl.u32 %v653, 4
        %v655 = vand.u32 %v653, 15
        %v656 = vsub.s32 0, %v655
        %v657 = vsel %vm651, %v656, %v655
        %vm658 = vcmp.lt.s32.totalorder %v446, 0
        %v659 = vsub.s32 0, %v446
        %v660 = vsel %vm658, %v659, %v446
        %v661 = vshrl.u32 %v660, 4
        %v662 = vand.u32 %v660, 15
        %v663 = vsub.s32 0, %v662
        %v664 = vsel %vm658, %v663, %v662
        %vm665 = vcmp.lt.s32.totalorder %v447, 0
        %v666 = vsub.s32 0, %v447
        %v667 = vsel %vm665, %v666, %v447
        %v668 = vshrl.u32 %v667, 4
        %v669 = vand.u32 %v667, 15
        %v670 = vsub.s32 0, %v669
        %v671 = vsel %vm665, %v670, %v669
        %vm672 = vcmp.ne.s32.totalorder %v454, 0
        %vm673 = vcmp.ne.s32.totalorder %v461, 0
        %vm674 = vcmp.ne.s32.totalorder %v468, 0
        %vm675 = vcmp.ne.s32.totalorder %v475, 0
        %vm676 = vcmp.ne.s32.totalorder %v482, 0
        %vm677 = vcmp.ne.s32.totalorder %v489, 0
        %vm678 = vcmp.ne.s32.totalorder %v496, 0
        %vm679 = vcmp.ne.s32.totalorder %v503, 0
        %vm680 = vcmp.ne.s32.totalorder %v510, 0
        %vm681 = vcmp.ne.s32.totalorder %v517, 0
        %vm682 = vcmp.ne.s32.totalorder %v524, 0
        %vm683 = vcmp.ne.s32.totalorder %v531, 0
        %vm684 = vcmp.ne.s32.totalorder %v538, 0
        %vm685 = vcmp.ne.s32.totalorder %v545, 0
        %vm686 = vcmp.ne.s32.totalorder %v552, 0
        %vm687 = vcmp.ne.s32.totalorder %v559, 0
        %vm688 = vcmp.ne.s32.totalorder %v566, 0
        %vm689 = vcmp.ne.s32.totalorder %v573, 0
        %vm690 = vcmp.ne.s32.totalorder %v580, 0
        %vm691 = vcmp.ne.s32.totalorder %v587, 0
        %vm692 = vcmp.ne.s32.totalorder %v594, 0
        %vm693 = vcmp.ne.s32.totalorder %v601, 0
        %vm694 = vcmp.ne.s32.totalorder %v608, 0
        %vm695 = vcmp.ne.s32.totalorder %v615, 0
        %vm696 = vcmp.ne.s32.totalorder %v622, 0
        %vm697 = vcmp.ne.s32.totalorder %v629, 0
        %vm698 = vcmp.ne.s32.totalorder %v636, 0
        %vm699 = vcmp.ne.s32.totalorder %v643, 0
        %vm700 = vcmp.ne.s32.totalorder %v650, 0
        %vm701 = vcmp.ne.s32.totalorder %v657, 0
        %vm702 = vcmp.ne.s32.totalorder %v664, 0
        %vm703 = vcmp.ne.s32.totalorder %v671, 0
        %vm704 = vcmp.lt.s32.totalorder %v454, 0
        %vm705 = vcmp.lt.s32.totalorder %v461, 0
        %vm706 = vcmp.lt.s32.totalorder %v468, 0
        %vm707 = vcmp.lt.s32.totalorder %v475, 0
        %vm708 = vcmp.lt.s32.totalorder %v482, 0
        %vm709 = vcmp.lt.s32.totalorder %v489, 0
        %vm710 = vcmp.lt.s32.totalorder %v496, 0
        %vm711 = vcmp.lt.s32.totalorder %v503, 0
        %vm712 = vcmp.lt.s32.totalorder %v510, 0
        %vm713 = vcmp.lt.s32.totalorder %v517, 0
        %vm714 = vcmp.lt.s32.totalorder %v524, 0
        %vm715 = vcmp.lt.s32.totalorder %v531, 0
        %vm716 = vcmp.lt.s32.totalorder %v538, 0
        %vm717 = vcmp.lt.s32.totalorder %v545, 0
        %vm718 = vcmp.lt.s32.totalorder %v552, 0
        %vm719 = vcmp.lt.s32.totalorder %v559, 0
        %vm720 = vcmp.lt.s32.totalorder %v566, 0
        %vm721 = vcmp.lt.s32.totalorder %v573, 0
        %vm722 = vcmp.lt.s32.totalorder %v580, 0
        %vm723 = vcmp.lt.s32.totalorder %v587, 0
        %vm724 = vcmp.lt.s32.totalorder %v594, 0
        %vm725 = vcmp.lt.s32.totalorder %v601, 0
        %vm726 = vcmp.lt.s32.totalorder %v608, 0
        %vm727 = vcmp.lt.s32.totalorder %v615, 0
        %vm728 = vcmp.lt.s32.totalorder %v622, 0
        %vm729 = vcmp.lt.s32.totalorder %v629, 0
        %vm730 = vcmp.lt.s32.totalorder %v636, 0
        %vm731 = vcmp.lt.s32.totalorder %v643, 0
        %vm732 = vcmp.lt.s32.totalorder %v650, 0
        %vm733 = vcmp.lt.s32.totalorder %v657, 0
        %vm734 = vcmp.lt.s32.totalorder %v664, 0
        %vm735 = vcmp.lt.s32.totalorder %v671, 0
        %vm736 = vmand %vm704, %vm672
        %vm737 = vmand %vm705, %vm673
        %vm738 = vmand %vm706, %vm674
        %vm739 = vmand %vm707, %vm675
        %vm740 = vmand %vm708, %vm676
        %vm741 = vmand %vm709, %vm677
        %vm742 = vmand %vm710, %vm678
        %vm743 = vmand %vm711, %vm679
        %vm744 = vmand %vm712, %vm680
        %vm745 = vmand %vm713, %vm681
        %vm746 = vmand %vm714, %vm682
        %vm747 = vmand %vm715, %vm683
        %vm748 = vmand %vm716, %vm684
        %vm749 = vmand %vm717, %vm685
        %vm750 = vmand %vm718, %vm686
        %vm751 = vmand %vm719, %vm687
        %vm752 = vmand %vm720, %vm688
        %vm753 = vmand %vm721, %vm689
        %vm754 = vmand %vm722, %vm690
        %vm755 = vmand %vm723, %vm691
        %vm756 = vmand %vm724, %vm692
        %vm757 = vmand %vm725, %vm693
        %vm758 = vmand %vm726, %vm694
        %vm759 = vmand %vm727, %vm695
        %vm760 = vmand %vm728, %vm696
        %vm761 = vmand %vm729, %vm697
        %vm762 = vmand %vm730, %vm698
        %vm763 = vmand %vm731, %vm699
        %vm764 = vmand %vm732, %vm700
        %vm765 = vmand %vm733, %vm701
        %vm766 = vmand %vm734, %vm702
        %vm767 = vmand %vm735, %vm703
        %v768 = vadd.s32 %v454, 16
        %v769 = vadd.s32 %v461, 16
        %v770 = vadd.s32 %v468, 16
        %v771 = vadd.s32 %v475, 16
        %v772 = vadd.s32 %v482, 16
        %v773 = vadd.s32 %v489, 16
        %v774 = vadd.s32 %v496, 16
        %v775 = vadd.s32 %v503, 16
        %v776 = vadd.s32 %v510, 16
        %v777 = vadd.s32 %v517, 16
        %v778 = vadd.s32 %v524, 16
        %v779 = vadd.s32 %v531, 16
        %v780 = vadd.s32 %v538, 16
        %v781 = vadd.s32 %v545, 16
        %v782 = vadd.s32 %v552, 16
        %v783 = vadd.s32 %v559, 16
        %v784 = vadd.s32 %v566, 16
        %v785 = vadd.s32 %v573, 16
        %v786 = vadd.s32 %v580, 16
        %v787 = vadd.s32 %v587, 16
        %v788 = vadd.s32 %v594, 16
        %v789 = vadd.s32 %v601, 16
        %v790 = vadd.s32 %v608, 16
        %v791 = vadd.s32 %v615, 16
        %v792 = vadd.s32 %v622, 16
        %v793 = vadd.s32 %v629, 16
        %v794 = vadd.s32 %v636, 16
        %v795 = vadd.s32 %v643, 16
        %v796 = vadd.s32 %v650, 16
        %v797 = vadd.s32 %v657, 16
        %v798 = vadd.s32 %v664, 16
        %v799 = vadd.s32 %v671, 16
        %v800 = vsel %vm736, %v768, %v454
        %v801 = vsel %vm737, %v769, %v461
        %v802 = vsel %vm738, %v770, %v468
        %v803 = vsel %vm739, %v771, %v475
        %v804 = vsel %vm740, %v772, %v482
        %v805 = vsel %vm741, %v773, %v489
        %v806 = vsel %vm742, %v774, %v496
        %v807 = vsel %vm743, %v775, %v503
        %v808 = vsel %vm744, %v776, %v510
        %v809 = vsel %vm745, %v777, %v517
        %v810 = vsel %vm746, %v778, %v524
        %v811 = vsel %vm747, %v779, %v531
        %v812 = vsel %vm748, %v780, %v538
        %v813 = vsel %vm749, %v781, %v545
        %v814 = vsel %vm750, %v782, %v552
        %v815 = vsel %vm751, %v783, %v559
        %v816 = vsel %vm752, %v784, %v566
        %v817 = vsel %vm753, %v785, %v573
        %v818 = vsel %vm754, %v786, %v580
        %v819 = vsel %vm755, %v787, %v587
        %v820 = vsel %vm756, %v788, %v594
        %v821 = vsel %vm757, %v789, %v601
        %v822 = vsel %vm758, %v790, %v608
        %v823 = vsel %vm759, %v791, %v615
        %v824 = vsel %vm760, %v792, %v622
        %v825 = vsel %vm761, %v793, %v629
        %v826 = vsel %vm762, %v794, %v636
        %v827 = vsel %vm763, %v795, %v643
        %v828 = vsel %vm764, %v796, %v650
        %v829 = vsel %vm765, %v797, %v657
        %v830 = vsel %vm766, %v798, %v664
        %v831 = vsel %vm767, %v799, %v671
        %v832 = vpack.c.bf16 %v384, %v383
        %v833 = vpack.c.bf16 %v386, %v385
        %v834 = vpack.c.bf16 %v388, %v387
        %v835 = vpack.c.bf16 %v390, %v389
        %v836 = vpack.c.bf16 %v392, %v391
        %v837 = vpack.c.bf16 %v394, %v393
        %v838 = vpack.c.bf16 %v396, %v395
        %v839 = vpack.c.bf16 %v398, %v397
        %v840 = vpack.c.bf16 %v400, %v399
        %v841 = vpack.c.bf16 %v402, %v401
        %v842 = vpack.c.bf16 %v404, %v403
        %v843 = vpack.c.bf16 %v406, %v405
        %v844 = vpack.c.bf16 %v408, %v407
        %v845 = vpack.c.bf16 %v410, %v409
        %v846 = vpack.c.bf16 %v412, %v411
        %v847 = vpack.c.bf16 %v414, %v413
        %vm848 = vcmp.ge.s32.totalorder %v800, 1
        %vm849 = vcmp.ge.s32.totalorder %v801, 1
        %vm850 = vcmp.ge.s32.totalorder %v802, 1
        %vm851 = vcmp.ge.s32.totalorder %v803, 1
        %vm852 = vcmp.ge.s32.totalorder %v804, 1
        %vm853 = vcmp.ge.s32.totalorder %v805, 1
        %vm854 = vcmp.ge.s32.totalorder %v806, 1
        %vm855 = vcmp.ge.s32.totalorder %v807, 1
        %vm856 = vcmp.ge.s32.totalorder %v808, 1
        %vm857 = vcmp.ge.s32.totalorder %v809, 1
        %vm858 = vcmp.ge.s32.totalorder %v810, 1
        %vm859 = vcmp.ge.s32.totalorder %v811, 1
        %vm860 = vcmp.ge.s32.totalorder %v812, 1
        %vm861 = vcmp.ge.s32.totalorder %v813, 1
        %vm862 = vcmp.ge.s32.totalorder %v814, 1
        %vm863 = vcmp.ge.s32.totalorder %v815, 1
        %vm864 = vcmp.ge.s32.totalorder %v816, 1
        %vm865 = vcmp.ge.s32.totalorder %v817, 1
        %vm866 = vcmp.ge.s32.totalorder %v818, 1
        %vm867 = vcmp.ge.s32.totalorder %v819, 1
        %vm868 = vcmp.ge.s32.totalorder %v820, 1
        %vm869 = vcmp.ge.s32.totalorder %v821, 1
        %vm870 = vcmp.ge.s32.totalorder %v822, 1
        %vm871 = vcmp.ge.s32.totalorder %v823, 1
        %vm872 = vcmp.ge.s32.totalorder %v824, 1
        %vm873 = vcmp.ge.s32.totalorder %v825, 1
        %vm874 = vcmp.ge.s32.totalorder %v826, 1
        %vm875 = vcmp.ge.s32.totalorder %v827, 1
        %vm876 = vcmp.ge.s32.totalorder %v828, 1
        %vm877 = vcmp.ge.s32.totalorder %v829, 1
        %vm878 = vcmp.ge.s32.totalorder %v830, 1
        %vm879 = vcmp.ge.s32.totalorder %v831, 1
        %vm880 = vsmask.f32 256
        %v882 = vshrl.u32 %v832, 16
        %v884 = vrot.slane %v882, 7
        %v885 = vshll.u32 %v832, 16
        %v887 = vor.u32 %v884, %v885
        %v889 = vshrl.u32 %v833, 16
        %v891 = vrot.slane %v889, 7
        %v892 = vshll.u32 %v833, 16
        %v894 = vor.u32 %v891, %v892
        %v895 = vsel %vm880, %v884, %v894
        %v897 = vshrl.u32 %v834, 16
        %v899 = vrot.slane %v897, 7
        %v900 = vshll.u32 %v834, 16
        %v902 = vor.u32 %v899, %v900
        %v903 = vsel %vm880, %v891, %v902
        %v905 = vshrl.u32 %v835, 16
        %v907 = vrot.slane %v905, 7
        %v908 = vshll.u32 %v835, 16
        %v910 = vor.u32 %v907, %v908
        %v911 = vsel %vm880, %v899, %v910
        %v913 = vshrl.u32 %v836, 16
        %v915 = vrot.slane %v913, 7
        %v916 = vshll.u32 %v836, 16
        %v918 = vor.u32 %v915, %v916
        %v919 = vsel %vm880, %v907, %v918
        %v921 = vshrl.u32 %v837, 16
        %v923 = vrot.slane %v921, 7
        %v924 = vshll.u32 %v837, 16
        %v926 = vor.u32 %v923, %v924
        %v927 = vsel %vm880, %v915, %v926
        %v929 = vshrl.u32 %v838, 16
        %v931 = vrot.slane %v929, 7
        %v932 = vshll.u32 %v838, 16
        %v934 = vor.u32 %v931, %v932
        %v935 = vsel %vm880, %v923, %v934
        %v937 = vshrl.u32 %v839, 16
        %v939 = vrot.slane %v937, 7
        %v940 = vshll.u32 %v839, 16
        %v942 = vor.u32 %v939, %v940
        %v943 = vsel %vm880, %v931, %v942
        %v945 = vshrl.u32 %v840, 16
        %v947 = vrot.slane %v945, 7
        %v948 = vshll.u32 %v840, 16
        %v950 = vor.u32 %v947, %v948
        %v951 = vsel %vm880, %v939, %v950
        %v953 = vshrl.u32 %v841, 16
        %v955 = vrot.slane %v953, 7
        %v956 = vshll.u32 %v841, 16
        %v958 = vor.u32 %v955, %v956
        %v959 = vsel %vm880, %v947, %v958
        %v961 = vshrl.u32 %v842, 16
        %v963 = vrot.slane %v961, 7
        %v964 = vshll.u32 %v842, 16
        %v966 = vor.u32 %v963, %v964
        %v967 = vsel %vm880, %v955, %v966
        %v969 = vshrl.u32 %v843, 16
        %v971 = vrot.slane %v969, 7
        %v972 = vshll.u32 %v843, 16
        %v974 = vor.u32 %v971, %v972
        %v975 = vsel %vm880, %v963, %v974
        %v977 = vshrl.u32 %v844, 16
        %v979 = vrot.slane %v977, 7
        %v980 = vshll.u32 %v844, 16
        %v982 = vor.u32 %v979, %v980
        %v983 = vsel %vm880, %v971, %v982
        %v985 = vshrl.u32 %v845, 16
        %v987 = vrot.slane %v985, 7
        %v988 = vshll.u32 %v845, 16
        %v990 = vor.u32 %v987, %v988
        %v991 = vsel %vm880, %v979, %v990
        %v993 = vshrl.u32 %v846, 16
        %v995 = vrot.slane %v993, 7
        %v996 = vshll.u32 %v846, 16
        %v998 = vor.u32 %v995, %v996
        %v999 = vsel %vm880, %v987, %v998
        %v1001 = vshrl.u32 %v847, 16
        %v1003 = vrot.slane %v1001, 7
        %v1004 = vshll.u32 %v847, 16
        %v1006 = vor.u32 %v1003, %v1004
        %v1007 = vsel %vm880, %v995, %v1006
        %vm1024 = vcmask 1040384
        %vm1025 = vmand %vm1024, %vm880
        %v1026 = vsel %vm1025, 0, %v887
        %v1027 = vsel %vm848, 1, 0
        %v1028 = vsel %vm849, 1, 0
        %v1029 = vsel %vm850, 1, 0
        %v1030 = vsel %vm851, 1, 0
        %v1031 = vsel %vm852, 1, 0
        %v1032 = vsel %vm853, 1, 0
        %v1033 = vsel %vm854, 1, 0
        %v1034 = vsel %vm855, 1, 0
        %v1035 = vsel %vm856, 1, 0
        %v1036 = vsel %vm857, 1, 0
        %v1037 = vsel %vm858, 1, 0
        %v1038 = vsel %vm859, 1, 0
        %v1039 = vsel %vm860, 1, 0
        %v1040 = vsel %vm861, 1, 0
        %v1041 = vsel %vm862, 1, 0
        %v1042 = vsel %vm863, 1, 0
        %v1043 = vsel %vm864, 1, 0
        %v1044 = vsel %vm865, 1, 0
        %v1045 = vsel %vm866, 1, 0
        %v1046 = vsel %vm867, 1, 0
        %v1047 = vsel %vm868, 1, 0
        %v1048 = vsel %vm869, 1, 0
        %v1049 = vsel %vm870, 1, 0
        %v1050 = vsel %vm871, 1, 0
        %v1051 = vsel %vm872, 1, 0
        %v1052 = vsel %vm873, 1, 0
        %v1053 = vsel %vm874, 1, 0
        %v1054 = vsel %vm875, 1, 0
        %v1055 = vsel %vm876, 1, 0
        %v1056 = vsel %vm877, 1, 0
        %v1057 = vsel %vm878, 1, 0
        %v1058 = vsel %vm879, 1, 0
        %vm1059 = vcmp.eq.s32.totalorder %v1027, 1
        %vm1060 = vcmp.eq.s32.totalorder %v1028, 1
        %vm1061 = vcmp.eq.s32.totalorder %v1029, 1
        %vm1062 = vcmp.eq.s32.totalorder %v1030, 1
        %vm1063 = vcmp.eq.s32.totalorder %v1031, 1
        %vm1064 = vcmp.eq.s32.totalorder %v1032, 1
        %vm1065 = vcmp.eq.s32.totalorder %v1033, 1
        %vm1066 = vcmp.eq.s32.totalorder %v1034, 1
        %vm1067 = vcmp.eq.s32.totalorder %v1035, 1
        %vm1068 = vcmp.eq.s32.totalorder %v1036, 1
        %vm1069 = vcmp.eq.s32.totalorder %v1037, 1
        %vm1070 = vcmp.eq.s32.totalorder %v1038, 1
        %vm1071 = vcmp.eq.s32.totalorder %v1039, 1
        %vm1072 = vcmp.eq.s32.totalorder %v1040, 1
        %vm1073 = vcmp.eq.s32.totalorder %v1041, 1
        %vm1074 = vcmp.eq.s32.totalorder %v1042, 1
        %vm1075 = vcmp.eq.s32.totalorder %v1043, 1
        %vm1076 = vcmp.eq.s32.totalorder %v1044, 1
        %vm1077 = vcmp.eq.s32.totalorder %v1045, 1
        %vm1078 = vcmp.eq.s32.totalorder %v1046, 1
        %vm1079 = vcmp.eq.s32.totalorder %v1047, 1
        %vm1080 = vcmp.eq.s32.totalorder %v1048, 1
        %vm1081 = vcmp.eq.s32.totalorder %v1049, 1
        %vm1082 = vcmp.eq.s32.totalorder %v1050, 1
        %vm1083 = vcmp.eq.s32.totalorder %v1051, 1
        %vm1084 = vcmp.eq.s32.totalorder %v1052, 1
        %vm1085 = vcmp.eq.s32.totalorder %v1053, 1
        %vm1086 = vcmp.eq.s32.totalorder %v1054, 1
        %vm1087 = vcmp.eq.s32.totalorder %v1055, 1
        %vm1088 = vcmp.eq.s32.totalorder %v1056, 1
        %vm1089 = vcmp.eq.s32.totalorder %v1057, 1
        %vm1090 = vcmp.eq.s32.totalorder %v1058, 1
        %vm1091 = vmpackc.low %vm1059, %vm1059
        %vm1092 = vmpackc.low %vm1060, %vm1060
        %vm1093 = vmpackc.low %vm1061, %vm1061
        %vm1094 = vmpackc.low %vm1062, %vm1062
        %vm1095 = vmpackc.low %vm1063, %vm1063
        %vm1096 = vmpackc.low %vm1064, %vm1064
        %vm1097 = vmpackc.low %vm1065, %vm1065
        %vm1098 = vmpackc.low %vm1066, %vm1066
        %vm1099 = vmpackc.low %vm1067, %vm1067
        %vm1100 = vmpackc.low %vm1068, %vm1068
        %vm1101 = vmpackc.low %vm1069, %vm1069
        %vm1102 = vmpackc.low %vm1070, %vm1070
        %vm1103 = vmpackc.low %vm1071, %vm1071
        %vm1104 = vmpackc.low %vm1072, %vm1072
        %vm1105 = vmpackc.low %vm1073, %vm1073
        %vm1106 = vmpackc.low %vm1074, %vm1074
        %vm1107 = vmpackc.low %vm1075, %vm1075
        %vm1108 = vmpackc.low %vm1076, %vm1076
        %vm1109 = vmpackc.low %vm1077, %vm1077
        %vm1110 = vmpackc.low %vm1078, %vm1078
        %vm1111 = vmpackc.low %vm1079, %vm1079
        %vm1112 = vmpackc.low %vm1080, %vm1080
        %vm1113 = vmpackc.low %vm1081, %vm1081
        %vm1114 = vmpackc.low %vm1082, %vm1082
        %vm1115 = vmpackc.low %vm1083, %vm1083
        %vm1116 = vmpackc.low %vm1084, %vm1084
        %vm1117 = vmpackc.low %vm1085, %vm1085
        %vm1118 = vmpackc.low %vm1086, %vm1086
        %vm1119 = vmpackc.low %vm1087, %vm1087
        %vm1120 = vmpackc.low %vm1088, %vm1088
        %vm1121 = vmpackc.low %vm1089, %vm1089
        %vm1122 = vmpackc.low %vm1090, %vm1090
        %v1123 = vsel %vm1091, 65537, 0
        %v1124 = vsel %vm1092, 65537, 0
        %v1125 = vsel %vm1093, 65537, 0
        %v1126 = vsel %vm1094, 65537, 0
        %v1127 = vsel %vm1095, 65537, 0
        %v1128 = vsel %vm1096, 65537, 0
        %v1129 = vsel %vm1097, 65537, 0
        %v1130 = vsel %vm1098, 65537, 0
        %v1131 = vsel %vm1099, 65537, 0
        %v1132 = vsel %vm1100, 65537, 0
        %v1133 = vsel %vm1101, 65537, 0
        %v1134 = vsel %vm1102, 65537, 0
        %v1135 = vsel %vm1103, 65537, 0
        %v1136 = vsel %vm1104, 65537, 0
        %v1137 = vsel %vm1105, 65537, 0
        %v1138 = vsel %vm1106, 65537, 0
        %v1139 = vsel %vm1107, 65537, 0
        %v1140 = vsel %vm1108, 65537, 0
        %v1141 = vsel %vm1109, 65537, 0
        %v1142 = vsel %vm1110, 65537, 0
        %v1143 = vsel %vm1111, 65537, 0
        %v1144 = vsel %vm1112, 65537, 0
        %v1145 = vsel %vm1113, 65537, 0
        %v1146 = vsel %vm1114, 65537, 0
        %v1147 = vsel %vm1115, 65537, 0
        %v1148 = vsel %vm1116, 65537, 0
        %v1149 = vsel %vm1117, 65537, 0
        %v1150 = vsel %vm1118, 65537, 0
        %v1151 = vsel %vm1119, 65537, 0
        %v1152 = vsel %vm1120, 65537, 0
        %v1153 = vsel %vm1121, 65537, 0
        %v1154 = vsel %vm1122, 65537, 0
        %v1155 = vunpack.c.l.b16 %v1123
        %v1156 = vunpack.c.l.b16 %v1124
        %v1157 = vunpack.c.l.b16 %v1125
        %v1158 = vunpack.c.l.b16 %v1126
        %v1159 = vunpack.c.l.b16 %v1127
        %v1160 = vunpack.c.l.b16 %v1128
        %v1161 = vunpack.c.l.b16 %v1129
        %v1162 = vunpack.c.l.b16 %v1130
        %v1163 = vunpack.c.l.b16 %v1131
        %v1164 = vunpack.c.l.b16 %v1132
        %v1165 = vunpack.c.l.b16 %v1133
        %v1166 = vunpack.c.l.b16 %v1134
        %v1167 = vunpack.c.l.b16 %v1135
        %v1168 = vunpack.c.l.b16 %v1136
        %v1169 = vunpack.c.l.b16 %v1137
        %v1170 = vunpack.c.l.b16 %v1138
        %v1171 = vunpack.c.l.b16 %v1139
        %v1172 = vunpack.c.l.b16 %v1140
        %v1173 = vunpack.c.l.b16 %v1141
        %v1174 = vunpack.c.l.b16 %v1142
        %v1175 = vunpack.c.l.b16 %v1143
        %v1176 = vunpack.c.l.b16 %v1144
        %v1177 = vunpack.c.l.b16 %v1145
        %v1178 = vunpack.c.l.b16 %v1146
        %v1179 = vunpack.c.l.b16 %v1147
        %v1180 = vunpack.c.l.b16 %v1148
        %v1181 = vunpack.c.l.b16 %v1149
        %v1182 = vunpack.c.l.b16 %v1150
        %v1183 = vunpack.c.l.b16 %v1151
        %v1184 = vunpack.c.l.b16 %v1152
        %v1185 = vunpack.c.l.b16 %v1153
        %v1186 = vunpack.c.l.b16 %v1154
        %v1187 = vpack.c.b16 %v1156, %v1155
        %v1188 = vpack.c.b16 %v1158, %v1157
        %v1189 = vpack.c.b16 %v1160, %v1159
        %v1190 = vpack.c.b16 %v1162, %v1161
        %v1191 = vpack.c.b16 %v1164, %v1163
        %v1192 = vpack.c.b16 %v1166, %v1165
        %v1193 = vpack.c.b16 %v1168, %v1167
        %v1194 = vpack.c.b16 %v1170, %v1169
        %v1195 = vpack.c.b16 %v1172, %v1171
        %v1196 = vpack.c.b16 %v1174, %v1173
        %v1197 = vpack.c.b16 %v1176, %v1175
        %v1198 = vpack.c.b16 %v1178, %v1177
        %v1199 = vpack.c.b16 %v1180, %v1179
        %v1200 = vpack.c.b16 %v1182, %v1181
        %v1201 = vpack.c.b16 %v1184, %v1183
        %v1202 = vpack.c.b16 %v1186, %v1185
        %vm1203 = vcmp.ne.s16.totalorder %v1187, 0
        %vm1204 = vcmp.ne.s16.totalorder %v1188, 0
        %vm1205 = vcmp.ne.s16.totalorder %v1189, 0
        %vm1206 = vcmp.ne.s16.totalorder %v1190, 0
        %vm1207 = vcmp.ne.s16.totalorder %v1191, 0
        %vm1208 = vcmp.ne.s16.totalorder %v1192, 0
        %vm1209 = vcmp.ne.s16.totalorder %v1193, 0
        %vm1210 = vcmp.ne.s16.totalorder %v1194, 0
        %vm1211 = vcmp.ne.s16.totalorder %v1195, 0
        %vm1212 = vcmp.ne.s16.totalorder %v1196, 0
        %vm1213 = vcmp.ne.s16.totalorder %v1197, 0
        %vm1214 = vcmp.ne.s16.totalorder %v1198, 0
        %vm1215 = vcmp.ne.s16.totalorder %v1199, 0
        %vm1216 = vcmp.ne.s16.totalorder %v1200, 0
        %vm1217 = vcmp.ne.s16.totalorder %v1201, 0
        %vm1218 = vcmp.ne.s16.totalorder %v1202, 0
        %v1219 = vsel %vm1203, %v1026, 0
        %v1220 = vsel %vm1204, %v895, 0
        %v1221 = vsel %vm1205, %v903, 0
        %v1222 = vsel %vm1206, %v911, 0
        %v1223 = vsel %vm1207, %v919, 0
        %v1224 = vsel %vm1208, %v927, 0
        %v1225 = vsel %vm1209, %v935, 0
        %v1226 = vsel %vm1210, %v943, 0
        %v1227 = vsel %vm1211, %v951, 0
        %v1228 = vsel %vm1212, %v959, 0
        %v1229 = vsel %vm1213, %v967, 0
        %v1230 = vsel %vm1214, %v975, 0
        %v1231 = vsel %vm1215, %v983, 0
        %v1232 = vsel %vm1216, %v991, 0
        %v1233 = vsel %vm1217, %v999, 0
        %v1234 = vsel %vm1218, %v1007, 0
        %vm1235 = vcmp.le.s32.totalorder %v800, 14
        %vm1236 = vcmp.le.s32.totalorder %v801, 14
        %vm1237 = vcmp.le.s32.totalorder %v802, 14
        %vm1238 = vcmp.le.s32.totalorder %v803, 14
        %vm1239 = vcmp.le.s32.totalorder %v804, 14
        %vm1240 = vcmp.le.s32.totalorder %v805, 14
        %vm1241 = vcmp.le.s32.totalorder %v806, 14
        %vm1242 = vcmp.le.s32.totalorder %v807, 14
        %vm1243 = vcmp.le.s32.totalorder %v808, 14
        %vm1244 = vcmp.le.s32.totalorder %v809, 14
        %vm1245 = vcmp.le.s32.totalorder %v810, 14
        %vm1246 = vcmp.le.s32.totalorder %v811, 14
        %vm1247 = vcmp.le.s32.totalorder %v812, 14
        %vm1248 = vcmp.le.s32.totalorder %v813, 14
        %vm1249 = vcmp.le.s32.totalorder %v814, 14
        %vm1250 = vcmp.le.s32.totalorder %v815, 14
        %vm1251 = vcmp.le.s32.totalorder %v816, 14
        %vm1252 = vcmp.le.s32.totalorder %v817, 14
        %vm1253 = vcmp.le.s32.totalorder %v818, 14
        %vm1254 = vcmp.le.s32.totalorder %v819, 14
        %vm1255 = vcmp.le.s32.totalorder %v820, 14
        %vm1256 = vcmp.le.s32.totalorder %v821, 14
        %vm1257 = vcmp.le.s32.totalorder %v822, 14
        %vm1258 = vcmp.le.s32.totalorder %v823, 14
        %vm1259 = vcmp.le.s32.totalorder %v824, 14
        %vm1260 = vcmp.le.s32.totalorder %v825, 14
        %vm1261 = vcmp.le.s32.totalorder %v826, 14
        %vm1262 = vcmp.le.s32.totalorder %v827, 14
        %vm1263 = vcmp.le.s32.totalorder %v828, 14
        %vm1264 = vcmp.le.s32.totalorder %v829, 14
        %vm1265 = vcmp.le.s32.totalorder %v830, 14
        %vm1266 = vcmp.le.s32.totalorder %v831, 14
        %vm1267 = vsmask.f32 7424
        %v1268 = vrot.slane %v885, 1
        %v1269 = vor.u32 %v882, %v1268
        %v1270 = vrot.slane %v892, 1
        %v1271 = vsel %vm1267, %v1269, %v1270
        %v1272 = vor.u32 %v889, %v1270
        %v1273 = vrot.slane %v900, 1
        %v1274 = vsel %vm1267, %v1272, %v1273
        %v1275 = vor.u32 %v897, %v1273
        %v1276 = vrot.slane %v908, 1
        %v1277 = vsel %vm1267, %v1275, %v1276
        %v1278 = vor.u32 %v905, %v1276
        %v1279 = vrot.slane %v916, 1
        %v1280 = vsel %vm1267, %v1278, %v1279
        %v1281 = vor.u32 %v913, %v1279
        %v1282 = vrot.slane %v924, 1
        %v1283 = vsel %vm1267, %v1281, %v1282
        %v1284 = vor.u32 %v921, %v1282
        %v1285 = vrot.slane %v932, 1
        %v1286 = vsel %vm1267, %v1284, %v1285
        %v1287 = vor.u32 %v929, %v1285
        %v1288 = vrot.slane %v940, 1
        %v1289 = vsel %vm1267, %v1287, %v1288
        %v1290 = vor.u32 %v937, %v1288
        %v1291 = vrot.slane %v948, 1
        %v1292 = vsel %vm1267, %v1290, %v1291
        %v1293 = vor.u32 %v945, %v1291
        %v1294 = vrot.slane %v956, 1
        %v1295 = vsel %vm1267, %v1293, %v1294
        %v1296 = vor.u32 %v953, %v1294
        %v1297 = vrot.slane %v964, 1
        %v1298 = vsel %vm1267, %v1296, %v1297
        %v1299 = vor.u32 %v961, %v1297
        %v1300 = vrot.slane %v972, 1
        %v1301 = vsel %vm1267, %v1299, %v1300
        %v1302 = vor.u32 %v969, %v1300
        %v1303 = vrot.slane %v980, 1
        %v1304 = vsel %vm1267, %v1302, %v1303
        %v1305 = vor.u32 %v977, %v1303
        %v1306 = vrot.slane %v988, 1
        %v1307 = vsel %vm1267, %v1305, %v1306
        %v1308 = vor.u32 %v985, %v1306
        %v1309 = vrot.slane %v996, 1
        %v1310 = vsel %vm1267, %v1308, %v1309
        %v1311 = vor.u32 %v993, %v1309
        %v1312 = vrot.slane %v1004, 1
        %v1313 = vsel %vm1267, %v1311, %v1312
        %v1314 = vor.u32 %v1001, %v1312
        %vm1331 = vcmask 1047552
        %vm1332 = vmand %vm1331, %vm1267
        %v1333 = vsel %vm1332, %v1314, 0
        %v1334 = vsel %vm1235, 1, 0
        %v1335 = vsel %vm1236, 1, 0
        %v1336 = vsel %vm1237, 1, 0
        %v1337 = vsel %vm1238, 1, 0
        %v1338 = vsel %vm1239, 1, 0
        %v1339 = vsel %vm1240, 1, 0
        %v1340 = vsel %vm1241, 1, 0
        %v1341 = vsel %vm1242, 1, 0
        %v1342 = vsel %vm1243, 1, 0
        %v1343 = vsel %vm1244, 1, 0
        %v1344 = vsel %vm1245, 1, 0
        %v1345 = vsel %vm1246, 1, 0
        %v1346 = vsel %vm1247, 1, 0
        %v1347 = vsel %vm1248, 1, 0
        %v1348 = vsel %vm1249, 1, 0
        %v1349 = vsel %vm1250, 1, 0
        %v1350 = vsel %vm1251, 1, 0
        %v1351 = vsel %vm1252, 1, 0
        %v1352 = vsel %vm1253, 1, 0
        %v1353 = vsel %vm1254, 1, 0
        %v1354 = vsel %vm1255, 1, 0
        %v1355 = vsel %vm1256, 1, 0
        %v1356 = vsel %vm1257, 1, 0
        %v1357 = vsel %vm1258, 1, 0
        %v1358 = vsel %vm1259, 1, 0
        %v1359 = vsel %vm1260, 1, 0
        %v1360 = vsel %vm1261, 1, 0
        %v1361 = vsel %vm1262, 1, 0
        %v1362 = vsel %vm1263, 1, 0
        %v1363 = vsel %vm1264, 1, 0
        %v1364 = vsel %vm1265, 1, 0
        %v1365 = vsel %vm1266, 1, 0
        %vm1366 = vcmp.eq.s32.totalorder %v1334, 1
        %vm1367 = vcmp.eq.s32.totalorder %v1335, 1
        %vm1368 = vcmp.eq.s32.totalorder %v1336, 1
        %vm1369 = vcmp.eq.s32.totalorder %v1337, 1
        %vm1370 = vcmp.eq.s32.totalorder %v1338, 1
        %vm1371 = vcmp.eq.s32.totalorder %v1339, 1
        %vm1372 = vcmp.eq.s32.totalorder %v1340, 1
        %vm1373 = vcmp.eq.s32.totalorder %v1341, 1
        %vm1374 = vcmp.eq.s32.totalorder %v1342, 1
        %vm1375 = vcmp.eq.s32.totalorder %v1343, 1
        %vm1376 = vcmp.eq.s32.totalorder %v1344, 1
        %vm1377 = vcmp.eq.s32.totalorder %v1345, 1
        %vm1378 = vcmp.eq.s32.totalorder %v1346, 1
        %vm1379 = vcmp.eq.s32.totalorder %v1347, 1
        %vm1380 = vcmp.eq.s32.totalorder %v1348, 1
        %vm1381 = vcmp.eq.s32.totalorder %v1349, 1
        %vm1382 = vcmp.eq.s32.totalorder %v1350, 1
        %vm1383 = vcmp.eq.s32.totalorder %v1351, 1
        %vm1384 = vcmp.eq.s32.totalorder %v1352, 1
        %vm1385 = vcmp.eq.s32.totalorder %v1353, 1
        %vm1386 = vcmp.eq.s32.totalorder %v1354, 1
        %vm1387 = vcmp.eq.s32.totalorder %v1355, 1
        %vm1388 = vcmp.eq.s32.totalorder %v1356, 1
        %vm1389 = vcmp.eq.s32.totalorder %v1357, 1
        %vm1390 = vcmp.eq.s32.totalorder %v1358, 1
        %vm1391 = vcmp.eq.s32.totalorder %v1359, 1
        %vm1392 = vcmp.eq.s32.totalorder %v1360, 1
        %vm1393 = vcmp.eq.s32.totalorder %v1361, 1
        %vm1394 = vcmp.eq.s32.totalorder %v1362, 1
        %vm1395 = vcmp.eq.s32.totalorder %v1363, 1
        %vm1396 = vcmp.eq.s32.totalorder %v1364, 1
        %vm1397 = vcmp.eq.s32.totalorder %v1365, 1
        %vm1398 = vmpackc.low %vm1366, %vm1366
        %vm1399 = vmpackc.low %vm1367, %vm1367
        %vm1400 = vmpackc.low %vm1368, %vm1368
        %vm1401 = vmpackc.low %vm1369, %vm1369
        %vm1402 = vmpackc.low %vm1370, %vm1370
        %vm1403 = vmpackc.low %vm1371, %vm1371
        %vm1404 = vmpackc.low %vm1372, %vm1372
        %vm1405 = vmpackc.low %vm1373, %vm1373
        %vm1406 = vmpackc.low %vm1374, %vm1374
        %vm1407 = vmpackc.low %vm1375, %vm1375
        %vm1408 = vmpackc.low %vm1376, %vm1376
        %vm1409 = vmpackc.low %vm1377, %vm1377
        %vm1410 = vmpackc.low %vm1378, %vm1378
        %vm1411 = vmpackc.low %vm1379, %vm1379
        %vm1412 = vmpackc.low %vm1380, %vm1380
        %vm1413 = vmpackc.low %vm1381, %vm1381
        %vm1414 = vmpackc.low %vm1382, %vm1382
        %vm1415 = vmpackc.low %vm1383, %vm1383
        %vm1416 = vmpackc.low %vm1384, %vm1384
        %vm1417 = vmpackc.low %vm1385, %vm1385
        %vm1418 = vmpackc.low %vm1386, %vm1386
        %vm1419 = vmpackc.low %vm1387, %vm1387
        %vm1420 = vmpackc.low %vm1388, %vm1388
        %vm1421 = vmpackc.low %vm1389, %vm1389
        %vm1422 = vmpackc.low %vm1390, %vm1390
        %vm1423 = vmpackc.low %vm1391, %vm1391
        %vm1424 = vmpackc.low %vm1392, %vm1392
        %vm1425 = vmpackc.low %vm1393, %vm1393
        %vm1426 = vmpackc.low %vm1394, %vm1394
        %vm1427 = vmpackc.low %vm1395, %vm1395
        %vm1428 = vmpackc.low %vm1396, %vm1396
        %vm1429 = vmpackc.low %vm1397, %vm1397
        %v1430 = vsel %vm1398, 65537, 0
        %v1431 = vsel %vm1399, 65537, 0
        %v1432 = vsel %vm1400, 65537, 0
        %v1433 = vsel %vm1401, 65537, 0
        %v1434 = vsel %vm1402, 65537, 0
        %v1435 = vsel %vm1403, 65537, 0
        %v1436 = vsel %vm1404, 65537, 0
        %v1437 = vsel %vm1405, 65537, 0
        %v1438 = vsel %vm1406, 65537, 0
        %v1439 = vsel %vm1407, 65537, 0
        %v1440 = vsel %vm1408, 65537, 0
        %v1441 = vsel %vm1409, 65537, 0
        %v1442 = vsel %vm1410, 65537, 0
        %v1443 = vsel %vm1411, 65537, 0
        %v1444 = vsel %vm1412, 65537, 0
        %v1445 = vsel %vm1413, 65537, 0
        %v1446 = vsel %vm1414, 65537, 0
        %v1447 = vsel %vm1415, 65537, 0
        %v1448 = vsel %vm1416, 65537, 0
        %v1449 = vsel %vm1417, 65537, 0
        %v1450 = vsel %vm1418, 65537, 0
        %v1451 = vsel %vm1419, 65537, 0
        %v1452 = vsel %vm1420, 65537, 0
        %v1453 = vsel %vm1421, 65537, 0
        %v1454 = vsel %vm1422, 65537, 0
        %v1455 = vsel %vm1423, 65537, 0
        %v1456 = vsel %vm1424, 65537, 0
        %v1457 = vsel %vm1425, 65537, 0
        %v1458 = vsel %vm1426, 65537, 0
        %v1459 = vsel %vm1427, 65537, 0
        %v1460 = vsel %vm1428, 65537, 0
        %v1461 = vsel %vm1429, 65537, 0
        %v1462 = vunpack.c.l.b16 %v1430
        %v1463 = vunpack.c.l.b16 %v1431
        %v1464 = vunpack.c.l.b16 %v1432
        %v1465 = vunpack.c.l.b16 %v1433
        %v1466 = vunpack.c.l.b16 %v1434
        %v1467 = vunpack.c.l.b16 %v1435
        %v1468 = vunpack.c.l.b16 %v1436
        %v1469 = vunpack.c.l.b16 %v1437
        %v1470 = vunpack.c.l.b16 %v1438
        %v1471 = vunpack.c.l.b16 %v1439
        %v1472 = vunpack.c.l.b16 %v1440
        %v1473 = vunpack.c.l.b16 %v1441
        %v1474 = vunpack.c.l.b16 %v1442
        %v1475 = vunpack.c.l.b16 %v1443
        %v1476 = vunpack.c.l.b16 %v1444
        %v1477 = vunpack.c.l.b16 %v1445
        %v1478 = vunpack.c.l.b16 %v1446
        %v1479 = vunpack.c.l.b16 %v1447
        %v1480 = vunpack.c.l.b16 %v1448
        %v1481 = vunpack.c.l.b16 %v1449
        %v1482 = vunpack.c.l.b16 %v1450
        %v1483 = vunpack.c.l.b16 %v1451
        %v1484 = vunpack.c.l.b16 %v1452
        %v1485 = vunpack.c.l.b16 %v1453
        %v1486 = vunpack.c.l.b16 %v1454
        %v1487 = vunpack.c.l.b16 %v1455
        %v1488 = vunpack.c.l.b16 %v1456
        %v1489 = vunpack.c.l.b16 %v1457
        %v1490 = vunpack.c.l.b16 %v1458
        %v1491 = vunpack.c.l.b16 %v1459
        %v1492 = vunpack.c.l.b16 %v1460
        %v1493 = vunpack.c.l.b16 %v1461
        %v1494 = vpack.c.b16 %v1463, %v1462
        %v1495 = vpack.c.b16 %v1465, %v1464
        %v1496 = vpack.c.b16 %v1467, %v1466
        %v1497 = vpack.c.b16 %v1469, %v1468
        %v1498 = vpack.c.b16 %v1471, %v1470
        %v1499 = vpack.c.b16 %v1473, %v1472
        %v1500 = vpack.c.b16 %v1475, %v1474
        %v1501 = vpack.c.b16 %v1477, %v1476
        %v1502 = vpack.c.b16 %v1479, %v1478
        %v1503 = vpack.c.b16 %v1481, %v1480
        %v1504 = vpack.c.b16 %v1483, %v1482
        %v1505 = vpack.c.b16 %v1485, %v1484
        %v1506 = vpack.c.b16 %v1487, %v1486
        %v1507 = vpack.c.b16 %v1489, %v1488
        %v1508 = vpack.c.b16 %v1491, %v1490
        %v1509 = vpack.c.b16 %v1493, %v1492
        %vm1510 = vcmp.ne.s16.totalorder %v1494, 0
        %vm1511 = vcmp.ne.s16.totalorder %v1495, 0
        %vm1512 = vcmp.ne.s16.totalorder %v1496, 0
        %vm1513 = vcmp.ne.s16.totalorder %v1497, 0
        %vm1514 = vcmp.ne.s16.totalorder %v1498, 0
        %vm1515 = vcmp.ne.s16.totalorder %v1499, 0
        %vm1516 = vcmp.ne.s16.totalorder %v1500, 0
        %vm1517 = vcmp.ne.s16.totalorder %v1501, 0
        %vm1518 = vcmp.ne.s16.totalorder %v1502, 0
        %vm1519 = vcmp.ne.s16.totalorder %v1503, 0
        %vm1520 = vcmp.ne.s16.totalorder %v1504, 0
        %vm1521 = vcmp.ne.s16.totalorder %v1505, 0
        %vm1522 = vcmp.ne.s16.totalorder %v1506, 0
        %vm1523 = vcmp.ne.s16.totalorder %v1507, 0
        %vm1524 = vcmp.ne.s16.totalorder %v1508, 0
        %vm1525 = vcmp.ne.s16.totalorder %v1509, 0
        %v1526 = vsel %vm1510, %v1271, 0
        %v1527 = vsel %vm1511, %v1274, 0
        %v1528 = vsel %vm1512, %v1277, 0
        %v1529 = vsel %vm1513, %v1280, 0
        %v1530 = vsel %vm1514, %v1283, 0
        %v1531 = vsel %vm1515, %v1286, 0
        %v1532 = vsel %vm1516, %v1289, 0
        %v1533 = vsel %vm1517, %v1292, 0
        %v1534 = vsel %vm1518, %v1295, 0
        %v1535 = vsel %vm1519, %v1298, 0
        %v1536 = vsel %vm1520, %v1301, 0
        %v1537 = vsel %vm1521, %v1304, 0
        %v1538 = vsel %vm1522, %v1307, 0
        %v1539 = vsel %vm1523, %v1310, 0
        %v1540 = vsel %vm1524, %v1313, 0
        %v1541 = vsel %vm1525, %v1333, 0
        %1558 = vrot.lane.b32.xlu0 %v832, 32
        %v1559 = vpop.permute.xlu0 %1558
        %1560 = vrot.lane.b32.xlu0 %v833, 32
        %v1561 = vpop.permute.xlu0 %1560
        %1562 = vrot.lane.b32.xlu0 %v834, 32
        %v1563 = vpop.permute.xlu0 %1562
        %1564 = vrot.lane.b32.xlu0 %v835, 32
        %v1565 = vpop.permute.xlu0 %1564
        %1566 = vrot.lane.b32.xlu0 %v836, 32
        %v1567 = vpop.permute.xlu0 %1566
        %1568 = vrot.lane.b32.xlu0 %v837, 32
        %v1569 = vpop.permute.xlu0 %1568
        %1570 = vrot.lane.b32.xlu0 %v838, 32
        %v1571 = vpop.permute.xlu0 %1570
        %1572 = vrot.lane.b32.xlu0 %v839, 32
        %v1573 = vpop.permute.xlu0 %1572
        %1574 = vrot.lane.b32.xlu0 %v840, 32
        %v1575 = vpop.permute.xlu0 %1574
        %1576 = vrot.lane.b32.xlu0 %v841, 32
        %v1577 = vpop.permute.xlu0 %1576
        %1578 = vrot.lane.b32.xlu0 %v842, 32
        %v1579 = vpop.permute.xlu0 %1578
        %1580 = vrot.lane.b32.xlu0 %v843, 32
        %v1581 = vpop.permute.xlu0 %1580
        %1582 = vrot.lane.b32.xlu0 %v844, 32
        %v1583 = vpop.permute.xlu0 %1582
        %1584 = vrot.lane.b32.xlu0 %v845, 32
        %v1585 = vpop.permute.xlu0 %1584
        %1586 = vrot.lane.b32.xlu0 %v846, 32
        %v1587 = vpop.permute.xlu0 %1586
        %1588 = vrot.lane.b32.xlu0 %v847, 32
        %v1589 = vpop.permute.xlu0 %1588
        %1606 = vrot.lane.b32.xlu0 %v1526, 64
        %v1607 = vpop.permute.xlu0 %1606
        %1608 = vrot.lane.b32.xlu0 %v1527, 64
        %v1609 = vpop.permute.xlu0 %1608
        %1610 = vrot.lane.b32.xlu0 %v1528, 64
        %v1611 = vpop.permute.xlu0 %1610
        %1612 = vrot.lane.b32.xlu0 %v1529, 64
        %v1613 = vpop.permute.xlu0 %1612
        %1614 = vrot.lane.b32.xlu0 %v1530, 64
        %v1615 = vpop.permute.xlu0 %1614
        %1616 = vrot.lane.b32.xlu0 %v1531, 64
        %v1617 = vpop.permute.xlu0 %1616
        %1618 = vrot.lane.b32.xlu0 %v1532, 64
        %v1619 = vpop.permute.xlu0 %1618
        %1620 = vrot.lane.b32.xlu0 %v1533, 64
        %v1621 = vpop.permute.xlu0 %1620
        %1622 = vrot.lane.b32.xlu0 %v1534, 64
        %v1623 = vpop.permute.xlu0 %1622
        %1624 = vrot.lane.b32.xlu0 %v1535, 64
        %v1625 = vpop.permute.xlu0 %1624
        %1626 = vrot.lane.b32.xlu0 %v1536, 64
        %v1627 = vpop.permute.xlu0 %1626
        %1628 = vrot.lane.b32.xlu0 %v1537, 64
        %v1629 = vpop.permute.xlu0 %1628
        %1630 = vrot.lane.b32.xlu0 %v1538, 64
        %v1631 = vpop.permute.xlu0 %1630
        %1632 = vrot.lane.b32.xlu0 %v1539, 64
        %v1633 = vpop.permute.xlu0 %1632
        %1634 = vrot.lane.b32.xlu0 %v1540, 64
        %v1635 = vpop.permute.xlu0 %1634
        %1636 = vrot.lane.b32.xlu0 %v1541, 64
        %v1637 = vpop.permute.xlu0 %1636
        %vm1638 = vcmask 261120
        %v1641 = vsel %vm1638, %v1219, %v1559
        %v1644 = vsel %vm1638, %v1220, %v1561
        %v1647 = vsel %vm1638, %v1221, %v1563
        %v1650 = vsel %vm1638, %v1222, %v1565
        %v1653 = vsel %vm1638, %v1223, %v1567
        %v1656 = vsel %vm1638, %v1224, %v1569
        %v1659 = vsel %vm1638, %v1225, %v1571
        %v1662 = vsel %vm1638, %v1226, %v1573
        %v1665 = vsel %vm1638, %v1227, %v1575
        %v1668 = vsel %vm1638, %v1228, %v1577
        %v1671 = vsel %vm1638, %v1229, %v1579
        %v1674 = vsel %vm1638, %v1230, %v1581
        %v1677 = vsel %vm1638, %v1231, %v1583
        %v1680 = vsel %vm1638, %v1232, %v1585
        %v1683 = vsel %vm1638, %v1233, %v1587
        %v1686 = vsel %vm1638, %v1234, %v1589
        %vm1687 = vcmask 523264
        %v1689 = vsel %vm1687, %v1641, %v1607
        %v1691 = vsel %vm1687, %v1644, %v1609
        %v1693 = vsel %vm1687, %v1647, %v1611
        %v1695 = vsel %vm1687, %v1650, %v1613
        %v1697 = vsel %vm1687, %v1653, %v1615
        %v1699 = vsel %vm1687, %v1656, %v1617
        %v1701 = vsel %vm1687, %v1659, %v1619
        %v1703 = vsel %vm1687, %v1662, %v1621
        %v1705 = vsel %vm1687, %v1665, %v1623
        %v1707 = vsel %vm1687, %v1668, %v1625
        %v1709 = vsel %vm1687, %v1671, %v1627
        %v1711 = vsel %vm1687, %v1674, %v1629
        %v1713 = vsel %vm1687, %v1677, %v1631
        %v1715 = vsel %vm1687, %v1680, %v1633
        %v1717 = vsel %vm1687, %v1683, %v1635
        %v1719 = vsel %vm1687, %v1686, %v1637
        %v1720 = vld [vmem:[%s4] sm:$0xf]
        %v1721 = vld [vmem:[%s4 + $0x4] sm:$0xf]
        %v1722 = vld [vmem:[%s4 + $0x8] sm:$0xf]
        %v1723 = vld [vmem:[%s4 + $0xc] sm:$0xf]
        %v1724 = vld [vmem:[%s4 + $0x10] sm:$0xf]
        %v1725 = vld [vmem:[%s4 + $0x14] sm:$0xf]
        %v1726 = vld [vmem:[%s4 + $0x18] sm:$0xf]
        %v1727 = vld [vmem:[%s4 + $0x1c] sm:$0xf]
        %v1728 = vld [vmem:[%s4 + $0x20] sm:$0xf]
        %v1729 = vld [vmem:[%s4 + $0x24] sm:$0xf]
        %v1730 = vld [vmem:[%s4 + $0x28] sm:$0xf]
        %v1731 = vld [vmem:[%s4 + $0x2c] sm:$0xf]
        %v1744 = vunpack.c.l.b16 %v1720
        %v1745 = vunpack.c.l.b16 %v1721
        %v1746 = vunpack.c.l.b16 %v1722
        %v1747 = vunpack.c.l.b16 %v1723
        %v1748 = vunpack.c.l.b16 %v1724
        %v1749 = vunpack.c.l.b16 %v1725
        %v1750 = vunpack.c.l.b16 %v1726
        %v1751 = vunpack.c.l.b16 %v1727
        %v1752 = vunpack.c.l.b16 %v1728
        %v1753 = vunpack.c.l.b16 %v1729
        %v1754 = vunpack.c.l.b16 %v1730
        %v1755 = vunpack.c.l.b16 %v1731
        %v1756 = vpack.c.b16 %v1745, %v1744
        %v1757 = vpack.c.b16 %v1747, %v1746
        %v1758 = vpack.c.b16 %v1749, %v1748
        %v1759 = vpack.c.b16 %v1751, %v1750
        %v1760 = vpack.c.b16 %v1753, %v1752
        %v1761 = vpack.c.b16 %v1755, %v1754
        %vm1768 = vcmask 785408
        %v1769 = vsel %vm1768, %v1689, 0
        %v1771 = vsel %vm1768, %v1691, 0
        %v1773 = vsel %vm1768, %v1693, 0
        %v1775 = vsel %vm1768, %v1695, 0
        %v1777 = vsel %vm1768, %v1697, 0
        %v1779 = vsel %vm1768, %v1699, 0
        %v1781 = vsel %vm1768, %v1701, 0
        %v1783 = vsel %vm1768, %v1703, 0
        %v1785 = vsel %vm1768, %v1705, 0
        %v1787 = vsel %vm1768, %v1707, 0
        %v1789 = vsel %vm1768, %v1709, 0
        %v1791 = vsel %vm1768, %v1711, 0
        %v1793 = vsel %vm1768, %v1713, 0
        %v1795 = vsel %vm1768, %v1715, 0
        %v1797 = vsel %vm1768, %v1717, 0
        %v1799 = vsel %vm1768, %v1719, 0
        %1801 = vmatprep.subr.bf16.mxu0 0
        %1802 = vmatpush1.bf16.msra.mxu0 0
        %1803 = vmatprep.subr.bf16.mxu0 0
        %1804 = vmatpush1.bf16.msra.mxu0 0
        %1805 = vmatprep.subr.bf16.mxu0 0
        %1806 = vmatpush1.bf16.msra.mxu0 %v1761
        %1807 = vmatprep.subr.bf16.mxu0 0
        %1808 = vmatpush1.bf16.msra.mxu0 %v1760
        %1809 = vmatprep.subr.bf16.mxu0 0
        %1810 = vmatpush1.bf16.msra.mxu0 %v1759
        %1811 = vmatprep.subr.bf16.mxu0 0
        %1812 = vmatpush1.bf16.msra.mxu0 %v1758
        %1813 = vmatprep.subr.bf16.mxu0 0
        %1814 = vmatpush1.bf16.msra.mxu0 %v1757
        %1815 = vmatprep.subr.bf16.mxu0 0
        %1816 = vmatpush1.bf16.msra.mxu0 %v1756
        %1817 = vmatprep.subr.bf16.mxu0 0
        %1818 = vmatpush2.bf16.msra.mxu0 0
        %1819 = vmatprep.subr.bf16.mxu0 0
        %1820 = vmatpush2.bf16.msra.mxu0 0
        %1821 = vmatprep.subr.bf16.mxu0 0
        %1822 = vmatpush2.bf16.msra.mxu0 0
        %1823 = vmatprep.subr.bf16.mxu0 0
        %1824 = vmatpush2.bf16.msra.mxu0 0
        %1825 = vmatprep.subr.bf16.mxu0 0
        %1826 = vmatpush2.bf16.msra.mxu0 0
        %1827 = vmatprep.subr.bf16.mxu0 0
        %1828 = vmatpush2.bf16.msra.mxu0 0
        %1829 = vmatprep.subr.bf16.mxu0 0
        %1830 = vmatpush2.bf16.msra.mxu0 0
        %1831 = vmatprep.subr.bf16.mxu0 0
        %1832 = vmatpush2.bf16.msra.mxu0 0
        %1833 = vmatprep.mubr.bf16.mxu0 0
        %1834 = vmatmul.mubr.bf16.gmra.mxu0 %v1769
        %v1835 = vpop.f32.mrf.mxu0
        %v1836 = vadd.f32 0.0, %v1835
        %v1837 = vpop.f32.mrf.mxu0
        %v1838 = vpop.f32.mrf.mxu0
        %v1839 = vadd.f32 0.0, %v1838
        %v1840 = vpop.f32.mrf.mxu0
        %1841 = vmatprep.mubr.bf16.mxu0 0
        %1842 = vmatmul.mubr.bf16.gmra.mxu0 %v1771
        %v1843 = vpop.f32.mrf.mxu0
        %v1844 = vadd.f32 0.0, %v1843
        %v1845 = vpop.f32.mrf.mxu0
        %v1846 = vpop.f32.mrf.mxu0
        %v1847 = vadd.f32 0.0, %v1846
        %v1848 = vpop.f32.mrf.mxu0
        %1849 = vmatprep.mubr.bf16.mxu0 0
        %1850 = vmatmul.mubr.bf16.gmra.mxu0 %v1773
        %v1851 = vpop.f32.mrf.mxu0
        %v1852 = vadd.f32 0.0, %v1851
        %v1853 = vpop.f32.mrf.mxu0
        %v1854 = vpop.f32.mrf.mxu0
        %v1855 = vadd.f32 0.0, %v1854
        %v1856 = vpop.f32.mrf.mxu0
        %1857 = vmatprep.mubr.bf16.mxu0 0
        %1858 = vmatmul.mubr.bf16.gmra.mxu0 %v1775
        %v1859 = vpop.f32.mrf.mxu0
        %v1860 = vadd.f32 0.0, %v1859
        %v1861 = vpop.f32.mrf.mxu0
        %v1862 = vpop.f32.mrf.mxu0
        %v1863 = vadd.f32 0.0, %v1862
        %v1864 = vpop.f32.mrf.mxu0
        %1865 = vmatprep.mubr.bf16.mxu0 0
        %1866 = vmatmul.mubr.bf16.gmra.mxu0 %v1777
        %v1867 = vpop.f32.mrf.mxu0
        %v1868 = vadd.f32 0.0, %v1867
        %v1869 = vpop.f32.mrf.mxu0
        %v1870 = vpop.f32.mrf.mxu0
        %v1871 = vadd.f32 0.0, %v1870
        %v1872 = vpop.f32.mrf.mxu0
        %1873 = vmatprep.mubr.bf16.mxu0 0
        %1874 = vmatmul.mubr.bf16.gmra.mxu0 %v1779
        %v1875 = vpop.f32.mrf.mxu0
        %v1876 = vadd.f32 0.0, %v1875
        %v1877 = vpop.f32.mrf.mxu0
        %v1878 = vpop.f32.mrf.mxu0
        %v1879 = vadd.f32 0.0, %v1878
        %v1880 = vpop.f32.mrf.mxu0
        %1881 = vmatprep.mubr.bf16.mxu0 0
        %1882 = vmatmul.mubr.bf16.gmra.mxu0 %v1781
        %v1883 = vpop.f32.mrf.mxu0
        %v1884 = vadd.f32 0.0, %v1883
        %v1885 = vpop.f32.mrf.mxu0
        %v1886 = vpop.f32.mrf.mxu0
        %v1887 = vadd.f32 0.0, %v1886
        %v1888 = vpop.f32.mrf.mxu0
        %1889 = vmatprep.mubr.bf16.mxu0 0
        %1890 = vmatmul.mubr.bf16.gmra.mxu0 %v1783
        %v1891 = vpop.f32.mrf.mxu0
        %v1892 = vadd.f32 0.0, %v1891
        %v1893 = vpop.f32.mrf.mxu0
        %v1894 = vpop.f32.mrf.mxu0
        %v1895 = vadd.f32 0.0, %v1894
        %v1896 = vpop.f32.mrf.mxu0
        %1897 = vmatprep.mubr.bf16.mxu0 0
        %1898 = vmatmul.mubr.bf16.gmra.mxu0 %v1785
        %v1899 = vpop.f32.mrf.mxu0
        %v1900 = vadd.f32 0.0, %v1899
        %v1901 = vpop.f32.mrf.mxu0
        %v1902 = vpop.f32.mrf.mxu0
        %v1903 = vadd.f32 0.0, %v1902
        %v1904 = vpop.f32.mrf.mxu0
        %1905 = vmatprep.mubr.bf16.mxu0 0
        %1906 = vmatmul.mubr.bf16.gmra.mxu0 %v1787
        %v1907 = vpop.f32.mrf.mxu0
        %v1908 = vadd.f32 0.0, %v1907
        %v1909 = vpop.f32.mrf.mxu0
        %v1910 = vpop.f32.mrf.mxu0
        %v1911 = vadd.f32 0.0, %v1910
        %v1912 = vpop.f32.mrf.mxu0
        %1913 = vmatprep.mubr.bf16.mxu0 0
        %1914 = vmatmul.mubr.bf16.gmra.mxu0 %v1789
        %v1915 = vpop.f32.mrf.mxu0
        %v1916 = vadd.f32 0.0, %v1915
        %v1917 = vpop.f32.mrf.mxu0
        %v1918 = vpop.f32.mrf.mxu0
        %v1919 = vadd.f32 0.0, %v1918
        %v1920 = vpop.f32.mrf.mxu0
        %1921 = vmatprep.mubr.bf16.mxu0 0
        %1922 = vmatmul.mubr.bf16.gmra.mxu0 %v1791
        %v1923 = vpop.f32.mrf.mxu0
        %v1924 = vadd.f32 0.0, %v1923
        %v1925 = vpop.f32.mrf.mxu0
        %v1926 = vpop.f32.mrf.mxu0
        %v1927 = vadd.f32 0.0, %v1926
        %v1928 = vpop.f32.mrf.mxu0
        %1929 = vmatprep.mubr.bf16.mxu0 0
        %1930 = vmatmul.mubr.bf16.gmra.mxu0 %v1793
        %v1931 = vpop.f32.mrf.mxu0
        %v1932 = vadd.f32 0.0, %v1931
        %v1933 = vpop.f32.mrf.mxu0
        %v1934 = vpop.f32.mrf.mxu0
        %v1935 = vadd.f32 0.0, %v1934
        %v1936 = vpop.f32.mrf.mxu0
        %1937 = vmatprep.mubr.bf16.mxu0 0
        %1938 = vmatmul.mubr.bf16.gmra.mxu0 %v1795
        %v1939 = vpop.f32.mrf.mxu0
        %v1940 = vadd.f32 0.0, %v1939
        %v1941 = vpop.f32.mrf.mxu0
        %v1942 = vpop.f32.mrf.mxu0
        %v1943 = vadd.f32 0.0, %v1942
        %v1944 = vpop.f32.mrf.mxu0
        %1945 = vmatprep.mubr.bf16.mxu0 0
        %1946 = vmatmul.mubr.bf16.gmra.mxu0 %v1797
        %v1947 = vpop.f32.mrf.mxu0
        %v1948 = vadd.f32 0.0, %v1947
        %v1949 = vpop.f32.mrf.mxu0
        %v1950 = vpop.f32.mrf.mxu0
        %v1951 = vadd.f32 0.0, %v1950
        %v1952 = vpop.f32.mrf.mxu0
        %1953 = vmatprep.mubr.bf16.mxu0 0
        %1954 = vmatmul.mubr.bf16.gmra.mxu0 %v1799
        %v1955 = vpop.f32.mrf.mxu0
        %v1956 = vpop.f32.mrf.mxu0
        %v1957 = vpop.f32.mrf.mxu0
        %v1958 = vpop.f32.mrf.mxu0
        %1959 = vdwg.mxu0
        %s1960 = scalar_lea.vmem %s4, 48
        %v1961 = vld [vmem:[%s1960] sm:$0xf]
        %v1962 = vld [vmem:[%s1960 + $0x4] sm:$0xf]
        %v1963 = vld [vmem:[%s1960 + $0x8] sm:$0xf]
        %v1964 = vld [vmem:[%s1960 + $0xc] sm:$0xf]
        %v1965 = vld [vmem:[%s1960 + $0x10] sm:$0xf]
        %v1966 = vld [vmem:[%s1960 + $0x14] sm:$0xf]
        %v1967 = vld [vmem:[%s1960 + $0x18] sm:$0xf]
        %v1968 = vld [vmem:[%s1960 + $0x1c] sm:$0xf]
        %v1969 = vld [vmem:[%s1960 + $0x20] sm:$0xf]
        %v1970 = vld [vmem:[%s1960 + $0x24] sm:$0xf]
        %v1971 = vld [vmem:[%s1960 + $0x28] sm:$0xf]
        %v1972 = vld [vmem:[%s1960 + $0x2c] sm:$0xf]
        %s1973 = scalar_lea.vmem %s4, 96
        %v1974 = vld [vmem:[%s1973] sm:$0xf]
        %v1975 = vld [vmem:[%s1973 + $0x4] sm:$0xf]
        %v1976 = vld [vmem:[%s1973 + $0x8] sm:$0xf]
        %v1977 = vld [vmem:[%s1973 + $0xc] sm:$0xf]
        %v1978 = vld [vmem:[%s1973 + $0x10] sm:$0xf]
        %v1979 = vld [vmem:[%s1973 + $0x14] sm:$0xf]
        %v1980 = vld [vmem:[%s1973 + $0x18] sm:$0xf]
        %v1981 = vld [vmem:[%s1973 + $0x1c] sm:$0xf]
        %v1982 = vld [vmem:[%s1973 + $0x20] sm:$0xf]
        %v1983 = vld [vmem:[%s1973 + $0x24] sm:$0xf]
        %v1984 = vld [vmem:[%s1973 + $0x28] sm:$0xf]
        %v1985 = vld [vmem:[%s1973 + $0x2c] sm:$0xf]
        %v1998 = vunpack.c.l.b16 %v1974
        %v1999 = vunpack.c.l.b16 %v1975
        %v2000 = vunpack.c.l.b16 %v1976
        %v2001 = vunpack.c.l.b16 %v1977
        %v2002 = vunpack.c.l.b16 %v1978
        %v2003 = vunpack.c.l.b16 %v1979
        %v2004 = vunpack.c.l.b16 %v1980
        %v2005 = vunpack.c.l.b16 %v1981
        %v2006 = vunpack.c.l.b16 %v1982
        %v2007 = vunpack.c.l.b16 %v1983
        %v2008 = vunpack.c.l.b16 %v1984
        %v2009 = vunpack.c.l.b16 %v1985
        %v2010 = vpack.c.b16 %v1999, %v1998
        %v2011 = vpack.c.b16 %v2001, %v2000
        %v2012 = vpack.c.b16 %v2003, %v2002
        %v2013 = vpack.c.b16 %v2005, %v2004
        %v2014 = vpack.c.b16 %v2007, %v2006
        %v2015 = vpack.c.b16 %v2009, %v2008
        %2022 = vmatprep.subr.bf16.mxu0 0
        %2023 = vmatpush1.bf16.msra.mxu0 0
        %2024 = vmatprep.subr.bf16.mxu0 0
        %2025 = vmatpush1.bf16.msra.mxu0 0
        %2026 = vmatprep.subr.bf16.mxu0 0
        %2027 = vmatpush1.bf16.msra.mxu0 %v2015
        %2028 = vmatprep.subr.bf16.mxu0 0
        %2029 = vmatpush1.bf16.msra.mxu0 %v2014
        %2030 = vmatprep.subr.bf16.mxu0 0
        %2031 = vmatpush1.bf16.msra.mxu0 %v2013
        %2032 = vmatprep.subr.bf16.mxu0 0
        %2033 = vmatpush1.bf16.msra.mxu0 %v2012
        %2034 = vmatprep.subr.bf16.mxu0 0
        %2035 = vmatpush1.bf16.msra.mxu0 %v2011
        %2036 = vmatprep.subr.bf16.mxu0 0
        %2037 = vmatpush1.bf16.msra.mxu0 %v2010
        %2038 = vmatprep.subr.bf16.mxu0 0
        %2039 = vmatpush2.bf16.msra.mxu0 0
        %2040 = vmatprep.subr.bf16.mxu0 0
        %2041 = vmatpush2.bf16.msra.mxu0 0
        %2042 = vmatprep.subr.bf16.mxu0 0
        %2043 = vmatpush2.bf16.msra.mxu0 0
        %2044 = vmatprep.subr.bf16.mxu0 0
        %2045 = vmatpush2.bf16.msra.mxu0 0
        %2046 = vmatprep.subr.bf16.mxu0 0
        %2047 = vmatpush2.bf16.msra.mxu0 0
        %2048 = vmatprep.subr.bf16.mxu0 0
        %2049 = vmatpush2.bf16.msra.mxu0 0
        %2050 = vmatprep.subr.bf16.mxu0 0
        %2051 = vmatpush2.bf16.msra.mxu0 0
        %2052 = vmatprep.subr.bf16.mxu0 0
        %2053 = vmatpush2.bf16.msra.mxu0 0
        %2054 = vmatprep.mubr.bf16.mxu0 0
        %2055 = vmatmul.mubr.bf16.gmra.mxu0 %v1769
        %v2056 = vpop.f32.mrf.mxu0
        %v2057 = vpop.f32.mrf.mxu0
        %v2058 = vpop.f32.mrf.mxu0
        %v2059 = vpop.f32.mrf.mxu0
        %2060 = vmatprep.mubr.bf16.mxu0 0
        %2061 = vmatmul.mubr.bf16.gmra.mxu0 %v1771
        %v2062 = vpop.f32.mrf.mxu0
        %v2063 = vadd.f32 0.0, %v2062
        %v2064 = vpop.f32.mrf.mxu0
        %v2065 = vpop.f32.mrf.mxu0
        %v2066 = vadd.f32 0.0, %v2065
        %v2067 = vpop.f32.mrf.mxu0
        %2068 = vmatprep.mubr.bf16.mxu0 0
        %2069 = vmatmul.mubr.bf16.gmra.mxu0 %v1773
        %v2070 = vpop.f32.mrf.mxu0
        %v2071 = vadd.f32 0.0, %v2070
        %v2072 = vpop.f32.mrf.mxu0
        %v2073 = vpop.f32.mrf.mxu0
        %v2074 = vadd.f32 0.0, %v2073
        %v2075 = vpop.f32.mrf.mxu0
        %2076 = vmatprep.mubr.bf16.mxu0 0
        %2077 = vmatmul.mubr.bf16.gmra.mxu0 %v1775
        %v2078 = vpop.f32.mrf.mxu0
        %v2079 = vadd.f32 0.0, %v2078
        %v2080 = vpop.f32.mrf.mxu0
        %v2081 = vpop.f32.mrf.mxu0
        %v2082 = vadd.f32 0.0, %v2081
        %v2083 = vpop.f32.mrf.mxu0
        %2084 = vmatprep.mubr.bf16.mxu0 0
        %2085 = vmatmul.mubr.bf16.gmra.mxu0 %v1777
        %v2086 = vpop.f32.mrf.mxu0
        %v2087 = vadd.f32 0.0, %v2086
        %v2088 = vpop.f32.mrf.mxu0
        %v2089 = vpop.f32.mrf.mxu0
        %v2090 = vadd.f32 0.0, %v2089
        %v2091 = vpop.f32.mrf.mxu0
        %2092 = vmatprep.mubr.bf16.mxu0 0
        %2093 = vmatmul.mubr.bf16.gmra.mxu0 %v1779
        %v2094 = vpop.f32.mrf.mxu0
        %v2095 = vadd.f32 0.0, %v2094
        %v2096 = vpop.f32.mrf.mxu0
        %v2097 = vpop.f32.mrf.mxu0
        %v2098 = vadd.f32 0.0, %v2097
        %v2099 = vpop.f32.mrf.mxu0
        %2100 = vmatprep.mubr.bf16.mxu0 0
        %2101 = vmatmul.mubr.bf16.gmra.mxu0 %v1781
        %v2102 = vpop.f32.mrf.mxu0
        %v2103 = vadd.f32 0.0, %v2102
        %v2104 = vpop.f32.mrf.mxu0
        %v2105 = vpop.f32.mrf.mxu0
        %v2106 = vadd.f32 0.0, %v2105
        %v2107 = vpop.f32.mrf.mxu0
        %2108 = vmatprep.mubr.bf16.mxu0 0
        %2109 = vmatmul.mubr.bf16.gmra.mxu0 %v1783
        %v2110 = vpop.f32.mrf.mxu0
        %v2111 = vadd.f32 0.0, %v2110
        %v2112 = vpop.f32.mrf.mxu0
        %v2113 = vpop.f32.mrf.mxu0
        %v2114 = vadd.f32 0.0, %v2113
        %v2115 = vpop.f32.mrf.mxu0
        %2116 = vmatprep.mubr.bf16.mxu0 0
        %2117 = vmatmul.mubr.bf16.gmra.mxu0 %v1785
        %v2118 = vpop.f32.mrf.mxu0
        %v2119 = vadd.f32 0.0, %v2118
        %v2120 = vpop.f32.mrf.mxu0
        %v2121 = vpop.f32.mrf.mxu0
        %v2122 = vadd.f32 0.0, %v2121
        %v2123 = vpop.f32.mrf.mxu0
        %2124 = vmatprep.mubr.bf16.mxu0 0
        %2125 = vmatmul.mubr.bf16.gmra.mxu0 %v1787
        %v2126 = vpop.f32.mrf.mxu0
        %v2127 = vadd.f32 0.0, %v2126
        %v2128 = vpop.f32.mrf.mxu0
        %v2129 = vpop.f32.mrf.mxu0
        %v2130 = vadd.f32 0.0, %v2129
        %v2131 = vpop.f32.mrf.mxu0
        %2132 = vmatprep.mubr.bf16.mxu0 0
        %2133 = vmatmul.mubr.bf16.gmra.mxu0 %v1789
        %v2134 = vpop.f32.mrf.mxu0
        %v2135 = vadd.f32 0.0, %v2134
        %v2136 = vpop.f32.mrf.mxu0
        %v2137 = vpop.f32.mrf.mxu0
        %v2138 = vadd.f32 0.0, %v2137
        %v2139 = vpop.f32.mrf.mxu0
        %2140 = vmatprep.mubr.bf16.mxu0 0
        %2141 = vmatmul.mubr.bf16.gmra.mxu0 %v1791
        %v2142 = vpop.f32.mrf.mxu0
        %v2143 = vadd.f32 0.0, %v2142
        %v2144 = vpop.f32.mrf.mxu0
        %v2145 = vpop.f32.mrf.mxu0
        %v2146 = vadd.f32 0.0, %v2145
        %v2147 = vpop.f32.mrf.mxu0
        %2148 = vmatprep.mubr.bf16.mxu0 0
        %2149 = vmatmul.mubr.bf16.gmra.mxu0 %v1793
        %v2150 = vpop.f32.mrf.mxu0
        %v2151 = vadd.f32 0.0, %v2150
        %v2152 = vpop.f32.mrf.mxu0
        %v2153 = vpop.f32.mrf.mxu0
        %v2154 = vadd.f32 0.0, %v2153
        %v2155 = vpop.f32.mrf.mxu0
        %2156 = vmatprep.mubr.bf16.mxu0 0
        %2157 = vmatmul.mubr.bf16.gmra.mxu0 %v1795
        %v2158 = vpop.f32.mrf.mxu0
        %v2159 = vadd.f32 0.0, %v2158
        %v2160 = vpop.f32.mrf.mxu0
        %v2161 = vpop.f32.mrf.mxu0
        %v2162 = vadd.f32 0.0, %v2161
        %v2163 = vpop.f32.mrf.mxu0
        %2164 = vmatprep.mubr.bf16.mxu0 0
        %2165 = vmatmul.mubr.bf16.gmra.mxu0 %v1797
        %v2166 = vpop.f32.mrf.mxu0
        %v2167 = vadd.f32 0.0, %v2166
        %v2168 = vpop.f32.mrf.mxu0
        %v2169 = vpop.f32.mrf.mxu0
        %v2170 = vadd.f32 0.0, %v2169
        %v2171 = vpop.f32.mrf.mxu0
        %2172 = vmatprep.mubr.bf16.mxu0 0
        %2173 = vmatmul.mubr.bf16.gmra.mxu0 %v1799
        %v2174 = vpop.f32.mrf.mxu0
        %v2175 = vadd.f32 0.0, %v2174
        %v2176 = vpop.f32.mrf.mxu0
        %v2177 = vpop.f32.mrf.mxu0
        %v2178 = vadd.f32 0.0, %v2177
        %v2179 = vpop.f32.mrf.mxu0
        %2180 = vdwg.mxu0
        %v2193 = vunpack.c.l.b16 %v1961
        %v2194 = vunpack.c.l.b16 %v1962
        %v2195 = vunpack.c.l.b16 %v1963
        %v2196 = vunpack.c.l.b16 %v1964
        %v2197 = vunpack.c.l.b16 %v1965
        %v2198 = vunpack.c.l.b16 %v1966
        %v2199 = vunpack.c.l.b16 %v1967
        %v2200 = vunpack.c.l.b16 %v1968
        %v2201 = vunpack.c.l.b16 %v1969
        %v2202 = vunpack.c.l.b16 %v1970
        %v2203 = vunpack.c.l.b16 %v1971
        %v2204 = vunpack.c.l.b16 %v1972
        %v2205 = vpack.c.b16 %v2194, %v2193
        %v2206 = vpack.c.b16 %v2196, %v2195
        %v2207 = vpack.c.b16 %v2198, %v2197
        %v2208 = vpack.c.b16 %v2200, %v2199
        %v2209 = vpack.c.b16 %v2202, %v2201
        %v2210 = vpack.c.b16 %v2204, %v2203
        %2217 = vmatprep.subr.bf16.mxu0 0
        %2218 = vmatpush1.bf16.msra.mxu0 0
        %2219 = vmatprep.subr.bf16.mxu0 0
        %2220 = vmatpush1.bf16.msra.mxu0 0
        %2221 = vmatprep.subr.bf16.mxu0 0
        %2222 = vmatpush1.bf16.msra.mxu0 %v2210
        %2223 = vmatprep.subr.bf16.mxu0 0
        %2224 = vmatpush1.bf16.msra.mxu0 %v2209
        %2225 = vmatprep.subr.bf16.mxu0 0
        %2226 = vmatpush1.bf16.msra.mxu0 %v2208
        %2227 = vmatprep.subr.bf16.mxu0 0
        %2228 = vmatpush1.bf16.msra.mxu0 %v2207
        %2229 = vmatprep.subr.bf16.mxu0 0
        %2230 = vmatpush1.bf16.msra.mxu0 %v2206
        %2231 = vmatprep.subr.bf16.mxu0 0
        %2232 = vmatpush1.bf16.msra.mxu0 %v2205
        %2233 = vmatprep.subr.bf16.mxu0 0
        %2234 = vmatpush2.bf16.msra.mxu0 0
        %2235 = vmatprep.subr.bf16.mxu0 0
        %2236 = vmatpush2.bf16.msra.mxu0 0
        %2237 = vmatprep.subr.bf16.mxu0 0
        %2238 = vmatpush2.bf16.msra.mxu0 0
        %2239 = vmatprep.subr.bf16.mxu0 0
        %2240 = vmatpush2.bf16.msra.mxu0 0
        %2241 = vmatprep.subr.bf16.mxu0 0
        %2242 = vmatpush2.bf16.msra.mxu0 0
        %2243 = vmatprep.subr.bf16.mxu0 0
        %2244 = vmatpush2.bf16.msra.mxu0 0
        %2245 = vmatprep.subr.bf16.mxu0 0
        %2246 = vmatpush2.bf16.msra.mxu0 0
        %2247 = vmatprep.subr.bf16.mxu0 0
        %2248 = vmatpush2.bf16.msra.mxu0 0
        %2249 = vmatprep.mubr.bf16.mxu0 0
        %2250 = vmatmul.mubr.bf16.gmra.mxu0 %v1769
        %v2251 = vpop.f32.mrf.mxu0
        %v2252 = vadd.f32 0.0, %v2251
        %v2253 = vpop.f32.mrf.mxu0
        %v2254 = vpop.f32.mrf.mxu0
        %v2255 = vadd.f32 0.0, %v2254
        %v2256 = vpop.f32.mrf.mxu0
        %2257 = vmatprep.mubr.bf16.mxu0 0
        %2258 = vmatmul.mubr.bf16.gmra.mxu0 %v1771
        %v2259 = vpop.f32.mrf.mxu0
        %v2260 = vadd.f32 %v1836, %v2259
        %v2261 = vpop.f32.mrf.mxu0
        %v2262 = vpop.f32.mrf.mxu0
        %v2263 = vadd.f32 %v1839, %v2262
        %v2264 = vpop.f32.mrf.mxu0
        %2265 = vmatprep.mubr.bf16.mxu0 0
        %2266 = vmatmul.mubr.bf16.gmra.mxu0 %v1773
        %v2267 = vpop.f32.mrf.mxu0
        %v2268 = vadd.f32 %v1844, %v2267
        %v2269 = vpop.f32.mrf.mxu0
        %v2270 = vpop.f32.mrf.mxu0
        %v2271 = vadd.f32 %v1847, %v2270
        %v2272 = vpop.f32.mrf.mxu0
        %2273 = vmatprep.mubr.bf16.mxu0 0
        %2274 = vmatmul.mubr.bf16.gmra.mxu0 %v1775
        %v2275 = vpop.f32.mrf.mxu0
        %v2276 = vadd.f32 %v1852, %v2275
        %v2277 = vpop.f32.mrf.mxu0
        %v2278 = vpop.f32.mrf.mxu0
        %v2279 = vadd.f32 %v1855, %v2278
        %v2280 = vpop.f32.mrf.mxu0
        %2281 = vmatprep.mubr.bf16.mxu0 0
        %2282 = vmatmul.mubr.bf16.gmra.mxu0 %v1777
        %v2283 = vpop.f32.mrf.mxu0
        %v2284 = vadd.f32 %v1860, %v2283
        %v2285 = vpop.f32.mrf.mxu0
        %v2286 = vpop.f32.mrf.mxu0
        %v2287 = vadd.f32 %v1863, %v2286
        %v2288 = vpop.f32.mrf.mxu0
        %2289 = vmatprep.mubr.bf16.mxu0 0
        %2290 = vmatmul.mubr.bf16.gmra.mxu0 %v1779
        %v2291 = vpop.f32.mrf.mxu0
        %v2292 = vadd.f32 %v1868, %v2291
        %v2293 = vpop.f32.mrf.mxu0
        %v2294 = vpop.f32.mrf.mxu0
        %v2295 = vadd.f32 %v1871, %v2294
        %v2296 = vpop.f32.mrf.mxu0
        %2297 = vmatprep.mubr.bf16.mxu0 0
        %2298 = vmatmul.mubr.bf16.gmra.mxu0 %v1781
        %v2299 = vpop.f32.mrf.mxu0
        %v2300 = vadd.f32 %v1876, %v2299
        %v2301 = vpop.f32.mrf.mxu0
        %v2302 = vpop.f32.mrf.mxu0
        %v2303 = vadd.f32 %v1879, %v2302
        %v2304 = vpop.f32.mrf.mxu0
        %2305 = vmatprep.mubr.bf16.mxu0 0
        %2306 = vmatmul.mubr.bf16.gmra.mxu0 %v1783
        %v2307 = vpop.f32.mrf.mxu0
        %v2308 = vadd.f32 %v1884, %v2307
        %v2309 = vpop.f32.mrf.mxu0
        %v2310 = vpop.f32.mrf.mxu0
        %v2311 = vadd.f32 %v1887, %v2310
        %v2312 = vpop.f32.mrf.mxu0
        %2313 = vmatprep.mubr.bf16.mxu0 0
        %2314 = vmatmul.mubr.bf16.gmra.mxu0 %v1785
        %v2315 = vpop.f32.mrf.mxu0
        %v2316 = vadd.f32 %v1892, %v2315
        %v2317 = vpop.f32.mrf.mxu0
        %v2318 = vpop.f32.mrf.mxu0
        %v2319 = vadd.f32 %v1895, %v2318
        %v2320 = vpop.f32.mrf.mxu0
        %2321 = vmatprep.mubr.bf16.mxu0 0
        %2322 = vmatmul.mubr.bf16.gmra.mxu0 %v1787
        %v2323 = vpop.f32.mrf.mxu0
        %v2324 = vadd.f32 %v1900, %v2323
        %v2325 = vpop.f32.mrf.mxu0
        %v2326 = vpop.f32.mrf.mxu0
        %v2327 = vadd.f32 %v1903, %v2326
        %v2328 = vpop.f32.mrf.mxu0
        %2329 = vmatprep.mubr.bf16.mxu0 0
        %2330 = vmatmul.mubr.bf16.gmra.mxu0 %v1789
        %v2331 = vpop.f32.mrf.mxu0
        %v2332 = vadd.f32 %v1908, %v2331
        %v2333 = vpop.f32.mrf.mxu0
        %v2334 = vpop.f32.mrf.mxu0
        %v2335 = vadd.f32 %v1911, %v2334
        %v2336 = vpop.f32.mrf.mxu0
        %2337 = vmatprep.mubr.bf16.mxu0 0
        %2338 = vmatmul.mubr.bf16.gmra.mxu0 %v1791
        %v2339 = vpop.f32.mrf.mxu0
        %v2340 = vadd.f32 %v1916, %v2339
        %v2341 = vpop.f32.mrf.mxu0
        %v2342 = vpop.f32.mrf.mxu0
        %v2343 = vadd.f32 %v1919, %v2342
        %v2344 = vpop.f32.mrf.mxu0
        %2345 = vmatprep.mubr.bf16.mxu0 0
        %2346 = vmatmul.mubr.bf16.gmra.mxu0 %v1793
        %v2347 = vpop.f32.mrf.mxu0
        %v2348 = vadd.f32 %v1924, %v2347
        %v2349 = vpop.f32.mrf.mxu0
        %v2350 = vpop.f32.mrf.mxu0
        %v2351 = vadd.f32 %v1927, %v2350
        %v2352 = vpop.f32.mrf.mxu0
        %2353 = vmatprep.mubr.bf16.mxu0 0
        %2354 = vmatmul.mubr.bf16.gmra.mxu0 %v1795
        %v2355 = vpop.f32.mrf.mxu0
        %v2356 = vadd.f32 %v1932, %v2355
        %v2357 = vpop.f32.mrf.mxu0
        %v2358 = vpop.f32.mrf.mxu0
        %v2359 = vadd.f32 %v1935, %v2358
        %v2360 = vpop.f32.mrf.mxu0
        %2361 = vmatprep.mubr.bf16.mxu0 0
        %2362 = vmatmul.mubr.bf16.gmra.mxu0 %v1797
        %v2363 = vpop.f32.mrf.mxu0
        %v2364 = vadd.f32 %v1940, %v2363
        %v2365 = vpop.f32.mrf.mxu0
        %v2366 = vpop.f32.mrf.mxu0
        %v2367 = vadd.f32 %v1943, %v2366
        %v2368 = vpop.f32.mrf.mxu0
        %2369 = vmatprep.mubr.bf16.mxu0 0
        %2370 = vmatmul.mubr.bf16.gmra.mxu0 %v1799
        %v2371 = vpop.f32.mrf.mxu0
        %v2372 = vadd.f32 %v1948, %v2371
        %v2373 = vpop.f32.mrf.mxu0
        %v2374 = vpop.f32.mrf.mxu0
        %v2375 = vadd.f32 %v1951, %v2374
        %v2376 = vpop.f32.mrf.mxu0
        %2377 = vdwg.mxu0
        %v2378 = vadd.f32 %v2252, %v2063
        %v2379 = vadd.f32 %v2255, %v2066
        %v2380 = vadd.f32 %v2260, %v2071
        %v2381 = vadd.f32 %v2263, %v2074
        %v2382 = vadd.f32 %v2268, %v2079
        %v2383 = vadd.f32 %v2271, %v2082
        %v2384 = vadd.f32 %v2276, %v2087
        %v2385 = vadd.f32 %v2279, %v2090
        %v2386 = vadd.f32 %v2284, %v2095
        %v2387 = vadd.f32 %v2287, %v2098
        %v2388 = vadd.f32 %v2292, %v2103
        %v2389 = vadd.f32 %v2295, %v2106
        %v2390 = vadd.f32 %v2300, %v2111
        %v2391 = vadd.f32 %v2303, %v2114
        %v2392 = vadd.f32 %v2308, %v2119
        %v2393 = vadd.f32 %v2311, %v2122
        %v2394 = vadd.f32 %v2316, %v2127
        %v2395 = vadd.f32 %v2319, %v2130
        %v2396 = vadd.f32 %v2324, %v2135
        %v2397 = vadd.f32 %v2327, %v2138
        %v2398 = vadd.f32 %v2332, %v2143
        %v2399 = vadd.f32 %v2335, %v2146
        %v2400 = vadd.f32 %v2340, %v2151
        %v2401 = vadd.f32 %v2343, %v2154
        %v2402 = vadd.f32 %v2348, %v2159
        %v2403 = vadd.f32 %v2351, %v2162
        %v2404 = vadd.f32 %v2356, %v2167
        %v2405 = vadd.f32 %v2359, %v2170
        %v2406 = vadd.f32 %v2364, %v2175
        %v2407 = vadd.f32 %v2367, %v2178
        %v2408 = vadd.f32 %v2372, 0.0
        %v2409 = vadd.f32 %v2375, 0.0
        %v2410 = vld [vmem:[%s5] sm:$0x1]
        %v2412 = vlaneseq
        %v2413 = vshrl.u32 %v2412, 7
        %v2414 = vsub.s32 0, %v2413
        %v2415 = vrot.slane %v2410, %v2414
        %v2417 = vadd.f32 %v2378, %v2415
        %v2418 = vadd.f32 %v2379, %v2415
        %v2419 = vadd.f32 %v2380, %v2415
        %v2420 = vadd.f32 %v2381, %v2415
        %v2421 = vadd.f32 %v2382, %v2415
        %v2422 = vadd.f32 %v2383, %v2415
        %v2423 = vadd.f32 %v2384, %v2415
        %v2424 = vadd.f32 %v2385, %v2415
        %v2425 = vadd.f32 %v2386, %v2415
        %v2426 = vadd.f32 %v2387, %v2415
        %v2427 = vadd.f32 %v2388, %v2415
        %v2428 = vadd.f32 %v2389, %v2415
        %v2429 = vadd.f32 %v2390, %v2415
        %v2430 = vadd.f32 %v2391, %v2415
        %v2431 = vadd.f32 %v2392, %v2415
        %v2432 = vadd.f32 %v2393, %v2415
        %v2433 = vadd.f32 %v2394, %v2415
        %v2434 = vadd.f32 %v2395, %v2415
        %v2435 = vadd.f32 %v2396, %v2415
        %v2436 = vadd.f32 %v2397, %v2415
        %v2437 = vadd.f32 %v2398, %v2415
        %v2438 = vadd.f32 %v2399, %v2415
        %v2439 = vadd.f32 %v2400, %v2415
        %v2440 = vadd.f32 %v2401, %v2415
        %v2441 = vadd.f32 %v2402, %v2415
        %v2442 = vadd.f32 %v2403, %v2415
        %v2443 = vadd.f32 %v2404, %v2415
        %v2444 = vadd.f32 %v2405, %v2415
        %v2445 = vadd.f32 %v2406, %v2415
        %v2446 = vadd.f32 %v2407, %v2415
        %v2447 = vadd.f32 %v2408, %v2415
        %v2448 = vadd.f32 %v2409, %v2415
        %v2449 = vld [vmem:[%s264] sm:$0xff]
        %v2450 = vld [vmem:[%s264 + $0x8] sm:$0xff]
        %v2451 = vld [vmem:[%s264 + $0x10] sm:$0xff]
        %v2452 = vld [vmem:[%s264 + $0x18] sm:$0xff]
        %v2453 = vld [vmem:[%s264 + $0x20] sm:$0xff]
        %v2454 = vld [vmem:[%s264 + $0x28] sm:$0xff]
        %v2455 = vld [vmem:[%s264 + $0x30] sm:$0xff]
        %v2456 = vld [vmem:[%s264 + $0x38] sm:$0xff]
        %v2457 = vld [vmem:[%s264 + $0x40] sm:$0xff]
        %v2458 = vld [vmem:[%s264 + $0x48] sm:$0xff]
        %v2459 = vld [vmem:[%s264 + $0x50] sm:$0xff]
        %v2460 = vld [vmem:[%s264 + $0x58] sm:$0xff]
        %v2461 = vld [vmem:[%s264 + $0x60] sm:$0xff]
        %v2462 = vld [vmem:[%s264 + $0x68] sm:$0xff]
        %v2463 = vld [vmem:[%s264 + $0x70] sm:$0xff]
        %v2464 = vld [vmem:[%s264 + $0x78] sm:$0xff]
        %v2465 = vld [vmem:[%s264 + $0x80] sm:$0xff]
        %v2466 = vld [vmem:[%s264 + $0x88] sm:$0xff]
        %v2467 = vld [vmem:[%s264 + $0x90] sm:$0xff]
        %v2468 = vld [vmem:[%s264 + $0x98] sm:$0xff]
        %v2469 = vld [vmem:[%s264 + $0xa0] sm:$0xff]
        %v2470 = vld [vmem:[%s264 + $0xa8] sm:$0xff]
        %v2471 = vld [vmem:[%s264 + $0xb0] sm:$0xff]
        %v2472 = vld [vmem:[%s264 + $0xb8] sm:$0xff]
        %v2473 = vld [vmem:[%s264 + $0xc0] sm:$0xff]
        %v2474 = vld [vmem:[%s264 + $0xc8] sm:$0xff]
        %v2475 = vld [vmem:[%s264 + $0xd0] sm:$0xff]
        %v2476 = vld [vmem:[%s264 + $0xd8] sm:$0xff]
        %v2477 = vld [vmem:[%s264 + $0xe0] sm:$0xff]
        %v2478 = vld [vmem:[%s264 + $0xe8] sm:$0xff]
        %v2479 = vld [vmem:[%s264 + $0xf0] sm:$0xff]
        %v2480 = vld [vmem:[%s264 + $0xf8] sm:$0xff]
        %v2481 = vadd.f32 %v2449, %v2417
        %v2482 = vadd.f32 %v2450, %v2418
        %v2483 = vadd.f32 %v2451, %v2419
        %v2484 = vadd.f32 %v2452, %v2420
        %v2485 = vadd.f32 %v2453, %v2421
        %v2486 = vadd.f32 %v2454, %v2422
        %v2487 = vadd.f32 %v2455, %v2423
        %v2488 = vadd.f32 %v2456, %v2424
        %v2489 = vadd.f32 %v2457, %v2425
        %v2490 = vadd.f32 %v2458, %v2426
        %v2491 = vadd.f32 %v2459, %v2427
        %v2492 = vadd.f32 %v2460, %v2428
        %v2493 = vadd.f32 %v2461, %v2429
        %v2494 = vadd.f32 %v2462, %v2430
        %v2495 = vadd.f32 %v2463, %v2431
        %v2496 = vadd.f32 %v2464, %v2432
        %v2497 = vadd.f32 %v2465, %v2433
        %v2498 = vadd.f32 %v2466, %v2434
        %v2499 = vadd.f32 %v2467, %v2435
        %v2500 = vadd.f32 %v2468, %v2436
        %v2501 = vadd.f32 %v2469, %v2437
        %v2502 = vadd.f32 %v2470, %v2438
        %v2503 = vadd.f32 %v2471, %v2439
        %v2504 = vadd.f32 %v2472, %v2440
        %v2505 = vadd.f32 %v2473, %v2441
        %v2506 = vadd.f32 %v2474, %v2442
        %v2507 = vadd.f32 %v2475, %v2443
        %v2508 = vadd.f32 %v2476, %v2444
        %v2509 = vadd.f32 %v2477, %v2445
        %v2510 = vadd.f32 %v2478, %v2446
        %v2511 = vadd.f32 %v2479, %v2447
        %v2512 = vadd.f32 %v2480, %v2448
        %v2513 = vmax.f32 %v2481, 0.0
        %v2514 = vmax.f32 %v2482, 0.0
        %v2515 = vmax.f32 %v2483, 0.0
        %v2516 = vmax.f32 %v2484, 0.0
        %v2517 = vmax.f32 %v2485, 0.0
        %v2518 = vmax.f32 %v2486, 0.0
        %v2519 = vmax.f32 %v2487, 0.0
        %v2520 = vmax.f32 %v2488, 0.0
        %v2521 = vmax.f32 %v2489, 0.0
        %v2522 = vmax.f32 %v2490, 0.0
        %v2523 = vmax.f32 %v2491, 0.0
        %v2524 = vmax.f32 %v2492, 0.0
        %v2525 = vmax.f32 %v2493, 0.0
        %v2526 = vmax.f32 %v2494, 0.0
        %v2527 = vmax.f32 %v2495, 0.0
        %v2528 = vmax.f32 %v2496, 0.0
        %v2529 = vmax.f32 %v2497, 0.0
        %v2530 = vmax.f32 %v2498, 0.0
        %v2531 = vmax.f32 %v2499, 0.0
        %v2532 = vmax.f32 %v2500, 0.0
        %v2533 = vmax.f32 %v2501, 0.0
        %v2534 = vmax.f32 %v2502, 0.0
        %v2535 = vmax.f32 %v2503, 0.0
        %v2536 = vmax.f32 %v2504, 0.0
        %v2537 = vmax.f32 %v2505, 0.0
        %v2538 = vmax.f32 %v2506, 0.0
        %v2539 = vmax.f32 %v2507, 0.0
        %v2540 = vmax.f32 %v2508, 0.0
        %v2541 = vmax.f32 %v2509, 0.0
        %v2542 = vmax.f32 %v2510, 0.0
        %v2543 = vmax.f32 %v2511, 0.0
        %v2544 = vmax.f32 %v2512, 0.0
        %2545 = vst.msk [vmem:[%s259] sm:$0xff] %vm1638, %v2513
        %2546 = vst.msk [vmem:[%s259 + $0x8] sm:$0xff] %vm1638, %v2514
        %2547 = vst.msk [vmem:[%s259 + $0x10] sm:$0xff] %vm1638, %v2515
        %2548 = vst.msk [vmem:[%s259 + $0x18] sm:$0xff] %vm1638, %v2516
        %2549 = vst.msk [vmem:[%s259 + $0x20] sm:$0xff] %vm1638, %v2517
        %2550 = vst.msk [vmem:[%s259 + $0x28] sm:$0xff] %vm1638, %v2518
        %2551 = vst.msk [vmem:[%s259 + $0x30] sm:$0xff] %vm1638, %v2519
        %2552 = vst.msk [vmem:[%s259 + $0x38] sm:$0xff] %vm1638, %v2520
        %2553 = vst.msk [vmem:[%s259 + $0x40] sm:$0xff] %vm1638, %v2521
        %2554 = vst.msk [vmem:[%s259 + $0x48] sm:$0xff] %vm1638, %v2522
        %2555 = vst.msk [vmem:[%s259 + $0x50] sm:$0xff] %vm1638, %v2523
        %2556 = vst.msk [vmem:[%s259 + $0x58] sm:$0xff] %vm1638, %v2524
        %2557 = vst.msk [vmem:[%s259 + $0x60] sm:$0xff] %vm1638, %v2525
        %2558 = vst.msk [vmem:[%s259 + $0x68] sm:$0xff] %vm1638, %v2526
        %2559 = vst.msk [vmem:[%s259 + $0x70] sm:$0xff] %vm1638, %v2527
        %2560 = vst.msk [vmem:[%s259 + $0x78] sm:$0xff] %vm1638, %v2528
        %2561 = vst.msk [vmem:[%s259 + $0x80] sm:$0xff] %vm1638, %v2529
        %2562 = vst.msk [vmem:[%s259 + $0x88] sm:$0xff] %vm1638, %v2530
        %2563 = vst.msk [vmem:[%s259 + $0x90] sm:$0xff] %vm1638, %v2531
        %2564 = vst.msk [vmem:[%s259 + $0x98] sm:$0xff] %vm1638, %v2532
        %2565 = vst.msk [vmem:[%s259 + $0xa0] sm:$0xff] %vm1638, %v2533
        %2566 = vst.msk [vmem:[%s259 + $0xa8] sm:$0xff] %vm1638, %v2534
        %2567 = vst.msk [vmem:[%s259 + $0xb0] sm:$0xff] %vm1638, %v2535
        %2568 = vst.msk [vmem:[%s259 + $0xb8] sm:$0xff] %vm1638, %v2536
        %2569 = vst.msk [vmem:[%s259 + $0xc0] sm:$0xff] %vm1638, %v2537
        %2570 = vst.msk [vmem:[%s259 + $0xc8] sm:$0xff] %vm1638, %v2538
        %2571 = vst.msk [vmem:[%s259 + $0xd0] sm:$0xff] %vm1638, %v2539
        %2572 = vst.msk [vmem:[%s259 + $0xd8] sm:$0xff] %vm1638, %v2540
        %2573 = vst.msk [vmem:[%s259 + $0xe0] sm:$0xff] %vm1638, %v2541
        %2574 = vst.msk [vmem:[%s259 + $0xe8] sm:$0xff] %vm1638, %v2542
        %2575 = vst.msk [vmem:[%s259 + $0xf0] sm:$0xff] %vm1638, %v2543
        %2576 = vst.msk [vmem:[%s259 + $0xf8] sm:$0xff] %vm1638, %v2544
        %s2577 = sand.u32 %s164, 1
        %s2578 = scalar_lea.sflag [#allocation3], %s2577
        %s2579 = sand.u32 %s164, 1
        %s2580 = smul.addr %s2579, 256
        %s2581 = scalar_lea.vmem [#allocation2], %s2580
        // Predicated region
        $region45: #{ftb_forward.3} parent=43 // pred_check
          %p2582 = pneg %p174
        $region46: #{ftb_forward.3} parent=43 // pred_check_branch
          %2584 = sbr.rel (%p2582) target = $region48
        $region47: #{ftb_forward.3} parent=43 // pred_region
          %s2586 = ssub.s32 4096, 4096
          %2587 = vsyncadd %s2578, %s2586
          %s2588 = smul.addr %s20, 32
          %s2589 = smul.addr %s2588, 128
          %s2590 = scalar_lea.hbm %s6, %s2589
          %s2591 = sshll.u32 %s2581, 4
          %s2592 = int_to_ptr.vmem [resolvable:$true] %s2591
          %2597 = dma.vmem_to_hbm [thread:$0]  %s2592, 4096, %s2590, %s2578, 128, 128, 8
        $region48: #{ftb_forward.3} parent=43 // pred_fallthru
          _
      $region44: #{ftb_forward.3} parent=5 // pred_fallthru
        _
      %p2598 = scmp.le.s32.totalorder 2, %s15
      // Predicated region
      $region49: #{ftb_forward.3} parent=5 // pred_check
        %p2599 = pneg %p2598
      $region50: #{ftb_forward.3} parent=5 // pred_check_branch
        %2601 = sbr.rel (%p2599) target = $region52
      $region51: #{ftb_forward.3} parent=5 // pred_region
        %s2602 = ssub.s32 %s15, 2
        // Predicated region
        $region53: #{ftb_forward.3} parent=51 // pred_check
          %p2603 = pneg %p180
        $region54: #{ftb_forward.3} parent=51 // pred_check_branch
          %2605 = sbr.rel (%p2603) target = $region56
        $region55: #{ftb_forward.3} parent=51 // pred_region
          %s2606 = sand.u32 %s165, 1
          %s2607 = scalar_lea.sflag [#allocation3], %s2606
          %s2608 = sand.u32 %s165, 1
          %s2609 = smul.addr %s2608, 256
          %s2610 = scalar_lea.vmem [#allocation2], %s2609
          %2611 = dma.done %s2607, 4096
        $region56: #{ftb_forward.3} parent=51 // pred_fallthru
          _
      $region52: #{ftb_forward.3} parent=5 // pred_fallthru
        _
    $region6: #{ftb_forward.3} parent=1 // loop_footer
      %s19 = sadd.s32 1, %s15
    $region7: #{ftb_forward.3} parent=1 // loop_footer_branch
      %14 = sbr.rel target = $region3
    $region8: #{ftb_forward.3} parent=1 // loop_exit
      _
    %2612 = vsyncpa [#allocation3], 1
    %s2613 = scalar_lea.sflag [#allocation3], 1
    %2614 = vsyncpa %s2613, 1

// kernel: ftb_forward.2
$region0: #{ftb_forward.2}
  #allocation0 [shape = 'u32[]', space=smem, size = 0x4, offset = 0x4, fixed_abs, tag = 'smem constant byte address 0x4 - core index']
  #allocation1 [shape = 'u32[144,128]{1,0:T(1,128)}', space=vmem, size = 0x12000, scoped, tag = 'internal scratch']
  %s0 = inlined_call_operand.vmem [shape: f32[2,256,8], index: 0, kind: input, shape index: {}]
  %s1 = inlined_call_operand.vmem [shape: bf16[3,24,32], index: 1, kind: input, shape index: {}]
  %s2 = inlined_call_operand.vmem [shape: f32[1,32], index: 2, kind: input, shape index: {}]
  %s3 = inlined_call_operand.vmem [shape: bf16[3,96,32], index: 3, kind: input, shape index: {}]
  %s4 = inlined_call_operand.vmem [shape: f32[1,32], index: 4, kind: input, shape index: {}]
  %s5 = inlined_call_operand.vmem [shape: f32[2,256,32], index: 5, kind: output, shape index: {0}]
  %s6 = inlined_call_operand.vmem [shape: f32[2,256,32], index: 6, kind: output, shape index: {1}]
  %s7 = inlined_call_operand.vmem [shape: f32[2,2,32], index: 7, kind: output, shape index: {2}]
  %8 = xla_tuple %s5, %s6, %s7
  %s9 = sld [smem:[#allocation0]]
  $region69: #{ftb_forward.2} parent=0
    _
  %s11 = ssub.s32 1, %s9
  %s12 = scalar_select 0, %s11, %s9
  loop: start=0, step=1, limit=4
  $region2: #{ftb_forward.2} parent=0 // loop_pre_header
    _
  $region3: #{ftb_forward.2} parent=0 // loop_header
    %s14 = sphi 0, %s18
    %p15 = scmp.ge.s32.totalorder %s14, 4
    %s24 = sphi 0, %s26
    %s27 = sphi 0, %s24
    %s28 = sphi 0, %s27
    %s44 = sphi 0, %s28
    %s48 = sphi 0, %s48
    %s50 = sphi 0, %s48
    %s51 = sphi 0, %s50
    %s65 = sphi 0, %s51
    %s69 = sphi 0, %s69
    %s71 = sphi 0, %s69
    %s72 = sphi 0, %s71
    %s86 = sphi 0, %s72
    %s90 = sphi 0, %s90
    %s92 = sphi 0, %s90
    %s93 = sphi 0, %s92
    %s107 = sphi 0, %s93
    %s111 = sphi 0, %s111
    %s113 = sphi 0, %s111
    %s114 = sphi 0, %s113
    %s128 = sphi 0, %s114
    %s134 = sphi 0, %s136
    %s137 = sphi 0, %s134
    %s138 = sphi 0, %s137
    %s154 = sphi 0, %s138
    %s160 = sphi 0, %s162
    %s163 = sphi 0, %s160
    %s164 = sphi 0, %s163
    %s180 = sphi 0, %s164
    %s186 = sphi 0, %s188
    %s189 = sphi 0, %s186
    %s190 = sphi 0, %s189
    %s206 = sphi 0, %s190
  $region4: #{ftb_forward.2} parent=0 // loop_header_branch
    %17 = sbr.rel (%p15) target = $region8
  $region5: #{ftb_forward.2} parent=0 // loop_body
    %s19 = ssub.s32 %s14, 1
    %s20 = ssub.s32 %s14, 2
    %s21 = sadd.s32 %s14, 1
    %s22 = ssub.s32 %s14, %s21
    %p23 = scmp.eq.s32.totalorder %s22, 0
    %s25 = sadd.s32 %s24, 1
    %s26 = scalar_select %p23, %s24, %s25
    %p29 = pneg %p23
    %p30 = scmp.eq.s32.totalorder %s14, 1
    %p31 = por %p29, %p30
    %p32 = scmp.ne.s32.totalorder %s24, %s27
    %p33 = scmp.eq.s32.totalorder %s14, 0
    %p34 = por %p32, %p33
    %p35 = scmp.ne.s32.totalorder %s24, %s27
    %p36 = scmp.eq.s32.totalorder %s19, 1
    %p37 = por %p35, %p36
    %p38 = scmp.ne.s32.totalorder %s27, %s28
    %p39 = scmp.eq.s32.totalorder %s19, 0
    %p40 = por %p38, %p39
    %p41 = scmp.ne.s32.totalorder %s27, %s28
    %p42 = scmp.eq.s32.totalorder %s20, 1
    %p43 = por %p41, %p42
    %p45 = scmp.ne.s32.totalorder %s28, %s44
    %p46 = scmp.eq.s32.totalorder %s20, 0
    %p47 = por %p45, %p46
    %s49 = sadd.s32 %s48, 1
    %p52 = scmp.eq.s32.totalorder %s14, 1
    %p53 = scmp.ne.s32.totalorder %s48, %s50
    %p54 = scmp.eq.s32.totalorder %s14, 0
    %p55 = por %p53, %p54
    %p56 = scmp.ne.s32.totalorder %s48, %s50
    %p57 = scmp.eq.s32.totalorder %s19, 1
    %p58 = por %p56, %p57
    %p59 = scmp.ne.s32.totalorder %s50, %s51
    %p60 = scmp.eq.s32.totalorder %s19, 0
    %p61 = por %p59, %p60
    %p62 = scmp.ne.s32.totalorder %s50, %s51
    %p63 = scmp.eq.s32.totalorder %s20, 1
    %p64 = por %p62, %p63
    %p66 = scmp.ne.s32.totalorder %s51, %s65
    %p67 = scmp.eq.s32.totalorder %s20, 0
    %p68 = por %p66, %p67
    %s70 = sadd.s32 %s69, 1
    %p73 = scmp.eq.s32.totalorder %s14, 1
    %p74 = scmp.ne.s32.totalorder %s69, %s71
    %p75 = scmp.eq.s32.totalorder %s14, 0
    %p76 = por %p74, %p75
    %p77 = scmp.ne.s32.totalorder %s69, %s71
    %p78 = scmp.eq.s32.totalorder %s19, 1
    %p79 = por %p77, %p78
    %p80 = scmp.ne.s32.totalorder %s71, %s72
    %p81 = scmp.eq.s32.totalorder %s19, 0
    %p82 = por %p80, %p81
    %p83 = scmp.ne.s32.totalorder %s71, %s72
    %p84 = scmp.eq.s32.totalorder %s20, 1
    %p85 = por %p83, %p84
    %p87 = scmp.ne.s32.totalorder %s72, %s86
    %p88 = scmp.eq.s32.totalorder %s20, 0
    %p89 = por %p87, %p88
    %s91 = sadd.s32 %s90, 1
    %p94 = scmp.eq.s32.totalorder %s14, 1
    %p95 = scmp.ne.s32.totalorder %s90, %s92
    %p96 = scmp.eq.s32.totalorder %s14, 0
    %p97 = por %p95, %p96
    %p98 = scmp.ne.s32.totalorder %s90, %s92
    %p99 = scmp.eq.s32.totalorder %s19, 1
    %p100 = por %p98, %p99
    %p101 = scmp.ne.s32.totalorder %s92, %s93
    %p102 = scmp.eq.s32.totalorder %s19, 0
    %p103 = por %p101, %p102
    %p104 = scmp.ne.s32.totalorder %s92, %s93
    %p105 = scmp.eq.s32.totalorder %s20, 1
    %p106 = por %p104, %p105
    %p108 = scmp.ne.s32.totalorder %s93, %s107
    %p109 = scmp.eq.s32.totalorder %s20, 0
    %p110 = por %p108, %p109
    %s112 = sadd.s32 %s111, 1
    %p115 = scmp.eq.s32.totalorder %s14, 1
    %p116 = scmp.ne.s32.totalorder %s111, %s113
    %p117 = scmp.eq.s32.totalorder %s14, 0
    %p118 = por %p116, %p117
    %p119 = scmp.ne.s32.totalorder %s111, %s113
    %p120 = scmp.eq.s32.totalorder %s19, 1
    %p121 = por %p119, %p120
    %p122 = scmp.ne.s32.totalorder %s113, %s114
    %p123 = scmp.eq.s32.totalorder %s19, 0
    %p124 = por %p122, %p123
    %p125 = scmp.ne.s32.totalorder %s113, %s114
    %p126 = scmp.eq.s32.totalorder %s20, 1
    %p127 = por %p125, %p126
    %p129 = scmp.ne.s32.totalorder %s114, %s128
    %p130 = scmp.eq.s32.totalorder %s20, 0
    %p131 = por %p129, %p130
    %s132 = ssub.s32 %s14, %s21
    %p133 = scmp.eq.s32.totalorder %s132, 0
    %s135 = sadd.s32 %s134, 1
    %s136 = scalar_select %p133, %s134, %s135
    %p139 = pneg %p133
    %p140 = scmp.eq.s32.totalorder %s14, 1
    %p141 = por %p139, %p140
    %p142 = scmp.ne.s32.totalorder %s134, %s137
    %p143 = scmp.eq.s32.totalorder %s14, 0
    %p144 = por %p142, %p143
    %p145 = scmp.ne.s32.totalorder %s134, %s137
    %p146 = scmp.eq.s32.totalorder %s19, 1
    %p147 = por %p145, %p146
    %p148 = scmp.ne.s32.totalorder %s137, %s138
    %p149 = scmp.eq.s32.totalorder %s19, 0
    %p150 = por %p148, %p149
    %p151 = scmp.ne.s32.totalorder %s137, %s138
    %p152 = scmp.eq.s32.totalorder %s20, 1
    %p153 = por %p151, %p152
    %p155 = scmp.ne.s32.totalorder %s138, %s154
    %p156 = scmp.eq.s32.totalorder %s20, 0
    %p157 = por %p155, %p156
    %s158 = ssub.s32 %s14, %s21
    %p159 = scmp.eq.s32.totalorder %s158, 0
    %s161 = sadd.s32 %s160, 1
    %s162 = scalar_select %p159, %s160, %s161
    %p165 = pneg %p159
    %p166 = scmp.eq.s32.totalorder %s14, 1
    %p167 = por %p165, %p166
    %p168 = scmp.ne.s32.totalorder %s160, %s163
    %p169 = scmp.eq.s32.totalorder %s14, 0
    %p170 = por %p168, %p169
    %p171 = scmp.ne.s32.totalorder %s160, %s163
    %p172 = scmp.eq.s32.totalorder %s19, 1
    %p173 = por %p171, %p172
    %p174 = scmp.ne.s32.totalorder %s163, %s164
    %p175 = scmp.eq.s32.totalorder %s19, 0
    %p176 = por %p174, %p175
    %p177 = scmp.ne.s32.totalorder %s163, %s164
    %p178 = scmp.eq.s32.totalorder %s20, 1
    %p179 = por %p177, %p178
    %p181 = scmp.ne.s32.totalorder %s164, %s180
    %p182 = scmp.eq.s32.totalorder %s20, 0
    %p183 = por %p181, %p182
    %s184 = ssub.s32 %s14, %s21
    %p185 = scmp.eq.s32.totalorder %s184, 0
    %s187 = sadd.s32 %s186, 1
    %s188 = scalar_select %p185, %s186, %s187
    %p191 = pneg %p185
    %p192 = scmp.eq.s32.totalorder %s14, 1
    %p193 = por %p191, %p192
    %p194 = scmp.ne.s32.totalorder %s186, %s189
    %p195 = scmp.eq.s32.totalorder %s14, 0
    %p196 = por %p194, %p195
    %p197 = scmp.ne.s32.totalorder %s186, %s189
    %p198 = scmp.eq.s32.totalorder %s19, 1
    %p199 = por %p197, %p198
    %p200 = scmp.ne.s32.totalorder %s189, %s190
    %p201 = scmp.eq.s32.totalorder %s19, 0
    %p202 = por %p200, %p201
    %p203 = scmp.ne.s32.totalorder %s189, %s190
    %p204 = scmp.eq.s32.totalorder %s20, 1
    %p205 = por %p203, %p204
    %p207 = scmp.ne.s32.totalorder %s190, %s206
    %p208 = scmp.eq.s32.totalorder %s20, 0
    %p209 = por %p207, %p208
    %p210 = scmp.le.s32.totalorder 1, %s14
    %p211 = scmp.lt.s32.totalorder %s14, 3
    %p212 = pnand %p210, %p211
    %p213 = pneg %p212
    // Predicated region
    $region9: #{ftb_forward.2} parent=5 // pred_check
      _
    $region10: #{ftb_forward.2} parent=5 // pred_check_branch
      %215 = sbr.rel (%p212) target = $region12
    $region11: #{ftb_forward.2} parent=5 // pred_region
      %s216 = ssub.s32 %s14, 1
      // Predicated region
      $region13: #{ftb_forward.2} parent=11 // pred_check
        %p217 = pneg %p61
      $region14: #{ftb_forward.2} parent=11 // pred_check_branch
        %219 = sbr.rel (%p217) target = $region16
      $region15: #{ftb_forward.2} parent=11 // pred_region
        _
      $region16: #{ftb_forward.2} parent=11 // pred_fallthru
        _
      // Predicated region
      $region17: #{ftb_forward.2} parent=11 // pred_check
        %p220 = pneg %p82
      $region18: #{ftb_forward.2} parent=11 // pred_check_branch
        %222 = sbr.rel (%p220) target = $region20
      $region19: #{ftb_forward.2} parent=11 // pred_region
        _
      $region20: #{ftb_forward.2} parent=11 // pred_fallthru
        _
      // Predicated region
      $region21: #{ftb_forward.2} parent=11 // pred_check
        %p223 = pneg %p103
      $region22: #{ftb_forward.2} parent=11 // pred_check_branch
        %225 = sbr.rel (%p223) target = $region24
      $region23: #{ftb_forward.2} parent=11 // pred_region
        _
      $region24: #{ftb_forward.2} parent=11 // pred_fallthru
        _
      // Predicated region
      $region25: #{ftb_forward.2} parent=11 // pred_check
        %p226 = pneg %p124
      $region26: #{ftb_forward.2} parent=11 // pred_check_branch
        %228 = sbr.rel (%p226) target = $region28
      $region27: #{ftb_forward.2} parent=11 // pred_region
        _
      $region28: #{ftb_forward.2} parent=11 // pred_fallthru
        _
    $region12: #{ftb_forward.2} parent=5 // pred_fallthru
      _
    %p229 = scmp.lt.s32.totalorder %s14, 2
    // Predicated region
    $region29: #{ftb_forward.2} parent=5 // pred_check
      %p230 = pneg %p229
    $region30: #{ftb_forward.2} parent=5 // pred_check_branch
      %232 = sbr.rel (%p230) target = $region32
    $region31: #{ftb_forward.2} parent=5 // pred_region
      // Predicated region
      $region33: #{ftb_forward.2} parent=31 // pred_check
        %p233 = pneg %p34
      $region34: #{ftb_forward.2} parent=31 // pred_check_branch
        %235 = sbr.rel (%p233) target = $region36
      $region35: #{ftb_forward.2} parent=31 // pred_region
        %p236 = scmp.lt.s32.totalorder %s14, 1
        %s237 = scalar_select %p236, %s14, 1
        %s238 = smul.addr %s237, 32
        %s239 = smul.addr %s238, 8
        %s240 = scalar_lea.vmem %s0, %s239
      $region36: #{ftb_forward.2} parent=31 // pred_fallthru
        _
    $region32: #{ftb_forward.2} parent=5 // pred_fallthru
      _
    %p241 = scmp.le.s32.totalorder 1, %s14
    %p242 = scmp.lt.s32.totalorder %s14, 3
    %p243 = pnand %p241, %p242
    %p244 = pneg %p243
    // Predicated region
    $region37: #{ftb_forward.2} parent=5 // pred_check
      _
    $region38: #{ftb_forward.2} parent=5 // pred_check_branch
      %246 = sbr.rel (%p243) target = $region40
    $region39: #{ftb_forward.2} parent=5 // pred_region
      %s247 = ssub.s32 %s14, 1
      %p248 = scmp.lt.s32.totalorder %s19, 1
      %s249 = scalar_select %p248, %s19, 1
      %s250 = smul.addr %s249, 32
      %s251 = smul.addr %s250, 8
      %s252 = scalar_lea.vmem %s0, %s251
      %p253 = pneg %p40
      %p254 = pneg %p37
      %p255 = pneg %p61
      %p256 = pneg %p58
      %p257 = pneg %p82
      %p258 = pneg %p79
      %p259 = pneg %p103
      %p260 = pneg %p100
      %p261 = pneg %p124
      %p262 = pneg %p121
      %p263 = pneg %p150
      %p264 = pneg %p147
      %p265 = scmp.lt.s32.totalorder %s19, 1
      %s266 = scalar_select %p265, %s19, 1
      %s267 = smul.addr %s266, 32
      %s268 = smul.addr %s267, 8
      %s269 = scalar_lea.vmem %s5, %s268
      %p270 = pneg %p176
      %p271 = pneg %p173
      %p272 = scmp.lt.s32.totalorder %s19, 1
      %s273 = scalar_select %p272, %s19, 1
      %s274 = smul.addr %s273, 32
      %s275 = smul.addr %s274, 8
      %s276 = scalar_lea.vmem %s6, %s275
      %p277 = pneg %p202
      %p278 = pneg %p199
      %p279 = scmp.lt.s32.totalorder %s19, 1
      %s280 = scalar_select %p279, %s19, 1
      %s281 = smul.addr %s280, 2
      %s282 = scalar_lea.vmem %s7, %s281
      %p283 = scmp.lt.s32.totalorder %s19, 1
      %s284 = scalar_select %p283, %s19, 1
      %s285 = smul.addr %s284, 32
      %s286 = smul.addr %s285, 8
      %s287 = scalar_lea.vmem %s0, %s286
      %p288 = scmp.lt.s32.totalorder %s19, 1
      %s289 = scalar_select %p288, %s19, 1
      %s290 = smul.addr %s289, 32
      %s291 = smul.addr %s290, 8
      %s292 = scalar_lea.vmem %s5, %s291
      %p293 = scmp.lt.s32.totalorder %s19, 1
      %s294 = scalar_select %p293, %s19, 1
      %s295 = smul.addr %s294, 32
      %s296 = smul.addr %s295, 8
      %s297 = scalar_lea.vmem %s6, %s296
      %p298 = scmp.lt.s32.totalorder %s19, 1
      %s299 = scalar_select %p298, %s19, 1
      %s300 = smul.addr %s299, 2
      %s301 = scalar_lea.vmem %s7, %s300
      %v305 = vld [vmem:[%s287] sm:$0xff]
      %v306 = vld [vmem:[%s287 + $0x8] sm:$0xff]
      %v307 = vld [vmem:[%s287 + $0x10] sm:$0xff]
      %v308 = vld [vmem:[%s287 + $0x18] sm:$0xff]
      %v309 = vld [vmem:[%s287 + $0x20] sm:$0xff]
      %v310 = vld [vmem:[%s287 + $0x28] sm:$0xff]
      %v311 = vld [vmem:[%s287 + $0x30] sm:$0xff]
      %v312 = vld [vmem:[%s287 + $0x38] sm:$0xff]
      %v313 = vld [vmem:[%s287 + $0x40] sm:$0xff]
      %v314 = vld [vmem:[%s287 + $0x48] sm:$0xff]
      %v315 = vld [vmem:[%s287 + $0x50] sm:$0xff]
      %v316 = vld [vmem:[%s287 + $0x58] sm:$0xff]
      %v317 = vld [vmem:[%s287 + $0x60] sm:$0xff]
      %v318 = vld [vmem:[%s287 + $0x68] sm:$0xff]
      %v319 = vld [vmem:[%s287 + $0x70] sm:$0xff]
      %v320 = vld [vmem:[%s287 + $0x78] sm:$0xff]
      %v321 = vld [vmem:[%s287 + $0x80] sm:$0xff]
      %v322 = vld [vmem:[%s287 + $0x88] sm:$0xff]
      %v323 = vld [vmem:[%s287 + $0x90] sm:$0xff]
      %v324 = vld [vmem:[%s287 + $0x98] sm:$0xff]
      %v325 = vld [vmem:[%s287 + $0xa0] sm:$0xff]
      %v326 = vld [vmem:[%s287 + $0xa8] sm:$0xff]
      %v327 = vld [vmem:[%s287 + $0xb0] sm:$0xff]
      %v328 = vld [vmem:[%s287 + $0xb8] sm:$0xff]
      %v329 = vld [vmem:[%s287 + $0xc0] sm:$0xff]
      %v330 = vld [vmem:[%s287 + $0xc8] sm:$0xff]
      %v331 = vld [vmem:[%s287 + $0xd0] sm:$0xff]
      %v332 = vld [vmem:[%s287 + $0xd8] sm:$0xff]
      %v333 = vld [vmem:[%s287 + $0xe0] sm:$0xff]
      %v334 = vld [vmem:[%s287 + $0xe8] sm:$0xff]
      %v335 = vld [vmem:[%s287 + $0xf0] sm:$0xff]
      %v336 = vld [vmem:[%s287 + $0xf8] sm:$0xff]
      %v337 = vlaneseq
      %v338 = vshrl.u32 %v337, 7
      %v339 = vadd.s32 %v338, 8
      %v340 = vadd.s32 %v338, 16
      %v341 = vadd.s32 %v338, 24
      %v342 = vadd.s32 %v338, 32
      %v343 = vadd.s32 %v338, 40
      %v344 = vadd.s32 %v338, 48
      %v345 = vadd.s32 %v338, 56
      %v346 = vadd.s32 %v338, 64
      %v347 = vadd.s32 %v338, 72
      %v348 = vadd.s32 %v338, 80
      %v349 = vadd.s32 %v338, 88
      %v350 = vadd.s32 %v338, 96
      %v351 = vadd.s32 %v338, 104
      %v352 = vadd.s32 %v338, 112
      %v353 = vadd.s32 %v338, 120
      %v354 = vadd.s32 %v338, 128
      %v355 = vadd.s32 %v338, 136
      %v356 = vadd.s32 %v338, 144
      %v357 = vadd.s32 %v338, 152
      %v358 = vadd.s32 %v338, 160
      %v359 = vadd.s32 %v338, 168
      %v360 = vadd.s32 %v338, 176
      %v361 = vadd.s32 %v338, 184
      %v362 = vadd.s32 %v338, 192
      %v363 = vadd.s32 %v338, 200
      %v364 = vadd.s32 %v338, 208
      %v365 = vadd.s32 %v338, 216
      %v366 = vadd.s32 %v338, 224
      %v367 = vadd.s32 %v338, 232
      %v368 = vadd.s32 %v338, 240
      %v369 = vadd.s32 %v338, 248
      %vm370 = vcmp.lt.s32.totalorder %v338, 0
      %v371 = vsub.s32 0, %v338
      %v372 = vsel %vm370, %v371, %v338
      %v373 = vshrl.u32 %v372, 4
      %v374 = vand.u32 %v372, 15
      %v375 = vsub.s32 0, %v374
      %v376 = vsel %vm370, %v375, %v374
      %vm377 = vcmp.lt.s32.totalorder %v339, 0
      %v378 = vsub.s32 0, %v339
      %v379 = vsel %vm377, %v378, %v339
      %v380 = vshrl.u32 %v379, 4
      %v381 = vand.u32 %v379, 15
      %v382 = vsub.s32 0, %v381
      %v383 = vsel %vm377, %v382, %v381
      %vm384 = vcmp.lt.s32.totalorder %v340, 0
      %v385 = vsub.s32 0, %v340
      %v386 = vsel %vm384, %v385, %v340
      %v387 = vshrl.u32 %v386, 4
      %v388 = vand.u32 %v386, 15
      %v389 = vsub.s32 0, %v388
      %v390 = vsel %vm384, %v389, %v388
      %vm391 = vcmp.lt.s32.totalorder %v341, 0
      %v392 = vsub.s32 0, %v341
      %v393 = vsel %vm391, %v392, %v341
      %v394 = vshrl.u32 %v393, 4
      %v395 = vand.u32 %v393, 15
      %v396 = vsub.s32 0, %v395
      %v397 = vsel %vm391, %v396, %v395
      %vm398 = vcmp.lt.s32.totalorder %v342, 0
      %v399 = vsub.s32 0, %v342
      %v400 = vsel %vm398, %v399, %v342
      %v401 = vshrl.u32 %v400, 4
      %v402 = vand.u32 %v400, 15
      %v403 = vsub.s32 0, %v402
      %v404 = vsel %vm398, %v403, %v402
      %vm405 = vcmp.lt.s32.totalorder %v343, 0
      %v406 = vsub.s32 0, %v343
      %v407 = vsel %vm405, %v406, %v343
      %v408 = vshrl.u32 %v407, 4
      %v409 = vand.u32 %v407, 15
      %v410 = vsub.s32 0, %v409
      %v411 = vsel %vm405, %v410, %v409
      %vm412 = vcmp.lt.s32.totalorder %v344, 0
      %v413 = vsub.s32 0, %v344
      %v414 = vsel %vm412, %v413, %v344
      %v415 = vshrl.u32 %v414, 4
      %v416 = vand.u32 %v414, 15
      %v417 = vsub.s32 0, %v416
      %v418 = vsel %vm412, %v417, %v416
      %vm419 = vcmp.lt.s32.totalorder %v345, 0
      %v420 = vsub.s32 0, %v345
      %v421 = vsel %vm419, %v420, %v345
      %v422 = vshrl.u32 %v421, 4
      %v423 = vand.u32 %v421, 15
      %v424 = vsub.s32 0, %v423
      %v425 = vsel %vm419, %v424, %v423
      %vm426 = vcmp.lt.s32.totalorder %v346, 0
      %v427 = vsub.s32 0, %v346
      %v428 = vsel %vm426, %v427, %v346
      %v429 = vshrl.u32 %v428, 4
      %v430 = vand.u32 %v428, 15
      %v431 = vsub.s32 0, %v430
      %v432 = vsel %vm426, %v431, %v430
      %vm433 = vcmp.lt.s32.totalorder %v347, 0
      %v434 = vsub.s32 0, %v347
      %v435 = vsel %vm433, %v434, %v347
      %v436 = vshrl.u32 %v435, 4
      %v437 = vand.u32 %v435, 15
      %v438 = vsub.s32 0, %v437
      %v439 = vsel %vm433, %v438, %v437
      %vm440 = vcmp.lt.s32.totalorder %v348, 0
      %v441 = vsub.s32 0, %v348
      %v442 = vsel %vm440, %v441, %v348
      %v443 = vshrl.u32 %v442, 4
      %v444 = vand.u32 %v442, 15
      %v445 = vsub.s32 0, %v444
      %v446 = vsel %vm440, %v445, %v444
      %vm447 = vcmp.lt.s32.totalorder %v349, 0
      %v448 = vsub.s32 0, %v349
      %v449 = vsel %vm447, %v448, %v349
      %v450 = vshrl.u32 %v449, 4
      %v451 = vand.u32 %v449, 15
      %v452 = vsub.s32 0, %v451
      %v453 = vsel %vm447, %v452, %v451
      %vm454 = vcmp.lt.s32.totalorder %v350, 0
      %v455 = vsub.s32 0, %v350
      %v456 = vsel %vm454, %v455, %v350
      %v457 = vshrl.u32 %v456, 4
      %v458 = vand.u32 %v456, 15
      %v459 = vsub.s32 0, %v458
      %v460 = vsel %vm454, %v459, %v458
      %vm461 = vcmp.lt.s32.totalorder %v351, 0
      %v462 = vsub.s32 0, %v351
      %v463 = vsel %vm461, %v462, %v351
      %v464 = vshrl.u32 %v463, 4
      %v465 = vand.u32 %v463, 15
      %v466 = vsub.s32 0, %v465
      %v467 = vsel %vm461, %v466, %v465
      %vm468 = vcmp.lt.s32.totalorder %v352, 0
      %v469 = vsub.s32 0, %v352
      %v470 = vsel %vm468, %v469, %v352
      %v471 = vshrl.u32 %v470, 4
      %v472 = vand.u32 %v470, 15
      %v473 = vsub.s32 0, %v472
      %v474 = vsel %vm468, %v473, %v472
      %vm475 = vcmp.lt.s32.totalorder %v353, 0
      %v476 = vsub.s32 0, %v353
      %v477 = vsel %vm475, %v476, %v353
      %v478 = vshrl.u32 %v477, 4
      %v479 = vand.u32 %v477, 15
      %v480 = vsub.s32 0, %v479
      %v481 = vsel %vm475, %v480, %v479
      %vm482 = vcmp.lt.s32.totalorder %v354, 0
      %v483 = vsub.s32 0, %v354
      %v484 = vsel %vm482, %v483, %v354
      %v485 = vshrl.u32 %v484, 4
      %v486 = vand.u32 %v484, 15
      %v487 = vsub.s32 0, %v486
      %v488 = vsel %vm482, %v487, %v486
      %vm489 = vcmp.lt.s32.totalorder %v355, 0
      %v490 = vsub.s32 0, %v355
      %v491 = vsel %vm489, %v490, %v355
      %v492 = vshrl.u32 %v491, 4
      %v493 = vand.u32 %v491, 15
      %v494 = vsub.s32 0, %v493
      %v495 = vsel %vm489, %v494, %v493
      %vm496 = vcmp.lt.s32.totalorder %v356, 0
      %v497 = vsub.s32 0, %v356
      %v498 = vsel %vm496, %v497, %v356
      %v499 = vshrl.u32 %v498, 4
      %v500 = vand.u32 %v498, 15
      %v501 = vsub.s32 0, %v500
      %v502 = vsel %vm496, %v501, %v500
      %vm503 = vcmp.lt.s32.totalorder %v357, 0
      %v504 = vsub.s32 0, %v357
      %v505 = vsel %vm503, %v504, %v357
      %v506 = vshrl.u32 %v505, 4
      %v507 = vand.u32 %v505, 15
      %v508 = vsub.s32 0, %v507
      %v509 = vsel %vm503, %v508, %v507
      %vm510 = vcmp.lt.s32.totalorder %v358, 0
      %v511 = vsub.s32 0, %v358
      %v512 = vsel %vm510, %v511, %v358
      %v513 = vshrl.u32 %v512, 4
      %v514 = vand.u32 %v512, 15
      %v515 = vsub.s32 0, %v514
      %v516 = vsel %vm510, %v515, %v514
      %vm517 = vcmp.lt.s32.totalorder %v359, 0
      %v518 = vsub.s32 0, %v359
      %v519 = vsel %vm517, %v518, %v359
      %v520 = vshrl.u32 %v519, 4
      %v521 = vand.u32 %v519, 15
      %v522 = vsub.s32 0, %v521
      %v523 = vsel %vm517, %v522, %v521
      %vm524 = vcmp.lt.s32.totalorder %v360, 0
      %v525 = vsub.s32 0, %v360
      %v526 = vsel %vm524, %v525, %v360
      %v527 = vshrl.u32 %v526, 4
      %v528 = vand.u32 %v526, 15
      %v529 = vsub.s32 0, %v528
      %v530 = vsel %vm524, %v529, %v528
      %vm531 = vcmp.lt.s32.totalorder %v361, 0
      %v532 = vsub.s32 0, %v361
      %v533 = vsel %vm531, %v532, %v361
      %v534 = vshrl.u32 %v533, 4
      %v535 = vand.u32 %v533, 15
      %v536 = vsub.s32 0, %v535
      %v537 = vsel %vm531, %v536, %v535
      %vm538 = vcmp.lt.s32.totalorder %v362, 0
      %v539 = vsub.s32 0, %v362
      %v540 = vsel %vm538, %v539, %v362
      %v541 = vshrl.u32 %v540, 4
      %v542 = vand.u32 %v540, 15
      %v543 = vsub.s32 0, %v542
      %v544 = vsel %vm538, %v543, %v542
      %vm545 = vcmp.lt.s32.totalorder %v363, 0
      %v546 = vsub.s32 0, %v363
      %v547 = vsel %vm545, %v546, %v363
      %v548 = vshrl.u32 %v547, 4
      %v549 = vand.u32 %v547, 15
      %v550 = vsub.s32 0, %v549
      %v551 = vsel %vm545, %v550, %v549
      %vm552 = vcmp.lt.s32.totalorder %v364, 0
      %v553 = vsub.s32 0, %v364
      %v554 = vsel %vm552, %v553, %v364
      %v555 = vshrl.u32 %v554, 4
      %v556 = vand.u32 %v554, 15
      %v557 = vsub.s32 0, %v556
      %v558 = vsel %vm552, %v557, %v556
      %vm559 = vcmp.lt.s32.totalorder %v365, 0
      %v560 = vsub.s32 0, %v365
      %v561 = vsel %vm559, %v560, %v365
      %v562 = vshrl.u32 %v561, 4
      %v563 = vand.u32 %v561, 15
      %v564 = vsub.s32 0, %v563
      %v565 = vsel %vm559, %v564, %v563
      %vm566 = vcmp.lt.s32.totalorder %v366, 0
      %v567 = vsub.s32 0, %v366
      %v568 = vsel %vm566, %v567, %v366
      %v569 = vshrl.u32 %v568, 4
      %v570 = vand.u32 %v568, 15
      %v571 = vsub.s32 0, %v570
      %v572 = vsel %vm566, %v571, %v570
      %vm573 = vcmp.lt.s32.totalorder %v367, 0
      %v574 = vsub.s32 0, %v367
      %v575 = vsel %vm573, %v574, %v367
      %v576 = vshrl.u32 %v575, 4
      %v577 = vand.u32 %v575, 15
      %v578 = vsub.s32 0, %v577
      %v579 = vsel %vm573, %v578, %v577
      %vm580 = vcmp.lt.s32.totalorder %v368, 0
      %v581 = vsub.s32 0, %v368
      %v582 = vsel %vm580, %v581, %v368
      %v583 = vshrl.u32 %v582, 4
      %v584 = vand.u32 %v582, 15
      %v585 = vsub.s32 0, %v584
      %v586 = vsel %vm580, %v585, %v584
      %vm587 = vcmp.lt.s32.totalorder %v369, 0
      %v588 = vsub.s32 0, %v369
      %v589 = vsel %vm587, %v588, %v369
      %v590 = vshrl.u32 %v589, 4
      %v591 = vand.u32 %v589, 15
      %v592 = vsub.s32 0, %v591
      %v593 = vsel %vm587, %v592, %v591
      %vm594 = vcmp.ne.s32.totalorder %v376, 0
      %vm595 = vcmp.ne.s32.totalorder %v383, 0
      %vm596 = vcmp.ne.s32.totalorder %v390, 0
      %vm597 = vcmp.ne.s32.totalorder %v397, 0
      %vm598 = vcmp.ne.s32.totalorder %v404, 0
      %vm599 = vcmp.ne.s32.totalorder %v411, 0
      %vm600 = vcmp.ne.s32.totalorder %v418, 0
      %vm601 = vcmp.ne.s32.totalorder %v425, 0
      %vm602 = vcmp.ne.s32.totalorder %v432, 0
      %vm603 = vcmp.ne.s32.totalorder %v439, 0
      %vm604 = vcmp.ne.s32.totalorder %v446, 0
      %vm605 = vcmp.ne.s32.totalorder %v453, 0
      %vm606 = vcmp.ne.s32.totalorder %v460, 0
      %vm607 = vcmp.ne.s32.totalorder %v467, 0
      %vm608 = vcmp.ne.s32.totalorder %v474, 0
      %vm609 = vcmp.ne.s32.totalorder %v481, 0
      %vm610 = vcmp.ne.s32.totalorder %v488, 0
      %vm611 = vcmp.ne.s32.totalorder %v495, 0
      %vm612 = vcmp.ne.s32.totalorder %v502, 0
      %vm613 = vcmp.ne.s32.totalorder %v509, 0
      %vm614 = vcmp.ne.s32.totalorder %v516, 0
      %vm615 = vcmp.ne.s32.totalorder %v523, 0
      %vm616 = vcmp.ne.s32.totalorder %v530, 0
      %vm617 = vcmp.ne.s32.totalorder %v537, 0
      %vm618 = vcmp.ne.s32.totalorder %v544, 0
      %vm619 = vcmp.ne.s32.totalorder %v551, 0
      %vm620 = vcmp.ne.s32.totalorder %v558, 0
      %vm621 = vcmp.ne.s32.totalorder %v565, 0
      %vm622 = vcmp.ne.s32.totalorder %v572, 0
      %vm623 = vcmp.ne.s32.totalorder %v579, 0
      %vm624 = vcmp.ne.s32.totalorder %v586, 0
      %vm625 = vcmp.ne.s32.totalorder %v593, 0
      %vm626 = vcmp.lt.s32.totalorder %v376, 0
      %vm627 = vcmp.lt.s32.totalorder %v383, 0
      %vm628 = vcmp.lt.s32.totalorder %v390, 0
      %vm629 = vcmp.lt.s32.totalorder %v397, 0
      %vm630 = vcmp.lt.s32.totalorder %v404, 0
      %vm631 = vcmp.lt.s32.totalorder %v411, 0
      %vm632 = vcmp.lt.s32.totalorder %v418, 0
      %vm633 = vcmp.lt.s32.totalorder %v425, 0
      %vm634 = vcmp.lt.s32.totalorder %v432, 0
      %vm635 = vcmp.lt.s32.totalorder %v439, 0
      %vm636 = vcmp.lt.s32.totalorder %v446, 0
      %vm637 = vcmp.lt.s32.totalorder %v453, 0
      %vm638 = vcmp.lt.s32.totalorder %v460, 0
      %vm639 = vcmp.lt.s32.totalorder %v467, 0
      %vm640 = vcmp.lt.s32.totalorder %v474, 0
      %vm641 = vcmp.lt.s32.totalorder %v481, 0
      %vm642 = vcmp.lt.s32.totalorder %v488, 0
      %vm643 = vcmp.lt.s32.totalorder %v495, 0
      %vm644 = vcmp.lt.s32.totalorder %v502, 0
      %vm645 = vcmp.lt.s32.totalorder %v509, 0
      %vm646 = vcmp.lt.s32.totalorder %v516, 0
      %vm647 = vcmp.lt.s32.totalorder %v523, 0
      %vm648 = vcmp.lt.s32.totalorder %v530, 0
      %vm649 = vcmp.lt.s32.totalorder %v537, 0
      %vm650 = vcmp.lt.s32.totalorder %v544, 0
      %vm651 = vcmp.lt.s32.totalorder %v551, 0
      %vm652 = vcmp.lt.s32.totalorder %v558, 0
      %vm653 = vcmp.lt.s32.totalorder %v565, 0
      %vm654 = vcmp.lt.s32.totalorder %v572, 0
      %vm655 = vcmp.lt.s32.totalorder %v579, 0
      %vm656 = vcmp.lt.s32.totalorder %v586, 0
      %vm657 = vcmp.lt.s32.totalorder %v593, 0
      %vm658 = vmand %vm626, %vm594
      %vm659 = vmand %vm627, %vm595
      %vm660 = vmand %vm628, %vm596
      %vm661 = vmand %vm629, %vm597
      %vm662 = vmand %vm630, %vm598
      %vm663 = vmand %vm631, %vm599
      %vm664 = vmand %vm632, %vm600
      %vm665 = vmand %vm633, %vm601
      %vm666 = vmand %vm634, %vm602
      %vm667 = vmand %vm635, %vm603
      %vm668 = vmand %vm636, %vm604
      %vm669 = vmand %vm637, %vm605
      %vm670 = vmand %vm638, %vm606
      %vm671 = vmand %vm639, %vm607
      %vm672 = vmand %vm640, %vm608
      %vm673 = vmand %vm641, %vm609
      %vm674 = vmand %vm642, %vm610
      %vm675 = vmand %vm643, %vm611
      %vm676 = vmand %vm644, %vm612
      %vm677 = vmand %vm645, %vm613
      %vm678 = vmand %vm646, %vm614
      %vm679 = vmand %vm647, %vm615
      %vm680 = vmand %vm648, %vm616
      %vm681 = vmand %vm649, %vm617
      %vm682 = vmand %vm650, %vm618
      %vm683 = vmand %vm651, %vm619
      %vm684 = vmand %vm652, %vm620
      %vm685 = vmand %vm653, %vm621
      %vm686 = vmand %vm654, %vm622
      %vm687 = vmand %vm655, %vm623
      %vm688 = vmand %vm656, %vm624
      %vm689 = vmand %vm657, %vm625
      %v690 = vadd.s32 %v376, 16
      %v691 = vadd.s32 %v383, 16
      %v692 = vadd.s32 %v390, 16
      %v693 = vadd.s32 %v397, 16
      %v694 = vadd.s32 %v404, 16
      %v695 = vadd.s32 %v411, 16
      %v696 = vadd.s32 %v418, 16
      %v697 = vadd.s32 %v425, 16
      %v698 = vadd.s32 %v432, 16
      %v699 = vadd.s32 %v439, 16
      %v700 = vadd.s32 %v446, 16
      %v701 = vadd.s32 %v453, 16
      %v702 = vadd.s32 %v460, 16
      %v703 = vadd.s32 %v467, 16
      %v704 = vadd.s32 %v474, 16
      %v705 = vadd.s32 %v481, 16
      %v706 = vadd.s32 %v488, 16
      %v707 = vadd.s32 %v495, 16
      %v708 = vadd.s32 %v502, 16
      %v709 = vadd.s32 %v509, 16
      %v710 = vadd.s32 %v516, 16
      %v711 = vadd.s32 %v523, 16
      %v712 = vadd.s32 %v530, 16
      %v713 = vadd.s32 %v537, 16
      %v714 = vadd.s32 %v544, 16
      %v715 = vadd.s32 %v551, 16
      %v716 = vadd.s32 %v558, 16
      %v717 = vadd.s32 %v565, 16
      %v718 = vadd.s32 %v572, 16
      %v719 = vadd.s32 %v579, 16
      %v720 = vadd.s32 %v586, 16
      %v721 = vadd.s32 %v593, 16
      %v722 = vsel %vm658, %v690, %v376
      %v723 = vsel %vm659, %v691, %v383
      %v724 = vsel %vm660, %v692, %v390
      %v725 = vsel %vm661, %v693, %v397
      %v726 = vsel %vm662, %v694, %v404
      %v727 = vsel %vm663, %v695, %v411
      %v728 = vsel %vm664, %v696, %v418
      %v729 = vsel %vm665, %v697, %v425
      %v730 = vsel %vm666, %v698, %v432
      %v731 = vsel %vm667, %v699, %v439
      %v732 = vsel %vm668, %v700, %v446
      %v733 = vsel %vm669, %v701, %v453
      %v734 = vsel %vm670, %v702, %v460
      %v735 = vsel %vm671, %v703, %v467
      %v736 = vsel %vm672, %v704, %v474
      %v737 = vsel %vm673, %v705, %v481
      %v738 = vsel %vm674, %v706, %v488
      %v739 = vsel %vm675, %v707, %v495
      %v740 = vsel %vm676, %v708, %v502
      %v741 = vsel %vm677, %v709, %v509
      %v742 = vsel %vm678, %v710, %v516
      %v743 = vsel %vm679, %v711, %v523
      %v744 = vsel %vm680, %v712, %v530
      %v745 = vsel %vm681, %v713, %v537
      %v746 = vsel %vm682, %v714, %v544
      %v747 = vsel %vm683, %v715, %v551
      %v748 = vsel %vm684, %v716, %v558
      %v749 = vsel %vm685, %v717, %v565
      %v750 = vsel %vm686, %v718, %v572
      %v751 = vsel %vm687, %v719, %v579
      %v752 = vsel %vm688, %v720, %v586
      %v753 = vsel %vm689, %v721, %v593
      %v754 = vpack.c.bf16 %v306, %v305
      %v755 = vpack.c.bf16 %v308, %v307
      %v756 = vpack.c.bf16 %v310, %v309
      %v757 = vpack.c.bf16 %v312, %v311
      %v758 = vpack.c.bf16 %v314, %v313
      %v759 = vpack.c.bf16 %v316, %v315
      %v760 = vpack.c.bf16 %v318, %v317
      %v761 = vpack.c.bf16 %v320, %v319
      %v762 = vpack.c.bf16 %v322, %v321
      %v763 = vpack.c.bf16 %v324, %v323
      %v764 = vpack.c.bf16 %v326, %v325
      %v765 = vpack.c.bf16 %v328, %v327
      %v766 = vpack.c.bf16 %v330, %v329
      %v767 = vpack.c.bf16 %v332, %v331
      %v768 = vpack.c.bf16 %v334, %v333
      %v769 = vpack.c.bf16 %v336, %v335
      %vm770 = vcmp.ge.s32.totalorder %v722, 1
      %vm771 = vcmp.ge.s32.totalorder %v723, 1
      %vm772 = vcmp.ge.s32.totalorder %v724, 1
      %vm773 = vcmp.ge.s32.totalorder %v725, 1
      %vm774 = vcmp.ge.s32.totalorder %v726, 1
      %vm775 = vcmp.ge.s32.totalorder %v727, 1
      %vm776 = vcmp.ge.s32.totalorder %v728, 1
      %vm777 = vcmp.ge.s32.totalorder %v729, 1
      %vm778 = vcmp.ge.s32.totalorder %v730, 1
      %vm779 = vcmp.ge.s32.totalorder %v731, 1
      %vm780 = vcmp.ge.s32.totalorder %v732, 1
      %vm781 = vcmp.ge.s32.totalorder %v733, 1
      %vm782 = vcmp.ge.s32.totalorder %v734, 1
      %vm783 = vcmp.ge.s32.totalorder %v735, 1
      %vm784 = vcmp.ge.s32.totalorder %v736, 1
      %vm785 = vcmp.ge.s32.totalorder %v737, 1
      %vm786 = vcmp.ge.s32.totalorder %v738, 1
      %vm787 = vcmp.ge.s32.totalorder %v739, 1
      %vm788 = vcmp.ge.s32.totalorder %v740, 1
      %vm789 = vcmp.ge.s32.totalorder %v741, 1
      %vm790 = vcmp.ge.s32.totalorder %v742, 1
      %vm791 = vcmp.ge.s32.totalorder %v743, 1
      %vm792 = vcmp.ge.s32.totalorder %v744, 1
      %vm793 = vcmp.ge.s32.totalorder %v745, 1
      %vm794 = vcmp.ge.s32.totalorder %v746, 1
      %vm795 = vcmp.ge.s32.totalorder %v747, 1
      %vm796 = vcmp.ge.s32.totalorder %v748, 1
      %vm797 = vcmp.ge.s32.totalorder %v749, 1
      %vm798 = vcmp.ge.s32.totalorder %v750, 1
      %vm799 = vcmp.ge.s32.totalorder %v751, 1
      %vm800 = vcmp.ge.s32.totalorder %v752, 1
      %vm801 = vcmp.ge.s32.totalorder %v753, 1
      %vm802 = vsmask.f32 256
      %v804 = vshrl.u32 %v754, 16
      %v806 = vrot.slane %v804, 7
      %v807 = vshll.u32 %v754, 16
      %v809 = vor.u32 %v806, %v807
      %v811 = vshrl.u32 %v755, 16
      %v813 = vrot.slane %v811, 7
      %v814 = vshll.u32 %v755, 16
      %v816 = vor.u32 %v813, %v814
      %v817 = vsel %vm802, %v806, %v816
      %v819 = vshrl.u32 %v756, 16
      %v821 = vrot.slane %v819, 7
      %v822 = vshll.u32 %v756, 16
      %v824 = vor.u32 %v821, %v822
      %v825 = vsel %vm802, %v813, %v824
      %v827 = vshrl.u32 %v757, 16
      %v829 = vrot.slane %v827, 7
      %v830 = vshll.u32 %v757, 16
      %v832 = vor.u32 %v829, %v830
      %v833 = vsel %vm802, %v821, %v832
      %v835 = vshrl.u32 %v758, 16
      %v837 = vrot.slane %v835, 7
      %v838 = vshll.u32 %v758, 16
      %v840 = vor.u32 %v837, %v838
      %v841 = vsel %vm802, %v829, %v840
      %v843 = vshrl.u32 %v759, 16
      %v845 = vrot.slane %v843, 7
      %v846 = vshll.u32 %v759, 16
      %v848 = vor.u32 %v845, %v846
      %v849 = vsel %vm802, %v837, %v848
      %v851 = vshrl.u32 %v760, 16
      %v853 = vrot.slane %v851, 7
      %v854 = vshll.u32 %v760, 16
      %v856 = vor.u32 %v853, %v854
      %v857 = vsel %vm802, %v845, %v856
      %v859 = vshrl.u32 %v761, 16
      %v861 = vrot.slane %v859, 7
      %v862 = vshll.u32 %v761, 16
      %v864 = vor.u32 %v861, %v862
      %v865 = vsel %vm802, %v853, %v864
      %v867 = vshrl.u32 %v762, 16
      %v869 = vrot.slane %v867, 7
      %v870 = vshll.u32 %v762, 16
      %v872 = vor.u32 %v869, %v870
      %v873 = vsel %vm802, %v861, %v872
      %v875 = vshrl.u32 %v763, 16
      %v877 = vrot.slane %v875, 7
      %v878 = vshll.u32 %v763, 16
      %v880 = vor.u32 %v877, %v878
      %v881 = vsel %vm802, %v869, %v880
      %v883 = vshrl.u32 %v764, 16
      %v885 = vrot.slane %v883, 7
      %v886 = vshll.u32 %v764, 16
      %v888 = vor.u32 %v885, %v886
      %v889 = vsel %vm802, %v877, %v888
      %v891 = vshrl.u32 %v765, 16
      %v893 = vrot.slane %v891, 7
      %v894 = vshll.u32 %v765, 16
      %v896 = vor.u32 %v893, %v894
      %v897 = vsel %vm802, %v885, %v896
      %v899 = vshrl.u32 %v766, 16
      %v901 = vrot.slane %v899, 7
      %v902 = vshll.u32 %v766, 16
      %v904 = vor.u32 %v901, %v902
      %v905 = vsel %vm802, %v893, %v904
      %v907 = vshrl.u32 %v767, 16
      %v909 = vrot.slane %v907, 7
      %v910 = vshll.u32 %v767, 16
      %v912 = vor.u32 %v909, %v910
      %v913 = vsel %vm802, %v901, %v912
      %v915 = vshrl.u32 %v768, 16
      %v917 = vrot.slane %v915, 7
      %v918 = vshll.u32 %v768, 16
      %v920 = vor.u32 %v917, %v918
      %v921 = vsel %vm802, %v909, %v920
      %v923 = vshrl.u32 %v769, 16
      %v925 = vrot.slane %v923, 7
      %v926 = vshll.u32 %v769, 16
      %v928 = vor.u32 %v925, %v926
      %v929 = vsel %vm802, %v917, %v928
      %vm946 = vcmask 1040384
      %vm947 = vmand %vm946, %vm802
      %v948 = vsel %vm947, 0, %v809
      %v949 = vsel %vm770, 1, 0
      %v950 = vsel %vm771, 1, 0
      %v951 = vsel %vm772, 1, 0
      %v952 = vsel %vm773, 1, 0
      %v953 = vsel %vm774, 1, 0
      %v954 = vsel %vm775, 1, 0
      %v955 = vsel %vm776, 1, 0
      %v956 = vsel %vm777, 1, 0
      %v957 = vsel %vm778, 1, 0
      %v958 = vsel %vm779, 1, 0
      %v959 = vsel %vm780, 1, 0
      %v960 = vsel %vm781, 1, 0
      %v961 = vsel %vm782, 1, 0
      %v962 = vsel %vm783, 1, 0
      %v963 = vsel %vm784, 1, 0
      %v964 = vsel %vm785, 1, 0
      %v965 = vsel %vm786, 1, 0
      %v966 = vsel %vm787, 1, 0
      %v967 = vsel %vm788, 1, 0
      %v968 = vsel %vm789, 1, 0
      %v969 = vsel %vm790, 1, 0
      %v970 = vsel %vm791, 1, 0
      %v971 = vsel %vm792, 1, 0
      %v972 = vsel %vm793, 1, 0
      %v973 = vsel %vm794, 1, 0
      %v974 = vsel %vm795, 1, 0
      %v975 = vsel %vm796, 1, 0
      %v976 = vsel %vm797, 1, 0
      %v977 = vsel %vm798, 1, 0
      %v978 = vsel %vm799, 1, 0
      %v979 = vsel %vm800, 1, 0
      %v980 = vsel %vm801, 1, 0
      %vm981 = vcmp.eq.s32.totalorder %v949, 1
      %vm982 = vcmp.eq.s32.totalorder %v950, 1
      %vm983 = vcmp.eq.s32.totalorder %v951, 1
      %vm984 = vcmp.eq.s32.totalorder %v952, 1
      %vm985 = vcmp.eq.s32.totalorder %v953, 1
      %vm986 = vcmp.eq.s32.totalorder %v954, 1
      %vm987 = vcmp.eq.s32.totalorder %v955, 1
      %vm988 = vcmp.eq.s32.totalorder %v956, 1
      %vm989 = vcmp.eq.s32.totalorder %v957, 1
      %vm990 = vcmp.eq.s32.totalorder %v958, 1
      %vm991 = vcmp.eq.s32.totalorder %v959, 1
      %vm992 = vcmp.eq.s32.totalorder %v960, 1
      %vm993 = vcmp.eq.s32.totalorder %v961, 1
      %vm994 = vcmp.eq.s32.totalorder %v962, 1
      %vm995 = vcmp.eq.s32.totalorder %v963, 1
      %vm996 = vcmp.eq.s32.totalorder %v964, 1
      %vm997 = vcmp.eq.s32.totalorder %v965, 1
      %vm998 = vcmp.eq.s32.totalorder %v966, 1
      %vm999 = vcmp.eq.s32.totalorder %v967, 1
      %vm1000 = vcmp.eq.s32.totalorder %v968, 1
      %vm1001 = vcmp.eq.s32.totalorder %v969, 1
      %vm1002 = vcmp.eq.s32.totalorder %v970, 1
      %vm1003 = vcmp.eq.s32.totalorder %v971, 1
      %vm1004 = vcmp.eq.s32.totalorder %v972, 1
      %vm1005 = vcmp.eq.s32.totalorder %v973, 1
      %vm1006 = vcmp.eq.s32.totalorder %v974, 1
      %vm1007 = vcmp.eq.s32.totalorder %v975, 1
      %vm1008 = vcmp.eq.s32.totalorder %v976, 1
      %vm1009 = vcmp.eq.s32.totalorder %v977, 1
      %vm1010 = vcmp.eq.s32.totalorder %v978, 1
      %vm1011 = vcmp.eq.s32.totalorder %v979, 1
      %vm1012 = vcmp.eq.s32.totalorder %v980, 1
      %vm1013 = vmpackc.low %vm981, %vm981
      %vm1014 = vmpackc.low %vm982, %vm982
      %vm1015 = vmpackc.low %vm983, %vm983
      %vm1016 = vmpackc.low %vm984, %vm984
      %vm1017 = vmpackc.low %vm985, %vm985
      %vm1018 = vmpackc.low %vm986, %vm986
      %vm1019 = vmpackc.low %vm987, %vm987
      %vm1020 = vmpackc.low %vm988, %vm988
      %vm1021 = vmpackc.low %vm989, %vm989
      %vm1022 = vmpackc.low %vm990, %vm990
      %vm1023 = vmpackc.low %vm991, %vm991
      %vm1024 = vmpackc.low %vm992, %vm992
      %vm1025 = vmpackc.low %vm993, %vm993
      %vm1026 = vmpackc.low %vm994, %vm994
      %vm1027 = vmpackc.low %vm995, %vm995
      %vm1028 = vmpackc.low %vm996, %vm996
      %vm1029 = vmpackc.low %vm997, %vm997
      %vm1030 = vmpackc.low %vm998, %vm998
      %vm1031 = vmpackc.low %vm999, %vm999
      %vm1032 = vmpackc.low %vm1000, %vm1000
      %vm1033 = vmpackc.low %vm1001, %vm1001
      %vm1034 = vmpackc.low %vm1002, %vm1002
      %vm1035 = vmpackc.low %vm1003, %vm1003
      %vm1036 = vmpackc.low %vm1004, %vm1004
      %vm1037 = vmpackc.low %vm1005, %vm1005
      %vm1038 = vmpackc.low %vm1006, %vm1006
      %vm1039 = vmpackc.low %vm1007, %vm1007
      %vm1040 = vmpackc.low %vm1008, %vm1008
      %vm1041 = vmpackc.low %vm1009, %vm1009
      %vm1042 = vmpackc.low %vm1010, %vm1010
      %vm1043 = vmpackc.low %vm1011, %vm1011
      %vm1044 = vmpackc.low %vm1012, %vm1012
      %v1045 = vsel %vm1013, 65537, 0
      %v1046 = vsel %vm1014, 65537, 0
      %v1047 = vsel %vm1015, 65537, 0
      %v1048 = vsel %vm1016, 65537, 0
      %v1049 = vsel %vm1017, 65537, 0
      %v1050 = vsel %vm1018, 65537, 0
      %v1051 = vsel %vm1019, 65537, 0
      %v1052 = vsel %vm1020, 65537, 0
      %v1053 = vsel %vm1021, 65537, 0
      %v1054 = vsel %vm1022, 65537, 0
      %v1055 = vsel %vm1023, 65537, 0
      %v1056 = vsel %vm1024, 65537, 0
      %v1057 = vsel %vm1025, 65537, 0
      %v1058 = vsel %vm1026, 65537, 0
      %v1059 = vsel %vm1027, 65537, 0
      %v1060 = vsel %vm1028, 65537, 0
      %v1061 = vsel %vm1029, 65537, 0
      %v1062 = vsel %vm1030, 65537, 0
      %v1063 = vsel %vm1031, 65537, 0
      %v1064 = vsel %vm1032, 65537, 0
      %v1065 = vsel %vm1033, 65537, 0
      %v1066 = vsel %vm1034, 65537, 0
      %v1067 = vsel %vm1035, 65537, 0
      %v1068 = vsel %vm1036, 65537, 0
      %v1069 = vsel %vm1037, 65537, 0
      %v1070 = vsel %vm1038, 65537, 0
      %v1071 = vsel %vm1039, 65537, 0
      %v1072 = vsel %vm1040, 65537, 0
      %v1073 = vsel %vm1041, 65537, 0
      %v1074 = vsel %vm1042, 65537, 0
      %v1075 = vsel %vm1043, 65537, 0
      %v1076 = vsel %vm1044, 65537, 0
      %v1077 = vunpack.c.l.b16 %v1045
      %v1078 = vunpack.c.l.b16 %v1046
      %v1079 = vunpack.c.l.b16 %v1047
      %v1080 = vunpack.c.l.b16 %v1048
      %v1081 = vunpack.c.l.b16 %v1049
      %v1082 = vunpack.c.l.b16 %v1050
      %v1083 = vunpack.c.l.b16 %v1051
      %v1084 = vunpack.c.l.b16 %v1052
      %v1085 = vunpack.c.l.b16 %v1053
      %v1086 = vunpack.c.l.b16 %v1054
      %v1087 = vunpack.c.l.b16 %v1055
      %v1088 = vunpack.c.l.b16 %v1056
      %v1089 = vunpack.c.l.b16 %v1057
      %v1090 = vunpack.c.l.b16 %v1058
      %v1091 = vunpack.c.l.b16 %v1059
      %v1092 = vunpack.c.l.b16 %v1060
      %v1093 = vunpack.c.l.b16 %v1061
      %v1094 = vunpack.c.l.b16 %v1062
      %v1095 = vunpack.c.l.b16 %v1063
      %v1096 = vunpack.c.l.b16 %v1064
      %v1097 = vunpack.c.l.b16 %v1065
      %v1098 = vunpack.c.l.b16 %v1066
      %v1099 = vunpack.c.l.b16 %v1067
      %v1100 = vunpack.c.l.b16 %v1068
      %v1101 = vunpack.c.l.b16 %v1069
      %v1102 = vunpack.c.l.b16 %v1070
      %v1103 = vunpack.c.l.b16 %v1071
      %v1104 = vunpack.c.l.b16 %v1072
      %v1105 = vunpack.c.l.b16 %v1073
      %v1106 = vunpack.c.l.b16 %v1074
      %v1107 = vunpack.c.l.b16 %v1075
      %v1108 = vunpack.c.l.b16 %v1076
      %v1109 = vpack.c.b16 %v1078, %v1077
      %v1110 = vpack.c.b16 %v1080, %v1079
      %v1111 = vpack.c.b16 %v1082, %v1081
      %v1112 = vpack.c.b16 %v1084, %v1083
      %v1113 = vpack.c.b16 %v1086, %v1085
      %v1114 = vpack.c.b16 %v1088, %v1087
      %v1115 = vpack.c.b16 %v1090, %v1089
      %v1116 = vpack.c.b16 %v1092, %v1091
      %v1117 = vpack.c.b16 %v1094, %v1093
      %v1118 = vpack.c.b16 %v1096, %v1095
      %v1119 = vpack.c.b16 %v1098, %v1097
      %v1120 = vpack.c.b16 %v1100, %v1099
      %v1121 = vpack.c.b16 %v1102, %v1101
      %v1122 = vpack.c.b16 %v1104, %v1103
      %v1123 = vpack.c.b16 %v1106, %v1105
      %v1124 = vpack.c.b16 %v1108, %v1107
      %vm1125 = vcmp.ne.s16.totalorder %v1109, 0
      %vm1126 = vcmp.ne.s16.totalorder %v1110, 0
      %vm1127 = vcmp.ne.s16.totalorder %v1111, 0
      %vm1128 = vcmp.ne.s16.totalorder %v1112, 0
      %vm1129 = vcmp.ne.s16.totalorder %v1113, 0
      %vm1130 = vcmp.ne.s16.totalorder %v1114, 0
      %vm1131 = vcmp.ne.s16.totalorder %v1115, 0
      %vm1132 = vcmp.ne.s16.totalorder %v1116, 0
      %vm1133 = vcmp.ne.s16.totalorder %v1117, 0
      %vm1134 = vcmp.ne.s16.totalorder %v1118, 0
      %vm1135 = vcmp.ne.s16.totalorder %v1119, 0
      %vm1136 = vcmp.ne.s16.totalorder %v1120, 0
      %vm1137 = vcmp.ne.s16.totalorder %v1121, 0
      %vm1138 = vcmp.ne.s16.totalorder %v1122, 0
      %vm1139 = vcmp.ne.s16.totalorder %v1123, 0
      %vm1140 = vcmp.ne.s16.totalorder %v1124, 0
      %v1141 = vsel %vm1125, %v948, 0
      %v1142 = vsel %vm1126, %v817, 0
      %v1143 = vsel %vm1127, %v825, 0
      %v1144 = vsel %vm1128, %v833, 0
      %v1145 = vsel %vm1129, %v841, 0
      %v1146 = vsel %vm1130, %v849, 0
      %v1147 = vsel %vm1131, %v857, 0
      %v1148 = vsel %vm1132, %v865, 0
      %v1149 = vsel %vm1133, %v873, 0
      %v1150 = vsel %vm1134, %v881, 0
      %v1151 = vsel %vm1135, %v889, 0
      %v1152 = vsel %vm1136, %v897, 0
      %v1153 = vsel %vm1137, %v905, 0
      %v1154 = vsel %vm1138, %v913, 0
      %v1155 = vsel %vm1139, %v921, 0
      %v1156 = vsel %vm1140, %v929, 0
      %vm1157 = vcmp.le.s32.totalorder %v722, 14
      %vm1158 = vcmp.le.s32.totalorder %v723, 14
      %vm1159 = vcmp.le.s32.totalorder %v724, 14
      %vm1160 = vcmp.le.s32.totalorder %v725, 14
      %vm1161 = vcmp.le.s32.totalorder %v726, 14
      %vm1162 = vcmp.le.s32.totalorder %v727, 14
      %vm1163 = vcmp.le.s32.totalorder %v728, 14
      %vm1164 = vcmp.le.s32.totalorder %v729, 14
      %vm1165 = vcmp.le.s32.totalorder %v730, 14
      %vm1166 = vcmp.le.s32.totalorder %v731, 14
      %vm1167 = vcmp.le.s32.totalorder %v732, 14
      %vm1168 = vcmp.le.s32.totalorder %v733, 14
      %vm1169 = vcmp.le.s32.totalorder %v734, 14
      %vm1170 = vcmp.le.s32.totalorder %v735, 14
      %vm1171 = vcmp.le.s32.totalorder %v736, 14
      %vm1172 = vcmp.le.s32.totalorder %v737, 14
      %vm1173 = vcmp.le.s32.totalorder %v738, 14
      %vm1174 = vcmp.le.s32.totalorder %v739, 14
      %vm1175 = vcmp.le.s32.totalorder %v740, 14
      %vm1176 = vcmp.le.s32.totalorder %v741, 14
      %vm1177 = vcmp.le.s32.totalorder %v742, 14
      %vm1178 = vcmp.le.s32.totalorder %v743, 14
      %vm1179 = vcmp.le.s32.totalorder %v744, 14
      %vm1180 = vcmp.le.s32.totalorder %v745, 14
      %vm1181 = vcmp.le.s32.totalorder %v746, 14
      %vm1182 = vcmp.le.s32.totalorder %v747, 14
      %vm1183 = vcmp.le.s32.totalorder %v748, 14
      %vm1184 = vcmp.le.s32.totalorder %v749, 14
      %vm1185 = vcmp.le.s32.totalorder %v750, 14
      %vm1186 = vcmp.le.s32.totalorder %v751, 14
      %vm1187 = vcmp.le.s32.totalorder %v752, 14
      %vm1188 = vcmp.le.s32.totalorder %v753, 14
      %vm1189 = vsmask.f32 7424
      %v1190 = vrot.slane %v807, 1
      %v1191 = vor.u32 %v804, %v1190
      %v1192 = vrot.slane %v814, 1
      %v1193 = vsel %vm1189, %v1191, %v1192
      %v1194 = vor.u32 %v811, %v1192
      %v1195 = vrot.slane %v822, 1
      %v1196 = vsel %vm1189, %v1194, %v1195
      %v1197 = vor.u32 %v819, %v1195
      %v1198 = vrot.slane %v830, 1
      %v1199 = vsel %vm1189, %v1197, %v1198
      %v1200 = vor.u32 %v827, %v1198
      %v1201 = vrot.slane %v838, 1
      %v1202 = vsel %vm1189, %v1200, %v1201
      %v1203 = vor.u32 %v835, %v1201
      %v1204 = vrot.slane %v846, 1
      %v1205 = vsel %vm1189, %v1203, %v1204
      %v1206 = vor.u32 %v843, %v1204
      %v1207 = vrot.slane %v854, 1
      %v1208 = vsel %vm1189, %v1206, %v1207
      %v1209 = vor.u32 %v851, %v1207
      %v1210 = vrot.slane %v862, 1
      %v1211 = vsel %vm1189, %v1209, %v1210
      %v1212 = vor.u32 %v859, %v1210
      %v1213 = vrot.slane %v870, 1
      %v1214 = vsel %vm1189, %v1212, %v1213
      %v1215 = vor.u32 %v867, %v1213
      %v1216 = vrot.slane %v878, 1
      %v1217 = vsel %vm1189, %v1215, %v1216
      %v1218 = vor.u32 %v875, %v1216
      %v1219 = vrot.slane %v886, 1
      %v1220 = vsel %vm1189, %v1218, %v1219
      %v1221 = vor.u32 %v883, %v1219
      %v1222 = vrot.slane %v894, 1
      %v1223 = vsel %vm1189, %v1221, %v1222
      %v1224 = vor.u32 %v891, %v1222
      %v1225 = vrot.slane %v902, 1
      %v1226 = vsel %vm1189, %v1224, %v1225
      %v1227 = vor.u32 %v899, %v1225
      %v1228 = vrot.slane %v910, 1
      %v1229 = vsel %vm1189, %v1227, %v1228
      %v1230 = vor.u32 %v907, %v1228
      %v1231 = vrot.slane %v918, 1
      %v1232 = vsel %vm1189, %v1230, %v1231
      %v1233 = vor.u32 %v915, %v1231
      %v1234 = vrot.slane %v926, 1
      %v1235 = vsel %vm1189, %v1233, %v1234
      %v1236 = vor.u32 %v923, %v1234
      %vm1253 = vcmask 1047552
      %vm1254 = vmand %vm1253, %vm1189
      %v1255 = vsel %vm1254, %v1236, 0
      %v1256 = vsel %vm1157, 1, 0
      %v1257 = vsel %vm1158, 1, 0
      %v1258 = vsel %vm1159, 1, 0
      %v1259 = vsel %vm1160, 1, 0
      %v1260 = vsel %vm1161, 1, 0
      %v1261 = vsel %vm1162, 1, 0
      %v1262 = vsel %vm1163, 1, 0
      %v1263 = vsel %vm1164, 1, 0
      %v1264 = vsel %vm1165, 1, 0
      %v1265 = vsel %vm1166, 1, 0
      %v1266 = vsel %vm1167, 1, 0
      %v1267 = vsel %vm1168, 1, 0
      %v1268 = vsel %vm1169, 1, 0
      %v1269 = vsel %vm1170, 1, 0
      %v1270 = vsel %vm1171, 1, 0
      %v1271 = vsel %vm1172, 1, 0
      %v1272 = vsel %vm1173, 1, 0
      %v1273 = vsel %vm1174, 1, 0
      %v1274 = vsel %vm1175, 1, 0
      %v1275 = vsel %vm1176, 1, 0
      %v1276 = vsel %vm1177, 1, 0
      %v1277 = vsel %vm1178, 1, 0
      %v1278 = vsel %vm1179, 1, 0
      %v1279 = vsel %vm1180, 1, 0
      %v1280 = vsel %vm1181, 1, 0
      %v1281 = vsel %vm1182, 1, 0
      %v1282 = vsel %vm1183, 1, 0
      %v1283 = vsel %vm1184, 1, 0
      %v1284 = vsel %vm1185, 1, 0
      %v1285 = vsel %vm1186, 1, 0
      %v1286 = vsel %vm1187, 1, 0
      %v1287 = vsel %vm1188, 1, 0
      %vm1288 = vcmp.eq.s32.totalorder %v1256, 1
      %vm1289 = vcmp.eq.s32.totalorder %v1257, 1
      %vm1290 = vcmp.eq.s32.totalorder %v1258, 1
      %vm1291 = vcmp.eq.s32.totalorder %v1259, 1
      %vm1292 = vcmp.eq.s32.totalorder %v1260, 1
      %vm1293 = vcmp.eq.s32.totalorder %v1261, 1
      %vm1294 = vcmp.eq.s32.totalorder %v1262, 1
      %vm1295 = vcmp.eq.s32.totalorder %v1263, 1
      %vm1296 = vcmp.eq.s32.totalorder %v1264, 1
      %vm1297 = vcmp.eq.s32.totalorder %v1265, 1
      %vm1298 = vcmp.eq.s32.totalorder %v1266, 1
      %vm1299 = vcmp.eq.s32.totalorder %v1267, 1
      %vm1300 = vcmp.eq.s32.totalorder %v1268, 1
      %vm1301 = vcmp.eq.s32.totalorder %v1269, 1
      %vm1302 = vcmp.eq.s32.totalorder %v1270, 1
      %vm1303 = vcmp.eq.s32.totalorder %v1271, 1
      %vm1304 = vcmp.eq.s32.totalorder %v1272, 1
      %vm1305 = vcmp.eq.s32.totalorder %v1273, 1
      %vm1306 = vcmp.eq.s32.totalorder %v1274, 1
      %vm1307 = vcmp.eq.s32.totalorder %v1275, 1
      %vm1308 = vcmp.eq.s32.totalorder %v1276, 1
      %vm1309 = vcmp.eq.s32.totalorder %v1277, 1
      %vm1310 = vcmp.eq.s32.totalorder %v1278, 1
      %vm1311 = vcmp.eq.s32.totalorder %v1279, 1
      %vm1312 = vcmp.eq.s32.totalorder %v1280, 1
      %vm1313 = vcmp.eq.s32.totalorder %v1281, 1
      %vm1314 = vcmp.eq.s32.totalorder %v1282, 1
      %vm1315 = vcmp.eq.s32.totalorder %v1283, 1
      %vm1316 = vcmp.eq.s32.totalorder %v1284, 1
      %vm1317 = vcmp.eq.s32.totalorder %v1285, 1
      %vm1318 = vcmp.eq.s32.totalorder %v1286, 1
      %vm1319 = vcmp.eq.s32.totalorder %v1287, 1
      %vm1320 = vmpackc.low %vm1288, %vm1288
      %vm1321 = vmpackc.low %vm1289, %vm1289
      %vm1322 = vmpackc.low %vm1290, %vm1290
      %vm1323 = vmpackc.low %vm1291, %vm1291
      %vm1324 = vmpackc.low %vm1292, %vm1292
      %vm1325 = vmpackc.low %vm1293, %vm1293
      %vm1326 = vmpackc.low %vm1294, %vm1294
      %vm1327 = vmpackc.low %vm1295, %vm1295
      %vm1328 = vmpackc.low %vm1296, %vm1296
      %vm1329 = vmpackc.low %vm1297, %vm1297
      %vm1330 = vmpackc.low %vm1298, %vm1298
      %vm1331 = vmpackc.low %vm1299, %vm1299
      %vm1332 = vmpackc.low %vm1300, %vm1300
      %vm1333 = vmpackc.low %vm1301, %vm1301
      %vm1334 = vmpackc.low %vm1302, %vm1302
      %vm1335 = vmpackc.low %vm1303, %vm1303
      %vm1336 = vmpackc.low %vm1304, %vm1304
      %vm1337 = vmpackc.low %vm1305, %vm1305
      %vm1338 = vmpackc.low %vm1306, %vm1306
      %vm1339 = vmpackc.low %vm1307, %vm1307
      %vm1340 = vmpackc.low %vm1308, %vm1308
      %vm1341 = vmpackc.low %vm1309, %vm1309
      %vm1342 = vmpackc.low %vm1310, %vm1310
      %vm1343 = vmpackc.low %vm1311, %vm1311
      %vm1344 = vmpackc.low %vm1312, %vm1312
      %vm1345 = vmpackc.low %vm1313, %vm1313
      %vm1346 = vmpackc.low %vm1314, %vm1314
      %vm1347 = vmpackc.low %vm1315, %vm1315
      %vm1348 = vmpackc.low %vm1316, %vm1316
      %vm1349 = vmpackc.low %vm1317, %vm1317
      %vm1350 = vmpackc.low %vm1318, %vm1318
      %vm1351 = vmpackc.low %vm1319, %vm1319
      %v1352 = vsel %vm1320, 65537, 0
      %v1353 = vsel %vm1321, 65537, 0
      %v1354 = vsel %vm1322, 65537, 0
      %v1355 = vsel %vm1323, 65537, 0
      %v1356 = vsel %vm1324, 65537, 0
      %v1357 = vsel %vm1325, 65537, 0
      %v1358 = vsel %vm1326, 65537, 0
      %v1359 = vsel %vm1327, 65537, 0
      %v1360 = vsel %vm1328, 65537, 0
      %v1361 = vsel %vm1329, 65537, 0
      %v1362 = vsel %vm1330, 65537, 0
      %v1363 = vsel %vm1331, 65537, 0
      %v1364 = vsel %vm1332, 65537, 0
      %v1365 = vsel %vm1333, 65537, 0
      %v1366 = vsel %vm1334, 65537, 0
      %v1367 = vsel %vm1335, 65537, 0
      %v1368 = vsel %vm1336, 65537, 0
      %v1369 = vsel %vm1337, 65537, 0
      %v1370 = vsel %vm1338, 65537, 0
      %v1371 = vsel %vm1339, 65537, 0
      %v1372 = vsel %vm1340, 65537, 0
      %v1373 = vsel %vm1341, 65537, 0
      %v1374 = vsel %vm1342, 65537, 0
      %v1375 = vsel %vm1343, 65537, 0
      %v1376 = vsel %vm1344, 65537, 0
      %v1377 = vsel %vm1345, 65537, 0
      %v1378 = vsel %vm1346, 65537, 0
      %v1379 = vsel %vm1347, 65537, 0
      %v1380 = vsel %vm1348, 65537, 0
      %v1381 = vsel %vm1349, 65537, 0
      %v1382 = vsel %vm1350, 65537, 0
      %v1383 = vsel %vm1351, 65537, 0
      %v1384 = vunpack.c.l.b16 %v1352
      %v1385 = vunpack.c.l.b16 %v1353
      %v1386 = vunpack.c.l.b16 %v1354
      %v1387 = vunpack.c.l.b16 %v1355
      %v1388 = vunpack.c.l.b16 %v1356
      %v1389 = vunpack.c.l.b16 %v1357
      %v1390 = vunpack.c.l.b16 %v1358
      %v1391 = vunpack.c.l.b16 %v1359
      %v1392 = vunpack.c.l.b16 %v1360
      %v1393 = vunpack.c.l.b16 %v1361
      %v1394 = vunpack.c.l.b16 %v1362
      %v1395 = vunpack.c.l.b16 %v1363
      %v1396 = vunpack.c.l.b16 %v1364
      %v1397 = vunpack.c.l.b16 %v1365
      %v1398 = vunpack.c.l.b16 %v1366
      %v1399 = vunpack.c.l.b16 %v1367
      %v1400 = vunpack.c.l.b16 %v1368
      %v1401 = vunpack.c.l.b16 %v1369
      %v1402 = vunpack.c.l.b16 %v1370
      %v1403 = vunpack.c.l.b16 %v1371
      %v1404 = vunpack.c.l.b16 %v1372
      %v1405 = vunpack.c.l.b16 %v1373
      %v1406 = vunpack.c.l.b16 %v1374
      %v1407 = vunpack.c.l.b16 %v1375
      %v1408 = vunpack.c.l.b16 %v1376
      %v1409 = vunpack.c.l.b16 %v1377
      %v1410 = vunpack.c.l.b16 %v1378
      %v1411 = vunpack.c.l.b16 %v1379
      %v1412 = vunpack.c.l.b16 %v1380
      %v1413 = vunpack.c.l.b16 %v1381
      %v1414 = vunpack.c.l.b16 %v1382
      %v1415 = vunpack.c.l.b16 %v1383
      %v1416 = vpack.c.b16 %v1385, %v1384
      %v1417 = vpack.c.b16 %v1387, %v1386
      %v1418 = vpack.c.b16 %v1389, %v1388
      %v1419 = vpack.c.b16 %v1391, %v1390
      %v1420 = vpack.c.b16 %v1393, %v1392
      %v1421 = vpack.c.b16 %v1395, %v1394
      %v1422 = vpack.c.b16 %v1397, %v1396
      %v1423 = vpack.c.b16 %v1399, %v1398
      %v1424 = vpack.c.b16 %v1401, %v1400
      %v1425 = vpack.c.b16 %v1403, %v1402
      %v1426 = vpack.c.b16 %v1405, %v1404
      %v1427 = vpack.c.b16 %v1407, %v1406
      %v1428 = vpack.c.b16 %v1409, %v1408
      %v1429 = vpack.c.b16 %v1411, %v1410
      %v1430 = vpack.c.b16 %v1413, %v1412
      %v1431 = vpack.c.b16 %v1415, %v1414
      %vm1432 = vcmp.ne.s16.totalorder %v1416, 0
      %vm1433 = vcmp.ne.s16.totalorder %v1417, 0
      %vm1434 = vcmp.ne.s16.totalorder %v1418, 0
      %vm1435 = vcmp.ne.s16.totalorder %v1419, 0
      %vm1436 = vcmp.ne.s16.totalorder %v1420, 0
      %vm1437 = vcmp.ne.s16.totalorder %v1421, 0
      %vm1438 = vcmp.ne.s16.totalorder %v1422, 0
      %vm1439 = vcmp.ne.s16.totalorder %v1423, 0
      %vm1440 = vcmp.ne.s16.totalorder %v1424, 0
      %vm1441 = vcmp.ne.s16.totalorder %v1425, 0
      %vm1442 = vcmp.ne.s16.totalorder %v1426, 0
      %vm1443 = vcmp.ne.s16.totalorder %v1427, 0
      %vm1444 = vcmp.ne.s16.totalorder %v1428, 0
      %vm1445 = vcmp.ne.s16.totalorder %v1429, 0
      %vm1446 = vcmp.ne.s16.totalorder %v1430, 0
      %vm1447 = vcmp.ne.s16.totalorder %v1431, 0
      %v1448 = vsel %vm1432, %v1193, 0
      %v1449 = vsel %vm1433, %v1196, 0
      %v1450 = vsel %vm1434, %v1199, 0
      %v1451 = vsel %vm1435, %v1202, 0
      %v1452 = vsel %vm1436, %v1205, 0
      %v1453 = vsel %vm1437, %v1208, 0
      %v1454 = vsel %vm1438, %v1211, 0
      %v1455 = vsel %vm1439, %v1214, 0
      %v1456 = vsel %vm1440, %v1217, 0
      %v1457 = vsel %vm1441, %v1220, 0
      %v1458 = vsel %vm1442, %v1223, 0
      %v1459 = vsel %vm1443, %v1226, 0
      %v1460 = vsel %vm1444, %v1229, 0
      %v1461 = vsel %vm1445, %v1232, 0
      %v1462 = vsel %vm1446, %v1235, 0
      %v1463 = vsel %vm1447, %v1255, 0
      %1480 = vrot.lane.b32.xlu0 %v754, 8
      %v1481 = vpop.permute.xlu0 %1480
      %1482 = vrot.lane.b32.xlu0 %v755, 8
      %v1483 = vpop.permute.xlu0 %1482
      %1484 = vrot.lane.b32.xlu0 %v756, 8
      %v1485 = vpop.permute.xlu0 %1484
      %1486 = vrot.lane.b32.xlu0 %v757, 8
      %v1487 = vpop.permute.xlu0 %1486
      %1488 = vrot.lane.b32.xlu0 %v758, 8
      %v1489 = vpop.permute.xlu0 %1488
      %1490 = vrot.lane.b32.xlu0 %v759, 8
      %v1491 = vpop.permute.xlu0 %1490
      %1492 = vrot.lane.b32.xlu0 %v760, 8
      %v1493 = vpop.permute.xlu0 %1492
      %1494 = vrot.lane.b32.xlu0 %v761, 8
      %v1495 = vpop.permute.xlu0 %1494
      %1496 = vrot.lane.b32.xlu0 %v762, 8
      %v1497 = vpop.permute.xlu0 %1496
      %1498 = vrot.lane.b32.xlu0 %v763, 8
      %v1499 = vpop.permute.xlu0 %1498
      %1500 = vrot.lane.b32.xlu0 %v764, 8
      %v1501 = vpop.permute.xlu0 %1500
      %1502 = vrot.lane.b32.xlu0 %v765, 8
      %v1503 = vpop.permute.xlu0 %1502
      %1504 = vrot.lane.b32.xlu0 %v766, 8
      %v1505 = vpop.permute.xlu0 %1504
      %1506 = vrot.lane.b32.xlu0 %v767, 8
      %v1507 = vpop.permute.xlu0 %1506
      %1508 = vrot.lane.b32.xlu0 %v768, 8
      %v1509 = vpop.permute.xlu0 %1508
      %1510 = vrot.lane.b32.xlu0 %v769, 8
      %v1511 = vpop.permute.xlu0 %1510
      %1528 = vrot.lane.b32.xlu0 %v1448, 16
      %v1529 = vpop.permute.xlu0 %1528
      %1530 = vrot.lane.b32.xlu0 %v1449, 16
      %v1531 = vpop.permute.xlu0 %1530
      %1532 = vrot.lane.b32.xlu0 %v1450, 16
      %v1533 = vpop.permute.xlu0 %1532
      %1534 = vrot.lane.b32.xlu0 %v1451, 16
      %v1535 = vpop.permute.xlu0 %1534
      %1536 = vrot.lane.b32.xlu0 %v1452, 16
      %v1537 = vpop.permute.xlu0 %1536
      %1538 = vrot.lane.b32.xlu0 %v1453, 16
      %v1539 = vpop.permute.xlu0 %1538
      %1540 = vrot.lane.b32.xlu0 %v1454, 16
      %v1541 = vpop.permute.xlu0 %1540
      %1542 = vrot.lane.b32.xlu0 %v1455, 16
      %v1543 = vpop.permute.xlu0 %1542
      %1544 = vrot.lane.b32.xlu0 %v1456, 16
      %v1545 = vpop.permute.xlu0 %1544
      %1546 = vrot.lane.b32.xlu0 %v1457, 16
      %v1547 = vpop.permute.xlu0 %1546
      %1548 = vrot.lane.b32.xlu0 %v1458, 16
      %v1549 = vpop.permute.xlu0 %1548
      %1550 = vrot.lane.b32.xlu0 %v1459, 16
      %v1551 = vpop.permute.xlu0 %1550
      %1552 = vrot.lane.b32.xlu0 %v1460, 16
      %v1553 = vpop.permute.xlu0 %1552
      %1554 = vrot.lane.b32.xlu0 %v1461, 16
      %v1555 = vpop.permute.xlu0 %1554
      %1556 = vrot.lane.b32.xlu0 %v1462, 16
      %v1557 = vpop.permute.xlu0 %1556
      %1558 = vrot.lane.b32.xlu0 %v1463, 16
      %v1559 = vpop.permute.xlu0 %1558
      %vm1560 = vcmask 64512
      %v1563 = vsel %vm1560, %v1141, %v1481
      %v1566 = vsel %vm1560, %v1142, %v1483
      %v1569 = vsel %vm1560, %v1143, %v1485
      %v1572 = vsel %vm1560, %v1144, %v1487
      %v1575 = vsel %vm1560, %v1145, %v1489
      %v1578 = vsel %vm1560, %v1146, %v1491
      %v1581 = vsel %vm1560, %v1147, %v1493
      %v1584 = vsel %vm1560, %v1148, %v1495
      %v1587 = vsel %vm1560, %v1149, %v1497
      %v1590 = vsel %vm1560, %v1150, %v1499
      %v1593 = vsel %vm1560, %v1151, %v1501
      %v1596 = vsel %vm1560, %v1152, %v1503
      %v1599 = vsel %vm1560, %v1153, %v1505
      %v1602 = vsel %vm1560, %v1154, %v1507
      %v1605 = vsel %vm1560, %v1155, %v1509
      %v1608 = vsel %vm1560, %v1156, %v1511
      %vm1609 = vcmask 130048
      %v1611 = vsel %vm1609, %v1563, %v1529
      %v1613 = vsel %vm1609, %v1566, %v1531
      %v1615 = vsel %vm1609, %v1569, %v1533
      %v1617 = vsel %vm1609, %v1572, %v1535
      %v1619 = vsel %vm1609, %v1575, %v1537
      %v1621 = vsel %vm1609, %v1578, %v1539
      %v1623 = vsel %vm1609, %v1581, %v1541
      %v1625 = vsel %vm1609, %v1584, %v1543
      %v1627 = vsel %vm1609, %v1587, %v1545
      %v1629 = vsel %vm1609, %v1590, %v1547
      %v1631 = vsel %vm1609, %v1593, %v1549
      %v1633 = vsel %vm1609, %v1596, %v1551
      %v1635 = vsel %vm1609, %v1599, %v1553
      %v1637 = vsel %vm1609, %v1602, %v1555
      %v1639 = vsel %vm1609, %v1605, %v1557
      %v1641 = vsel %vm1609, %v1608, %v1559
      %v1642 = vld [vmem:[%s1] sm:$0xf]
      %v1643 = vld [vmem:[%s1 + $0x4] sm:$0xf]
      %v1644 = vld [vmem:[%s1 + $0x8] sm:$0xf]
      %v1648 = vunpack.c.l.b16 %v1642
      %v1649 = vunpack.c.l.b16 %v1643
      %v1650 = vunpack.c.l.b16 %v1644
      %v1651 = vpack.c.b16 %v1649, %v1648
      %v1652 = vpack.c.b16 %v1650, %v1650
      %vm1654 = vcmask 195584
      %v1655 = vsel %vm1654, %v1611, 0
      %v1657 = vsel %vm1654, %v1613, 0
      %v1659 = vsel %vm1654, %v1615, 0
      %v1661 = vsel %vm1654, %v1617, 0
      %v1663 = vsel %vm1654, %v1619, 0
      %v1665 = vsel %vm1654, %v1621, 0
      %v1667 = vsel %vm1654, %v1623, 0
      %v1669 = vsel %vm1654, %v1625, 0
      %v1671 = vsel %vm1654, %v1627, 0
      %v1673 = vsel %vm1654, %v1629, 0
      %v1675 = vsel %vm1654, %v1631, 0
      %v1677 = vsel %vm1654, %v1633, 0
      %v1679 = vsel %vm1654, %v1635, 0
      %v1681 = vsel %vm1654, %v1637, 0
      %v1683 = vsel %vm1654, %v1639, 0
      %v1685 = vsel %vm1654, %v1641, 0
      %vm1687 = vcmask 1043456
      %v1689 = vsel %vm1687, %v1652, 0
      %1691 = vmatprep.subr.bf16.mxu0 0
      %1692 = vmatpush1.bf16.msra.mxu0 0
      %1693 = vmatprep.subr.bf16.mxu0 0
      %1694 = vmatpush1.bf16.msra.mxu0 0
      %1695 = vmatprep.subr.bf16.mxu0 0
      %1696 = vmatpush1.bf16.msra.mxu0 0
      %1697 = vmatprep.subr.bf16.mxu0 0
      %1698 = vmatpush1.bf16.msra.mxu0 0
      %1699 = vmatprep.subr.bf16.mxu0 0
      %1700 = vmatpush1.bf16.msra.mxu0 0
      %1701 = vmatprep.subr.bf16.mxu0 0
      %1702 = vmatpush1.bf16.msra.mxu0 0
      %1703 = vmatprep.subr.bf16.mxu0 0
      %1704 = vmatpush1.bf16.msra.mxu0 %v1689
      %1705 = vmatprep.subr.bf16.mxu0 0
      %1706 = vmatpush1.bf16.msra.mxu0 %v1651
      %1707 = vmatprep.subr.bf16.mxu0 0
      %1708 = vmatpush2.bf16.msra.mxu0 0
      %1709 = vmatprep.subr.bf16.mxu0 0
      %1710 = vmatpush2.bf16.msra.mxu0 0
      %1711 = vmatprep.subr.bf16.mxu0 0
      %1712 = vmatpush2.bf16.msra.mxu0 0
      %1713 = vmatprep.subr.bf16.mxu0 0
      %1714 = vmatpush2.bf16.msra.mxu0 0
      %1715 = vmatprep.subr.bf16.mxu0 0
      %1716 = vmatpush2.bf16.msra.mxu0 0
      %1717 = vmatprep.subr.bf16.mxu0 0
      %1718 = vmatpush2.bf16.msra.mxu0 0
      %1719 = vmatprep.subr.bf16.mxu0 0
      %1720 = vmatpush2.bf16.msra.mxu0 0
      %1721 = vmatprep.subr.bf16.mxu0 0
      %1722 = vmatpush2.bf16.msra.mxu0 0
      %1723 = vmatprep.mubr.bf16.mxu0 0
      %1724 = vmatmul.mubr.bf16.gmra.mxu0 %v1655
      %v1725 = vpop.f32.mrf.mxu0
      %v1726 = vadd.f32 0.0, %v1725
      %v1727 = vpop.f32.mrf.mxu0
      %v1728 = vpop.f32.mrf.mxu0
      %v1729 = vadd.f32 0.0, %v1728
      %v1730 = vpop.f32.mrf.mxu0
      %1731 = vmatprep.mubr.bf16.mxu0 0
      %1732 = vmatmul.mubr.bf16.gmra.mxu0 %v1657
      %v1733 = vpop.f32.mrf.mxu0
      %v1734 = vadd.f32 0.0, %v1733
      %v1735 = vpop.f32.mrf.mxu0
      %v1736 = vpop.f32.mrf.mxu0
      %v1737 = vadd.f32 0.0, %v1736
      %v1738 = vpop.f32.mrf.mxu0
      %1739 = vmatprep.mubr.bf16.mxu0 0
      %1740 = vmatmul.mubr.bf16.gmra.mxu0 %v1659
      %v1741 = vpop.f32.mrf.mxu0
      %v1742 = vadd.f32 0.0, %v1741
      %v1743 = vpop.f32.mrf.mxu0
      %v1744 = vpop.f32.mrf.mxu0
      %v1745 = vadd.f32 0.0, %v1744
      %v1746 = vpop.f32.mrf.mxu0
      %1747 = vmatprep.mubr.bf16.mxu0 0
      %1748 = vmatmul.mubr.bf16.gmra.mxu0 %v1661
      %v1749 = vpop.f32.mrf.mxu0
      %v1750 = vadd.f32 0.0, %v1749
      %v1751 = vpop.f32.mrf.mxu0
      %v1752 = vpop.f32.mrf.mxu0
      %v1753 = vadd.f32 0.0, %v1752
      %v1754 = vpop.f32.mrf.mxu0
      %1755 = vmatprep.mubr.bf16.mxu0 0
      %1756 = vmatmul.mubr.bf16.gmra.mxu0 %v1663
      %v1757 = vpop.f32.mrf.mxu0
      %v1758 = vadd.f32 0.0, %v1757
      %v1759 = vpop.f32.mrf.mxu0
      %v1760 = vpop.f32.mrf.mxu0
      %v1761 = vadd.f32 0.0, %v1760
      %v1762 = vpop.f32.mrf.mxu0
      %1763 = vmatprep.mubr.bf16.mxu0 0
      %1764 = vmatmul.mubr.bf16.gmra.mxu0 %v1665
      %v1765 = vpop.f32.mrf.mxu0
      %v1766 = vadd.f32 0.0, %v1765
      %v1767 = vpop.f32.mrf.mxu0
      %v1768 = vpop.f32.mrf.mxu0
      %v1769 = vadd.f32 0.0, %v1768
      %v1770 = vpop.f32.mrf.mxu0
      %1771 = vmatprep.mubr.bf16.mxu0 0
      %1772 = vmatmul.mubr.bf16.gmra.mxu0 %v1667
      %v1773 = vpop.f32.mrf.mxu0
      %v1774 = vadd.f32 0.0, %v1773
      %v1775 = vpop.f32.mrf.mxu0
      %v1776 = vpop.f32.mrf.mxu0
      %v1777 = vadd.f32 0.0, %v1776
      %v1778 = vpop.f32.mrf.mxu0
      %1779 = vmatprep.mubr.bf16.mxu0 0
      %1780 = vmatmul.mubr.bf16.gmra.mxu0 %v1669
      %v1781 = vpop.f32.mrf.mxu0
      %v1782 = vadd.f32 0.0, %v1781
      %v1783 = vpop.f32.mrf.mxu0
      %v1784 = vpop.f32.mrf.mxu0
      %v1785 = vadd.f32 0.0, %v1784
      %v1786 = vpop.f32.mrf.mxu0
      %1787 = vmatprep.mubr.bf16.mxu0 0
      %1788 = vmatmul.mubr.bf16.gmra.mxu0 %v1671
      %v1789 = vpop.f32.mrf.mxu0
      %v1790 = vadd.f32 0.0, %v1789
      %v1791 = vpop.f32.mrf.mxu0
      %v1792 = vpop.f32.mrf.mxu0
      %v1793 = vadd.f32 0.0, %v1792
      %v1794 = vpop.f32.mrf.mxu0
      %1795 = vmatprep.mubr.bf16.mxu0 0
      %1796 = vmatmul.mubr.bf16.gmra.mxu0 %v1673
      %v1797 = vpop.f32.mrf.mxu0
      %v1798 = vadd.f32 0.0, %v1797
      %v1799 = vpop.f32.mrf.mxu0
      %v1800 = vpop.f32.mrf.mxu0
      %v1801 = vadd.f32 0.0, %v1800
      %v1802 = vpop.f32.mrf.mxu0
      %1803 = vmatprep.mubr.bf16.mxu0 0
      %1804 = vmatmul.mubr.bf16.gmra.mxu0 %v1675
      %v1805 = vpop.f32.mrf.mxu0
      %v1806 = vadd.f32 0.0, %v1805
      %v1807 = vpop.f32.mrf.mxu0
      %v1808 = vpop.f32.mrf.mxu0
      %v1809 = vadd.f32 0.0, %v1808
      %v1810 = vpop.f32.mrf.mxu0
      %1811 = vmatprep.mubr.bf16.mxu0 0
      %1812 = vmatmul.mubr.bf16.gmra.mxu0 %v1677
      %v1813 = vpop.f32.mrf.mxu0
      %v1814 = vadd.f32 0.0, %v1813
      %v1815 = vpop.f32.mrf.mxu0
      %v1816 = vpop.f32.mrf.mxu0
      %v1817 = vadd.f32 0.0, %v1816
      %v1818 = vpop.f32.mrf.mxu0
      %1819 = vmatprep.mubr.bf16.mxu0 0
      %1820 = vmatmul.mubr.bf16.gmra.mxu0 %v1679
      %v1821 = vpop.f32.mrf.mxu0
      %v1822 = vadd.f32 0.0, %v1821
      %v1823 = vpop.f32.mrf.mxu0
      %v1824 = vpop.f32.mrf.mxu0
      %v1825 = vadd.f32 0.0, %v1824
      %v1826 = vpop.f32.mrf.mxu0
      %1827 = vmatprep.mubr.bf16.mxu0 0
      %1828 = vmatmul.mubr.bf16.gmra.mxu0 %v1681
      %v1829 = vpop.f32.mrf.mxu0
      %v1830 = vadd.f32 0.0, %v1829
      %v1831 = vpop.f32.mrf.mxu0
      %v1832 = vpop.f32.mrf.mxu0
      %v1833 = vadd.f32 0.0, %v1832
      %v1834 = vpop.f32.mrf.mxu0
      %1835 = vmatprep.mubr.bf16.mxu0 0
      %1836 = vmatmul.mubr.bf16.gmra.mxu0 %v1683
      %v1837 = vpop.f32.mrf.mxu0
      %v1838 = vadd.f32 0.0, %v1837
      %v1839 = vpop.f32.mrf.mxu0
      %v1840 = vpop.f32.mrf.mxu0
      %v1841 = vadd.f32 0.0, %v1840
      %v1842 = vpop.f32.mrf.mxu0
      %1843 = vmatprep.mubr.bf16.mxu0 0
      %1844 = vmatmul.mubr.bf16.gmra.mxu0 %v1685
      %v1845 = vpop.f32.mrf.mxu0
      %v1846 = vpop.f32.mrf.mxu0
      %v1847 = vpop.f32.mrf.mxu0
      %v1848 = vpop.f32.mrf.mxu0
      %1849 = vdwg.mxu0
      %s1850 = scalar_lea.vmem %s1, 12
      %v1851 = vld [vmem:[%s1850] sm:$0xf]
      %v1852 = vld [vmem:[%s1850 + $0x4] sm:$0xf]
      %v1853 = vld [vmem:[%s1850 + $0x8] sm:$0xf]
      %s1854 = scalar_lea.vmem %s1, 24
      %v1855 = vld [vmem:[%s1854] sm:$0xf]
      %v1856 = vld [vmem:[%s1854 + $0x4] sm:$0xf]
      %v1857 = vld [vmem:[%s1854 + $0x8] sm:$0xf]
      %v1861 = vunpack.c.l.b16 %v1855
      %v1862 = vunpack.c.l.b16 %v1856
      %v1863 = vunpack.c.l.b16 %v1857
      %v1864 = vpack.c.b16 %v1862, %v1861
      %v1865 = vpack.c.b16 %v1863, %v1863
      %v1868 = vsel %vm1687, %v1865, 0
      %1870 = vmatprep.subr.bf16.mxu0 0
      %1871 = vmatpush1.bf16.msra.mxu0 0
      %1872 = vmatprep.subr.bf16.mxu0 0
      %1873 = vmatpush1.bf16.msra.mxu0 0
      %1874 = vmatprep.subr.bf16.mxu0 0
      %1875 = vmatpush1.bf16.msra.mxu0 0
      %1876 = vmatprep.subr.bf16.mxu0 0
      %1877 = vmatpush1.bf16.msra.mxu0 0
      %1878 = vmatprep.subr.bf16.mxu0 0
      %1879 = vmatpush1.bf16.msra.mxu0 0
      %1880 = vmatprep.subr.bf16.mxu0 0
      %1881 = vmatpush1.bf16.msra.mxu0 0
      %1882 = vmatprep.subr.bf16.mxu0 0
      %1883 = vmatpush1.bf16.msra.mxu0 %v1868
      %1884 = vmatprep.subr.bf16.mxu0 0
      %1885 = vmatpush1.bf16.msra.mxu0 %v1864
      %1886 = vmatprep.subr.bf16.mxu0 0
      %1887 = vmatpush2.bf16.msra.mxu0 0
      %1888 = vmatprep.subr.bf16.mxu0 0
      %1889 = vmatpush2.bf16.msra.mxu0 0
      %1890 = vmatprep.subr.bf16.mxu0 0
      %1891 = vmatpush2.bf16.msra.mxu0 0
      %1892 = vmatprep.subr.bf16.mxu0 0
      %1893 = vmatpush2.bf16.msra.mxu0 0
      %1894 = vmatprep.subr.bf16.mxu0 0
      %1895 = vmatpush2.bf16.msra.mxu0 0
      %1896 = vmatprep.subr.bf16.mxu0 0
      %1897 = vmatpush2.bf16.msra.mxu0 0
      %1898 = vmatprep.subr.bf16.mxu0 0
      %1899 = vmatpush2.bf16.msra.mxu0 0
      %1900 = vmatprep.subr.bf16.mxu0 0
      %1901 = vmatpush2.bf16.msra.mxu0 0
      %1902 = vmatprep.mubr.bf16.mxu0 0
      %1903 = vmatmul.mubr.bf16.gmra.mxu0 %v1655
      %v1904 = vpop.f32.mrf.mxu0
      %v1905 = vpop.f32.mrf.mxu0
      %v1906 = vpop.f32.mrf.mxu0
      %v1907 = vpop.f32.mrf.mxu0
      %1908 = vmatprep.mubr.bf16.mxu0 0
      %1909 = vmatmul.mubr.bf16.gmra.mxu0 %v1657
      %v1910 = vpop.f32.mrf.mxu0
      %v1911 = vadd.f32 0.0, %v1910
      %v1912 = vpop.f32.mrf.mxu0
      %v1913 = vpop.f32.mrf.mxu0
      %v1914 = vadd.f32 0.0, %v1913
      %v1915 = vpop.f32.mrf.mxu0
      %1916 = vmatprep.mubr.bf16.mxu0 0
      %1917 = vmatmul.mubr.bf16.gmra.mxu0 %v1659
      %v1918 = vpop.f32.mrf.mxu0
      %v1919 = vadd.f32 0.0, %v1918
      %v1920 = vpop.f32.mrf.mxu0
      %v1921 = vpop.f32.mrf.mxu0
      %v1922 = vadd.f32 0.0, %v1921
      %v1923 = vpop.f32.mrf.mxu0
      %1924 = vmatprep.mubr.bf16.mxu0 0
      %1925 = vmatmul.mubr.bf16.gmra.mxu0 %v1661
      %v1926 = vpop.f32.mrf.mxu0
      %v1927 = vadd.f32 0.0, %v1926
      %v1928 = vpop.f32.mrf.mxu0
      %v1929 = vpop.f32.mrf.mxu0
      %v1930 = vadd.f32 0.0, %v1929
      %v1931 = vpop.f32.mrf.mxu0
      %1932 = vmatprep.mubr.bf16.mxu0 0
      %1933 = vmatmul.mubr.bf16.gmra.mxu0 %v1663
      %v1934 = vpop.f32.mrf.mxu0
      %v1935 = vadd.f32 0.0, %v1934
      %v1936 = vpop.f32.mrf.mxu0
      %v1937 = vpop.f32.mrf.mxu0
      %v1938 = vadd.f32 0.0, %v1937
      %v1939 = vpop.f32.mrf.mxu0
      %1940 = vmatprep.mubr.bf16.mxu0 0
      %1941 = vmatmul.mubr.bf16.gmra.mxu0 %v1665
      %v1942 = vpop.f32.mrf.mxu0
      %v1943 = vadd.f32 0.0, %v1942
      %v1944 = vpop.f32.mrf.mxu0
      %v1945 = vpop.f32.mrf.mxu0
      %v1946 = vadd.f32 0.0, %v1945
      %v1947 = vpop.f32.mrf.mxu0
      %1948 = vmatprep.mubr.bf16.mxu0 0
      %1949 = vmatmul.mubr.bf16.gmra.mxu0 %v1667
      %v1950 = vpop.f32.mrf.mxu0
      %v1951 = vadd.f32 0.0, %v1950
      %v1952 = vpop.f32.mrf.mxu0
      %v1953 = vpop.f32.mrf.mxu0
      %v1954 = vadd.f32 0.0, %v1953
      %v1955 = vpop.f32.mrf.mxu0
      %1956 = vmatprep.mubr.bf16.mxu0 0
      %1957 = vmatmul.mubr.bf16.gmra.mxu0 %v1669
      %v1958 = vpop.f32.mrf.mxu0
      %v1959 = vadd.f32 0.0, %v1958
      %v1960 = vpop.f32.mrf.mxu0
      %v1961 = vpop.f32.mrf.mxu0
      %v1962 = vadd.f32 0.0, %v1961
      %v1963 = vpop.f32.mrf.mxu0
      %1964 = vmatprep.mubr.bf16.mxu0 0
      %1965 = vmatmul.mubr.bf16.gmra.mxu0 %v1671
      %v1966 = vpop.f32.mrf.mxu0
      %v1967 = vadd.f32 0.0, %v1966
      %v1968 = vpop.f32.mrf.mxu0
      %v1969 = vpop.f32.mrf.mxu0
      %v1970 = vadd.f32 0.0, %v1969
      %v1971 = vpop.f32.mrf.mxu0
      %1972 = vmatprep.mubr.bf16.mxu0 0
      %1973 = vmatmul.mubr.bf16.gmra.mxu0 %v1673
      %v1974 = vpop.f32.mrf.mxu0
      %v1975 = vadd.f32 0.0, %v1974
      %v1976 = vpop.f32.mrf.mxu0
      %v1977 = vpop.f32.mrf.mxu0
      %v1978 = vadd.f32 0.0, %v1977
      %v1979 = vpop.f32.mrf.mxu0
      %1980 = vmatprep.mubr.bf16.mxu0 0
      %1981 = vmatmul.mubr.bf16.gmra.mxu0 %v1675
      %v1982 = vpop.f32.mrf.mxu0
      %v1983 = vadd.f32 0.0, %v1982
      %v1984 = vpop.f32.mrf.mxu0
      %v1985 = vpop.f32.mrf.mxu0
      %v1986 = vadd.f32 0.0, %v1985
      %v1987 = vpop.f32.mrf.mxu0
      %1988 = vmatprep.mubr.bf16.mxu0 0
      %1989 = vmatmul.mubr.bf16.gmra.mxu0 %v1677
      %v1990 = vpop.f32.mrf.mxu0
      %v1991 = vadd.f32 0.0, %v1990
      %v1992 = vpop.f32.mrf.mxu0
      %v1993 = vpop.f32.mrf.mxu0
      %v1994 = vadd.f32 0.0, %v1993
      %v1995 = vpop.f32.mrf.mxu0
      %1996 = vmatprep.mubr.bf16.mxu0 0
      %1997 = vmatmul.mubr.bf16.gmra.mxu0 %v1679
      %v1998 = vpop.f32.mrf.mxu0
      %v1999 = vadd.f32 0.0, %v1998
      %v2000 = vpop.f32.mrf.mxu0
      %v2001 = vpop.f32.mrf.mxu0
      %v2002 = vadd.f32 0.0, %v2001
      %v2003 = vpop.f32.mrf.mxu0
      %2004 = vmatprep.mubr.bf16.mxu0 0
      %2005 = vmatmul.mubr.bf16.gmra.mxu0 %v1681
      %v2006 = vpop.f32.mrf.mxu0
      %v2007 = vadd.f32 0.0, %v2006
      %v2008 = vpop.f32.mrf.mxu0
      %v2009 = vpop.f32.mrf.mxu0
      %v2010 = vadd.f32 0.0, %v2009
      %v2011 = vpop.f32.mrf.mxu0
      %2012 = vmatprep.mubr.bf16.mxu0 0
      %2013 = vmatmul.mubr.bf16.gmra.mxu0 %v1683
      %v2014 = vpop.f32.mrf.mxu0
      %v2015 = vadd.f32 0.0, %v2014
      %v2016 = vpop.f32.mrf.mxu0
      %v2017 = vpop.f32.mrf.mxu0
      %v2018 = vadd.f32 0.0, %v2017
      %v2019 = vpop.f32.mrf.mxu0
      %2020 = vmatprep.mubr.bf16.mxu0 0
      %2021 = vmatmul.mubr.bf16.gmra.mxu0 %v1685
      %v2022 = vpop.f32.mrf.mxu0
      %v2023 = vadd.f32 0.0, %v2022
      %v2024 = vpop.f32.mrf.mxu0
      %v2025 = vpop.f32.mrf.mxu0
      %v2026 = vadd.f32 0.0, %v2025
      %v2027 = vpop.f32.mrf.mxu0
      %2028 = vdwg.mxu0
      %v2032 = vunpack.c.l.b16 %v1851
      %v2033 = vunpack.c.l.b16 %v1852
      %v2034 = vunpack.c.l.b16 %v1853
      %v2035 = vpack.c.b16 %v2033, %v2032
      %v2036 = vpack.c.b16 %v2034, %v2034
      %v2039 = vsel %vm1687, %v2036, 0
      %2041 = vmatprep.subr.bf16.mxu0 0
      %2042 = vmatpush1.bf16.msra.mxu0 0
      %2043 = vmatprep.subr.bf16.mxu0 0
      %2044 = vmatpush1.bf16.msra.mxu0 0
      %2045 = vmatprep.subr.bf16.mxu0 0
      %2046 = vmatpush1.bf16.msra.mxu0 0
      %2047 = vmatprep.subr.bf16.mxu0 0
      %2048 = vmatpush1.bf16.msra.mxu0 0
      %2049 = vmatprep.subr.bf16.mxu0 0
      %2050 = vmatpush1.bf16.msra.mxu0 0
      %2051 = vmatprep.subr.bf16.mxu0 0
      %2052 = vmatpush1.bf16.msra.mxu0 0
      %2053 = vmatprep.subr.bf16.mxu0 0
      %2054 = vmatpush1.bf16.msra.mxu0 %v2039
      %2055 = vmatprep.subr.bf16.mxu0 0
      %2056 = vmatpush1.bf16.msra.mxu0 %v2035
      %2057 = vmatprep.subr.bf16.mxu0 0
      %2058 = vmatpush2.bf16.msra.mxu0 0
      %2059 = vmatprep.subr.bf16.mxu0 0
      %2060 = vmatpush2.bf16.msra.mxu0 0
      %2061 = vmatprep.subr.bf16.mxu0 0
      %2062 = vmatpush2.bf16.msra.mxu0 0
      %2063 = vmatprep.subr.bf16.mxu0 0
      %2064 = vmatpush2.bf16.msra.mxu0 0
      %2065 = vmatprep.subr.bf16.mxu0 0
      %2066 = vmatpush2.bf16.msra.mxu0 0
      %2067 = vmatprep.subr.bf16.mxu0 0
      %2068 = vmatpush2.bf16.msra.mxu0 0
      %2069 = vmatprep.subr.bf16.mxu0 0
      %2070 = vmatpush2.bf16.msra.mxu0 0
      %2071 = vmatprep.subr.bf16.mxu0 0
      %2072 = vmatpush2.bf16.msra.mxu0 0
      %2073 = vmatprep.mubr.bf16.mxu0 0
      %2074 = vmatmul.mubr.bf16.gmra.mxu0 %v1655
      %v2075 = vpop.f32.mrf.mxu0
      %v2076 = vadd.f32 0.0, %v2075
      %v2077 = vpop.f32.mrf.mxu0
      %v2078 = vpop.f32.mrf.mxu0
      %v2079 = vadd.f32 0.0, %v2078
      %v2080 = vpop.f32.mrf.mxu0
      %2081 = vmatprep.mubr.bf16.mxu0 0
      %2082 = vmatmul.mubr.bf16.gmra.mxu0 %v1657
      %v2083 = vpop.f32.mrf.mxu0
      %v2084 = vadd.f32 %v1726, %v2083
      %v2085 = vpop.f32.mrf.mxu0
      %v2086 = vpop.f32.mrf.mxu0
      %v2087 = vadd.f32 %v1729, %v2086
      %v2088 = vpop.f32.mrf.mxu0
      %2089 = vmatprep.mubr.bf16.mxu0 0
      %2090 = vmatmul.mubr.bf16.gmra.mxu0 %v1659
      %v2091 = vpop.f32.mrf.mxu0
      %v2092 = vadd.f32 %v1734, %v2091
      %v2093 = vpop.f32.mrf.mxu0
      %v2094 = vpop.f32.mrf.mxu0
      %v2095 = vadd.f32 %v1737, %v2094
      %v2096 = vpop.f32.mrf.mxu0
      %2097 = vmatprep.mubr.bf16.mxu0 0
      %2098 = vmatmul.mubr.bf16.gmra.mxu0 %v1661
      %v2099 = vpop.f32.mrf.mxu0
      %v2100 = vadd.f32 %v1742, %v2099
      %v2101 = vpop.f32.mrf.mxu0
      %v2102 = vpop.f32.mrf.mxu0
      %v2103 = vadd.f32 %v1745, %v2102
      %v2104 = vpop.f32.mrf.mxu0
      %2105 = vmatprep.mubr.bf16.mxu0 0
      %2106 = vmatmul.mubr.bf16.gmra.mxu0 %v1663
      %v2107 = vpop.f32.mrf.mxu0
      %v2108 = vadd.f32 %v1750, %v2107
      %v2109 = vpop.f32.mrf.mxu0
      %v2110 = vpop.f32.mrf.mxu0
      %v2111 = vadd.f32 %v1753, %v2110
      %v2112 = vpop.f32.mrf.mxu0
      %2113 = vmatprep.mubr.bf16.mxu0 0
      %2114 = vmatmul.mubr.bf16.gmra.mxu0 %v1665
      %v2115 = vpop.f32.mrf.mxu0
      %v2116 = vadd.f32 %v1758, %v2115
      %v2117 = vpop.f32.mrf.mxu0
      %v2118 = vpop.f32.mrf.mxu0
      %v2119 = vadd.f32 %v1761, %v2118
      %v2120 = vpop.f32.mrf.mxu0
      %2121 = vmatprep.mubr.bf16.mxu0 0
      %2122 = vmatmul.mubr.bf16.gmra.mxu0 %v1667
      %v2123 = vpop.f32.mrf.mxu0
      %v2124 = vadd.f32 %v1766, %v2123
      %v2125 = vpop.f32.mrf.mxu0
      %v2126 = vpop.f32.mrf.mxu0
      %v2127 = vadd.f32 %v1769, %v2126
      %v2128 = vpop.f32.mrf.mxu0
      %2129 = vmatprep.mubr.bf16.mxu0 0
      %2130 = vmatmul.mubr.bf16.gmra.mxu0 %v1669
      %v2131 = vpop.f32.mrf.mxu0
      %v2132 = vadd.f32 %v1774, %v2131
      %v2133 = vpop.f32.mrf.mxu0
      %v2134 = vpop.f32.mrf.mxu0
      %v2135 = vadd.f32 %v1777, %v2134
      %v2136 = vpop.f32.mrf.mxu0
      %2137 = vmatprep.mubr.bf16.mxu0 0
      %2138 = vmatmul.mubr.bf16.gmra.mxu0 %v1671
      %v2139 = vpop.f32.mrf.mxu0
      %v2140 = vadd.f32 %v1782, %v2139
      %v2141 = vpop.f32.mrf.mxu0
      %v2142 = vpop.f32.mrf.mxu0
      %v2143 = vadd.f32 %v1785, %v2142
      %v2144 = vpop.f32.mrf.mxu0
      %2145 = vmatprep.mubr.bf16.mxu0 0
      %2146 = vmatmul.mubr.bf16.gmra.mxu0 %v1673
      %v2147 = vpop.f32.mrf.mxu0
      %v2148 = vadd.f32 %v1790, %v2147
      %v2149 = vpop.f32.mrf.mxu0
      %v2150 = vpop.f32.mrf.mxu0
      %v2151 = vadd.f32 %v1793, %v2150
      %v2152 = vpop.f32.mrf.mxu0
      %2153 = vmatprep.mubr.bf16.mxu0 0
      %2154 = vmatmul.mubr.bf16.gmra.mxu0 %v1675
      %v2155 = vpop.f32.mrf.mxu0
      %v2156 = vadd.f32 %v1798, %v2155
      %v2157 = vpop.f32.mrf.mxu0
      %v2158 = vpop.f32.mrf.mxu0
      %v2159 = vadd.f32 %v1801, %v2158
      %v2160 = vpop.f32.mrf.mxu0
      %2161 = vmatprep.mubr.bf16.mxu0 0
      %2162 = vmatmul.mubr.bf16.gmra.mxu0 %v1677
      %v2163 = vpop.f32.mrf.mxu0
      %v2164 = vadd.f32 %v1806, %v2163
      %v2165 = vpop.f32.mrf.mxu0
      %v2166 = vpop.f32.mrf.mxu0
      %v2167 = vadd.f32 %v1809, %v2166
      %v2168 = vpop.f32.mrf.mxu0
      %2169 = vmatprep.mubr.bf16.mxu0 0
      %2170 = vmatmul.mubr.bf16.gmra.mxu0 %v1679
      %v2171 = vpop.f32.mrf.mxu0
      %v2172 = vadd.f32 %v1814, %v2171
      %v2173 = vpop.f32.mrf.mxu0
      %v2174 = vpop.f32.mrf.mxu0
      %v2175 = vadd.f32 %v1817, %v2174
      %v2176 = vpop.f32.mrf.mxu0
      %2177 = vmatprep.mubr.bf16.mxu0 0
      %2178 = vmatmul.mubr.bf16.gmra.mxu0 %v1681
      %v2179 = vpop.f32.mrf.mxu0
      %v2180 = vadd.f32 %v1822, %v2179
      %v2181 = vpop.f32.mrf.mxu0
      %v2182 = vpop.f32.mrf.mxu0
      %v2183 = vadd.f32 %v1825, %v2182
      %v2184 = vpop.f32.mrf.mxu0
      %2185 = vmatprep.mubr.bf16.mxu0 0
      %2186 = vmatmul.mubr.bf16.gmra.mxu0 %v1683
      %v2187 = vpop.f32.mrf.mxu0
      %v2188 = vadd.f32 %v1830, %v2187
      %v2189 = vpop.f32.mrf.mxu0
      %v2190 = vpop.f32.mrf.mxu0
      %v2191 = vadd.f32 %v1833, %v2190
      %v2192 = vpop.f32.mrf.mxu0
      %2193 = vmatprep.mubr.bf16.mxu0 0
      %2194 = vmatmul.mubr.bf16.gmra.mxu0 %v1685
      %v2195 = vpop.f32.mrf.mxu0
      %v2196 = vadd.f32 %v1838, %v2195
      %v2197 = vpop.f32.mrf.mxu0
      %v2198 = vpop.f32.mrf.mxu0
      %v2199 = vadd.f32 %v1841, %v2198
      %v2200 = vpop.f32.mrf.mxu0
      %2201 = vdwg.mxu0
      %v2202 = vadd.f32 %v2076, %v1911
      %v2203 = vadd.f32 %v2079, %v1914
      %v2204 = vadd.f32 %v2084, %v1919
      %v2205 = vadd.f32 %v2087, %v1922
      %v2206 = vadd.f32 %v2092, %v1927
      %v2207 = vadd.f32 %v2095, %v1930
      %v2208 = vadd.f32 %v2100, %v1935
      %v2209 = vadd.f32 %v2103, %v1938
      %v2210 = vadd.f32 %v2108, %v1943
      %v2211 = vadd.f32 %v2111, %v1946
      %v2212 = vadd.f32 %v2116, %v1951
      %v2213 = vadd.f32 %v2119, %v1954
      %v2214 = vadd.f32 %v2124, %v1959
      %v2215 = vadd.f32 %v2127, %v1962
      %v2216 = vadd.f32 %v2132, %v1967
      %v2217 = vadd.f32 %v2135, %v1970
      %v2218 = vadd.f32 %v2140, %v1975
      %v2219 = vadd.f32 %v2143, %v1978
      %v2220 = vadd.f32 %v2148, %v1983
      %v2221 = vadd.f32 %v2151, %v1986
      %v2222 = vadd.f32 %v2156, %v1991
      %v2223 = vadd.f32 %v2159, %v1994
      %v2224 = vadd.f32 %v2164, %v1999
      %v2225 = vadd.f32 %v2167, %v2002
      %v2226 = vadd.f32 %v2172, %v2007
      %v2227 = vadd.f32 %v2175, %v2010
      %v2228 = vadd.f32 %v2180, %v2015
      %v2229 = vadd.f32 %v2183, %v2018
      %v2230 = vadd.f32 %v2188, %v2023
      %v2231 = vadd.f32 %v2191, %v2026
      %v2232 = vadd.f32 %v2196, 0.0
      %v2233 = vadd.f32 %v2199, 0.0
      %v2234 = vld [vmem:[%s2] sm:$0x1]
      %v2236 = vlaneseq
      %v2237 = vshrl.u32 %v2236, 7
      %v2238 = vsub.s32 0, %v2237
      %v2239 = vrot.slane %v2234, %v2238
      %v2241 = vadd.f32 %v2202, %v2239
      %v2242 = vadd.f32 %v2203, %v2239
      %v2243 = vadd.f32 %v2204, %v2239
      %v2244 = vadd.f32 %v2205, %v2239
      %v2245 = vadd.f32 %v2206, %v2239
      %v2246 = vadd.f32 %v2207, %v2239
      %v2247 = vadd.f32 %v2208, %v2239
      %v2248 = vadd.f32 %v2209, %v2239
      %v2249 = vadd.f32 %v2210, %v2239
      %v2250 = vadd.f32 %v2211, %v2239
      %v2251 = vadd.f32 %v2212, %v2239
      %v2252 = vadd.f32 %v2213, %v2239
      %v2253 = vadd.f32 %v2214, %v2239
      %v2254 = vadd.f32 %v2215, %v2239
      %v2255 = vadd.f32 %v2216, %v2239
      %v2256 = vadd.f32 %v2217, %v2239
      %v2257 = vadd.f32 %v2218, %v2239
      %v2258 = vadd.f32 %v2219, %v2239
      %v2259 = vadd.f32 %v2220, %v2239
      %v2260 = vadd.f32 %v2221, %v2239
      %v2261 = vadd.f32 %v2222, %v2239
      %v2262 = vadd.f32 %v2223, %v2239
      %v2263 = vadd.f32 %v2224, %v2239
      %v2264 = vadd.f32 %v2225, %v2239
      %v2265 = vadd.f32 %v2226, %v2239
      %v2266 = vadd.f32 %v2227, %v2239
      %v2267 = vadd.f32 %v2228, %v2239
      %v2268 = vadd.f32 %v2229, %v2239
      %v2269 = vadd.f32 %v2230, %v2239
      %v2270 = vadd.f32 %v2231, %v2239
      %v2271 = vadd.f32 %v2232, %v2239
      %v2272 = vadd.f32 %v2233, %v2239
      %vm2273 = vcmask 261120
      %2274 = vst.msk [vmem:[%s292] sm:$0xff] %vm2273, %v2241
      %2275 = vst.msk [vmem:[%s292 + $0x8] sm:$0xff] %vm2273, %v2242
      %2276 = vst.msk [vmem:[%s292 + $0x10] sm:$0xff] %vm2273, %v2243
      %2277 = vst.msk [vmem:[%s292 + $0x18] sm:$0xff] %vm2273, %v2244
      %2278 = vst.msk [vmem:[%s292 + $0x20] sm:$0xff] %vm2273, %v2245
      %2279 = vst.msk [vmem:[%s292 + $0x28] sm:$0xff] %vm2273, %v2246
      %2280 = vst.msk [vmem:[%s292 + $0x30] sm:$0xff] %vm2273, %v2247
      %2281 = vst.msk [vmem:[%s292 + $0x38] sm:$0xff] %vm2273, %v2248
      %2282 = vst.msk [vmem:[%s292 + $0x40] sm:$0xff] %vm2273, %v2249
      %2283 = vst.msk [vmem:[%s292 + $0x48] sm:$0xff] %vm2273, %v2250
      %2284 = vst.msk [vmem:[%s292 + $0x50] sm:$0xff] %vm2273, %v2251
      %2285 = vst.msk [vmem:[%s292 + $0x58] sm:$0xff] %vm2273, %v2252
      %2286 = vst.msk [vmem:[%s292 + $0x60] sm:$0xff] %vm2273, %v2253
      %2287 = vst.msk [vmem:[%s292 + $0x68] sm:$0xff] %vm2273, %v2254
      %2288 = vst.msk [vmem:[%s292 + $0x70] sm:$0xff] %vm2273, %v2255
      %2289 = vst.msk [vmem:[%s292 + $0x78] sm:$0xff] %vm2273, %v2256
      %2290 = vst.msk [vmem:[%s292 + $0x80] sm:$0xff] %vm2273, %v2257
      %2291 = vst.msk [vmem:[%s292 + $0x88] sm:$0xff] %vm2273, %v2258
      %2292 = vst.msk [vmem:[%s292 + $0x90] sm:$0xff] %vm2273, %v2259
      %2293 = vst.msk [vmem:[%s292 + $0x98] sm:$0xff] %vm2273, %v2260
      %2294 = vst.msk [vmem:[%s292 + $0xa0] sm:$0xff] %vm2273, %v2261
      %2295 = vst.msk [vmem:[%s292 + $0xa8] sm:$0xff] %vm2273, %v2262
      %2296 = vst.msk [vmem:[%s292 + $0xb0] sm:$0xff] %vm2273, %v2263
      %2297 = vst.msk [vmem:[%s292 + $0xb8] sm:$0xff] %vm2273, %v2264
      %2298 = vst.msk [vmem:[%s292 + $0xc0] sm:$0xff] %vm2273, %v2265
      %2299 = vst.msk [vmem:[%s292 + $0xc8] sm:$0xff] %vm2273, %v2266
      %2300 = vst.msk [vmem:[%s292 + $0xd0] sm:$0xff] %vm2273, %v2267
      %2301 = vst.msk [vmem:[%s292 + $0xd8] sm:$0xff] %vm2273, %v2268
      %2302 = vst.msk [vmem:[%s292 + $0xe0] sm:$0xff] %vm2273, %v2269
      %2303 = vst.msk [vmem:[%s292 + $0xe8] sm:$0xff] %vm2273, %v2270
      %2304 = vst.msk [vmem:[%s292 + $0xf0] sm:$0xff] %vm2273, %v2271
      %2305 = vst.msk [vmem:[%s292 + $0xf8] sm:$0xff] %vm2273, %v2272
      %v2306 = vmax.f32 %v2241, 0.0
      %v2307 = vmax.f32 %v2242, 0.0
      %v2308 = vmax.f32 %v2243, 0.0
      %v2309 = vmax.f32 %v2244, 0.0
      %v2310 = vmax.f32 %v2245, 0.0
      %v2311 = vmax.f32 %v2246, 0.0
      %v2312 = vmax.f32 %v2247, 0.0
      %v2313 = vmax.f32 %v2248, 0.0
      %v2314 = vmax.f32 %v2249, 0.0
      %v2315 = vmax.f32 %v2250, 0.0
      %v2316 = vmax.f32 %v2251, 0.0
      %v2317 = vmax.f32 %v2252, 0.0
      %v2318 = vmax.f32 %v2253, 0.0
      %v2319 = vmax.f32 %v2254, 0.0
      %v2320 = vmax.f32 %v2255, 0.0
      %v2321 = vmax.f32 %v2256, 0.0
      %v2322 = vmax.f32 %v2257, 0.0
      %v2323 = vmax.f32 %v2258, 0.0
      %v2324 = vmax.f32 %v2259, 0.0
      %v2325 = vmax.f32 %v2260, 0.0
      %v2326 = vmax.f32 %v2261, 0.0
      %v2327 = vmax.f32 %v2262, 0.0
      %v2328 = vmax.f32 %v2263, 0.0
      %v2329 = vmax.f32 %v2264, 0.0
      %v2330 = vmax.f32 %v2265, 0.0
      %v2331 = vmax.f32 %v2266, 0.0
      %v2332 = vmax.f32 %v2267, 0.0
      %v2333 = vmax.f32 %v2268, 0.0
      %v2334 = vmax.f32 %v2269, 0.0
      %v2335 = vmax.f32 %v2270, 0.0
      %v2336 = vmax.f32 %v2271, 0.0
      %v2337 = vmax.f32 %v2272, 0.0
      %v2338 = vpack.c.bf16 %v2307, %v2306
      %v2339 = vpack.c.bf16 %v2309, %v2308
      %v2340 = vpack.c.bf16 %v2311, %v2310
      %v2341 = vpack.c.bf16 %v2313, %v2312
      %v2342 = vpack.c.bf16 %v2315, %v2314
      %v2343 = vpack.c.bf16 %v2317, %v2316
      %v2344 = vpack.c.bf16 %v2319, %v2318
      %v2345 = vpack.c.bf16 %v2321, %v2320
      %v2346 = vpack.c.bf16 %v2323, %v2322
      %v2347 = vpack.c.bf16 %v2325, %v2324
      %v2348 = vpack.c.bf16 %v2327, %v2326
      %v2349 = vpack.c.bf16 %v2329, %v2328
      %v2350 = vpack.c.bf16 %v2331, %v2330
      %v2351 = vpack.c.bf16 %v2333, %v2332
      %v2352 = vpack.c.bf16 %v2335, %v2334
      %v2353 = vpack.c.bf16 %v2337, %v2336
      %v2355 = vshrl.u32 %v2338, 16
      %v2357 = vrot.slane %v2355, 7
      %v2358 = vshll.u32 %v2338, 16
      %v2360 = vor.u32 %v2357, %v2358
      %v2362 = vshrl.u32 %v2339, 16
      %v2364 = vrot.slane %v2362, 7
      %v2365 = vshll.u32 %v2339, 16
      %v2367 = vor.u32 %v2364, %v2365
      %v2368 = vsel %vm802, %v2357, %v2367
      %v2370 = vshrl.u32 %v2340, 16
      %v2372 = vrot.slane %v2370, 7
      %v2373 = vshll.u32 %v2340, 16
      %v2375 = vor.u32 %v2372, %v2373
      %v2376 = vsel %vm802, %v2364, %v2375
      %v2378 = vshrl.u32 %v2341, 16
      %v2380 = vrot.slane %v2378, 7
      %v2381 = vshll.u32 %v2341, 16
      %v2383 = vor.u32 %v2380, %v2381
      %v2384 = vsel %vm802, %v2372, %v2383
      %v2386 = vshrl.u32 %v2342, 16
      %v2388 = vrot.slane %v2386, 7
      %v2389 = vshll.u32 %v2342, 16
      %v2391 = vor.u32 %v2388, %v2389
      %v2392 = vsel %vm802, %v2380, %v2391
      %v2394 = vshrl.u32 %v2343, 16
      %v2396 = vrot.slane %v2394, 7
      %v2397 = vshll.u32 %v2343, 16
      %v2399 = vor.u32 %v2396, %v2397
      %v2400 = vsel %vm802, %v2388, %v2399
      %v2402 = vshrl.u32 %v2344, 16
      %v2404 = vrot.slane %v2402, 7
      %v2405 = vshll.u32 %v2344, 16
      %v2407 = vor.u32 %v2404, %v2405
      %v2408 = vsel %vm802, %v2396, %v2407
      %v2410 = vshrl.u32 %v2345, 16
      %v2412 = vrot.slane %v2410, 7
      %v2413 = vshll.u32 %v2345, 16
      %v2415 = vor.u32 %v2412, %v2413
      %v2416 = vsel %vm802, %v2404, %v2415
      %v2418 = vshrl.u32 %v2346, 16
      %v2420 = vrot.slane %v2418, 7
      %v2421 = vshll.u32 %v2346, 16
      %v2423 = vor.u32 %v2420, %v2421
      %v2424 = vsel %vm802, %v2412, %v2423
      %v2426 = vshrl.u32 %v2347, 16
      %v2428 = vrot.slane %v2426, 7
      %v2429 = vshll.u32 %v2347, 16
      %v2431 = vor.u32 %v2428, %v2429
      %v2432 = vsel %vm802, %v2420, %v2431
      %v2434 = vshrl.u32 %v2348, 16
      %v2436 = vrot.slane %v2434, 7
      %v2437 = vshll.u32 %v2348, 16
      %v2439 = vor.u32 %v2436, %v2437
      %v2440 = vsel %vm802, %v2428, %v2439
      %v2442 = vshrl.u32 %v2349, 16
      %v2444 = vrot.slane %v2442, 7
      %v2445 = vshll.u32 %v2349, 16
      %v2447 = vor.u32 %v2444, %v2445
      %v2448 = vsel %vm802, %v2436, %v2447
      %v2450 = vshrl.u32 %v2350, 16
      %v2452 = vrot.slane %v2450, 7
      %v2453 = vshll.u32 %v2350, 16
      %v2455 = vor.u32 %v2452, %v2453
      %v2456 = vsel %vm802, %v2444, %v2455
      %v2458 = vshrl.u32 %v2351, 16
      %v2460 = vrot.slane %v2458, 7
      %v2461 = vshll.u32 %v2351, 16
      %v2463 = vor.u32 %v2460, %v2461
      %v2464 = vsel %vm802, %v2452, %v2463
      %v2466 = vshrl.u32 %v2352, 16
      %v2468 = vrot.slane %v2466, 7
      %v2469 = vshll.u32 %v2352, 16
      %v2471 = vor.u32 %v2468, %v2469
      %v2472 = vsel %vm802, %v2460, %v2471
      %v2474 = vshrl.u32 %v2353, 16
      %v2476 = vrot.slane %v2474, 7
      %v2477 = vshll.u32 %v2353, 16
      %v2479 = vor.u32 %v2476, %v2477
      %v2480 = vsel %vm802, %v2468, %v2479
      %v2497 = vsel %vm947, 0, %v2360
      %v2498 = vsel %vm1125, %v2497, 0
      %v2499 = vsel %vm1126, %v2368, 0
      %v2500 = vsel %vm1127, %v2376, 0
      %v2501 = vsel %vm1128, %v2384, 0
      %v2502 = vsel %vm1129, %v2392, 0
      %v2503 = vsel %vm1130, %v2400, 0
      %v2504 = vsel %vm1131, %v2408, 0
      %v2505 = vsel %vm1132, %v2416, 0
      %v2506 = vsel %vm1133, %v2424, 0
      %v2507 = vsel %vm1134, %v2432, 0
      %v2508 = vsel %vm1135, %v2440, 0
      %v2509 = vsel %vm1136, %v2448, 0
      %v2510 = vsel %vm1137, %v2456, 0
      %v2511 = vsel %vm1138, %v2464, 0
      %v2512 = vsel %vm1139, %v2472, 0
      %v2513 = vsel %vm1140, %v2480, 0
      %v2514 = vrot.slane %v2358, 1
      %v2515 = vor.u32 %v2355, %v2514
      %v2516 = vrot.slane %v2365, 1
      %v2517 = vsel %vm1189, %v2515, %v2516
      %v2518 = vor.u32 %v2362, %v2516
      %v2519 = vrot.slane %v2373, 1
      %v2520 = vsel %vm1189, %v2518, %v2519
      %v2521 = vor.u32 %v2370, %v2519
      %v2522 = vrot.slane %v2381, 1
      %v2523 = vsel %vm1189, %v2521, %v2522
      %v2524 = vor.u32 %v2378, %v2522
      %v2525 = vrot.slane %v2389, 1
      %v2526 = vsel %vm1189, %v2524, %v2525
      %v2527 = vor.u32 %v2386, %v2525
      %v2528 = vrot.slane %v2397, 1
      %v2529 = vsel %vm1189, %v2527, %v2528
      %v2530 = vor.u32 %v2394, %v2528
      %v2531 = vrot.slane %v2405, 1
      %v2532 = vsel %vm1189, %v2530, %v2531
      %v2533 = vor.u32 %v2402, %v2531
      %v2534 = vrot.slane %v2413, 1
      %v2535 = vsel %vm1189, %v2533, %v2534
      %v2536 = vor.u32 %v2410, %v2534
      %v2537 = vrot.slane %v2421, 1
      %v2538 = vsel %vm1189, %v2536, %v2537
      %v2539 = vor.u32 %v2418, %v2537
      %v2540 = vrot.slane %v2429, 1
      %v2541 = vsel %vm1189, %v2539, %v2540
      %v2542 = vor.u32 %v2426, %v2540
      %v2543 = vrot.slane %v2437, 1
      %v2544 = vsel %vm1189, %v2542, %v2543
      %v2545 = vor.u32 %v2434, %v2543
      %v2546 = vrot.slane %v2445, 1
      %v2547 = vsel %vm1189, %v2545, %v2546
      %v2548 = vor.u32 %v2442, %v2546
      %v2549 = vrot.slane %v2453, 1
      %v2550 = vsel %vm1189, %v2548, %v2549
      %v2551 = vor.u32 %v2450, %v2549
      %v2552 = vrot.slane %v2461, 1
      %v2553 = vsel %vm1189, %v2551, %v2552
      %v2554 = vor.u32 %v2458, %v2552
      %v2555 = vrot.slane %v2469, 1
      %v2556 = vsel %vm1189, %v2554, %v2555
      %v2557 = vor.u32 %v2466, %v2555
      %v2558 = vrot.slane %v2477, 1
      %v2559 = vsel %vm1189, %v2557, %v2558
      %v2560 = vor.u32 %v2474, %v2558
      %v2577 = vsel %vm1254, %v2560, 0
      %v2578 = vsel %vm1432, %v2517, 0
      %v2579 = vsel %vm1433, %v2520, 0
      %v2580 = vsel %vm1434, %v2523, 0
      %v2581 = vsel %vm1435, %v2526, 0
      %v2582 = vsel %vm1436, %v2529, 0
      %v2583 = vsel %vm1437, %v2532, 0
      %v2584 = vsel %vm1438, %v2535, 0
      %v2585 = vsel %vm1439, %v2538, 0
      %v2586 = vsel %vm1440, %v2541, 0
      %v2587 = vsel %vm1441, %v2544, 0
      %v2588 = vsel %vm1442, %v2547, 0
      %v2589 = vsel %vm1443, %v2550, 0
      %v2590 = vsel %vm1444, %v2553, 0
      %v2591 = vsel %vm1445, %v2556, 0
      %v2592 = vsel %vm1446, %v2559, 0
      %v2593 = vsel %vm1447, %v2577, 0
      %2610 = vrot.lane.b32.xlu0 %v2338, 32
      %v2611 = vpop.permute.xlu0 %2610
      %2612 = vrot.lane.b32.xlu0 %v2339, 32
      %v2613 = vpop.permute.xlu0 %2612
      %2614 = vrot.lane.b32.xlu0 %v2340, 32
      %v2615 = vpop.permute.xlu0 %2614
      %2616 = vrot.lane.b32.xlu0 %v2341, 32
      %v2617 = vpop.permute.xlu0 %2616
      %2618 = vrot.lane.b32.xlu0 %v2342, 32
      %v2619 = vpop.permute.xlu0 %2618
      %2620 = vrot.lane.b32.xlu0 %v2343, 32
      %v2621 = vpop.permute.xlu0 %2620
      %2622 = vrot.lane.b32.xlu0 %v2344, 32
      %v2623 = vpop.permute.xlu0 %2622
      %2624 = vrot.lane.b32.xlu0 %v2345, 32
      %v2625 = vpop.permute.xlu0 %2624
      %2626 = vrot.lane.b32.xlu0 %v2346, 32
      %v2627 = vpop.permute.xlu0 %2626
      %2628 = vrot.lane.b32.xlu0 %v2347, 32
      %v2629 = vpop.permute.xlu0 %2628
      %2630 = vrot.lane.b32.xlu0 %v2348, 32
      %v2631 = vpop.permute.xlu0 %2630
      %2632 = vrot.lane.b32.xlu0 %v2349, 32
      %v2633 = vpop.permute.xlu0 %2632
      %2634 = vrot.lane.b32.xlu0 %v2350, 32
      %v2635 = vpop.permute.xlu0 %2634
      %2636 = vrot.lane.b32.xlu0 %v2351, 32
      %v2637 = vpop.permute.xlu0 %2636
      %2638 = vrot.lane.b32.xlu0 %v2352, 32
      %v2639 = vpop.permute.xlu0 %2638
      %2640 = vrot.lane.b32.xlu0 %v2353, 32
      %v2641 = vpop.permute.xlu0 %2640
      %2658 = vrot.lane.b32.xlu0 %v2578, 64
      %v2659 = vpop.permute.xlu0 %2658
      %2660 = vrot.lane.b32.xlu0 %v2579, 64
      %v2661 = vpop.permute.xlu0 %2660
      %2662 = vrot.lane.b32.xlu0 %v2580, 64
      %v2663 = vpop.permute.xlu0 %2662
      %2664 = vrot.lane.b32.xlu0 %v2581, 64
      %v2665 = vpop.permute.xlu0 %2664
      %2666 = vrot.lane.b32.xlu0 %v2582, 64
      %v2667 = vpop.permute.xlu0 %2666
      %2668 = vrot.lane.b32.xlu0 %v2583, 64
      %v2669 = vpop.permute.xlu0 %2668
      %2670 = vrot.lane.b32.xlu0 %v2584, 64
      %v2671 = vpop.permute.xlu0 %2670
      %2672 = vrot.lane.b32.xlu0 %v2585, 64
      %v2673 = vpop.permute.xlu0 %2672
      %2674 = vrot.lane.b32.xlu0 %v2586, 64
      %v2675 = vpop.permute.xlu0 %2674
      %2676 = vrot.lane.b32.xlu0 %v2587, 64
      %v2677 = vpop.permute.xlu0 %2676
      %2678 = vrot.lane.b32.xlu0 %v2588, 64
      %v2679 = vpop.permute.xlu0 %2678
      %2680 = vrot.lane.b32.xlu0 %v2589, 64
      %v2681 = vpop.permute.xlu0 %2680
      %2682 = vrot.lane.b32.xlu0 %v2590, 64
      %v2683 = vpop.permute.xlu0 %2682
      %2684 = vrot.lane.b32.xlu0 %v2591, 64
      %v2685 = vpop.permute.xlu0 %2684
      %2686 = vrot.lane.b32.xlu0 %v2592, 64
      %v2687 = vpop.permute.xlu0 %2686
      %2688 = vrot.lane.b32.xlu0 %v2593, 64
      %v2689 = vpop.permute.xlu0 %2688
      %v2692 = vsel %vm2273, %v2498, %v2611
      %v2695 = vsel %vm2273, %v2499, %v2613
      %v2698 = vsel %vm2273, %v2500, %v2615
      %v2701 = vsel %vm2273, %v2501, %v2617
      %v2704 = vsel %vm2273, %v2502, %v2619
      %v2707 = vsel %vm2273, %v2503, %v2621
      %v2710 = vsel %vm2273, %v2504, %v2623
      %v2713 = vsel %vm2273, %v2505, %v2625
      %v2716 = vsel %vm2273, %v2506, %v2627
      %v2719 = vsel %vm2273, %v2507, %v2629
      %v2722 = vsel %vm2273, %v2508, %v2631
      %v2725 = vsel %vm2273, %v2509, %v2633
      %v2728 = vsel %vm2273, %v2510, %v2635
      %v2731 = vsel %vm2273, %v2511, %v2637
      %v2734 = vsel %vm2273, %v2512, %v2639
      %v2737 = vsel %vm2273, %v2513, %v2641
      %vm2738 = vcmask 523264
      %v2740 = vsel %vm2738, %v2692, %v2659
      %v2742 = vsel %vm2738, %v2695, %v2661
      %v2744 = vsel %vm2738, %v2698, %v2663
      %v2746 = vsel %vm2738, %v2701, %v2665
      %v2748 = vsel %vm2738, %v2704, %v2667
      %v2750 = vsel %vm2738, %v2707, %v2669
      %v2752 = vsel %vm2738, %v2710, %v2671
      %v2754 = vsel %vm2738, %v2713, %v2673
      %v2756 = vsel %vm2738, %v2716, %v2675
      %v2758 = vsel %vm2738, %v2719, %v2677
      %v2760 = vsel %vm2738, %v2722, %v2679
      %v2762 = vsel %vm2738, %v2725, %v2681
      %v2764 = vsel %vm2738, %v2728, %v2683
      %v2766 = vsel %vm2738, %v2731, %v2685
      %v2768 = vsel %vm2738, %v2734, %v2687
      %v2770 = vsel %vm2738, %v2737, %v2689
      %v2771 = vld [vmem:[%s3] sm:$0xf]
      %v2772 = vld [vmem:[%s3 + $0x4] sm:$0xf]
      %v2773 = vld [vmem:[%s3 + $0x8] sm:$0xf]
      %v2774 = vld [vmem:[%s3 + $0xc] sm:$0xf]
      %v2775 = vld [vmem:[%s3 + $0x10] sm:$0xf]
      %v2776 = vld [vmem:[%s3 + $0x14] sm:$0xf]
      %v2777 = vld [vmem:[%s3 + $0x18] sm:$0xf]
      %v2778 = vld [vmem:[%s3 + $0x1c] sm:$0xf]
      %v2779 = vld [vmem:[%s3 + $0x20] sm:$0xf]
      %v2780 = vld [vmem:[%s3 + $0x24] sm:$0xf]
      %v2781 = vld [vmem:[%s3 + $0x28] sm:$0xf]
      %v2782 = vld [vmem:[%s3 + $0x2c] sm:$0xf]
      %v2795 = vunpack.c.l.b16 %v2771
      %v2796 = vunpack.c.l.b16 %v2772
      %v2797 = vunpack.c.l.b16 %v2773
      %v2798 = vunpack.c.l.b16 %v2774
      %v2799 = vunpack.c.l.b16 %v2775
      %v2800 = vunpack.c.l.b16 %v2776
      %v2801 = vunpack.c.l.b16 %v2777
      %v2802 = vunpack.c.l.b16 %v2778
      %v2803 = vunpack.c.l.b16 %v2779
      %v2804 = vunpack.c.l.b16 %v2780
      %v2805 = vunpack.c.l.b16 %v2781
      %v2806 = vunpack.c.l.b16 %v2782
      %v2807 = vpack.c.b16 %v2796, %v2795
      %v2808 = vpack.c.b16 %v2798, %v2797
      %v2809 = vpack.c.b16 %v2800, %v2799
      %v2810 = vpack.c.b16 %v2802, %v2801
      %v2811 = vpack.c.b16 %v2804, %v2803
      %v2812 = vpack.c.b16 %v2806, %v2805
      %vm2819 = vcmask 785408
      %v2820 = vsel %vm2819, %v2740, 0
      %v2822 = vsel %vm2819, %v2742, 0
      %v2824 = vsel %vm2819, %v2744, 0
      %v2826 = vsel %vm2819, %v2746, 0
      %v2828 = vsel %vm2819, %v2748, 0
      %v2830 = vsel %vm2819, %v2750, 0
      %v2832 = vsel %vm2819, %v2752, 0
      %v2834 = vsel %vm2819, %v2754, 0
      %v2836 = vsel %vm2819, %v2756, 0
      %v2838 = vsel %vm2819, %v2758, 0
      %v2840 = vsel %vm2819, %v2760, 0
      %v2842 = vsel %vm2819, %v2762, 0
      %v2844 = vsel %vm2819, %v2764, 0
      %v2846 = vsel %vm2819, %v2766, 0
      %v2848 = vsel %vm2819, %v2768, 0
      %v2850 = vsel %vm2819, %v2770, 0
      %2852 = vmatprep.subr.bf16.mxu0 0
      %2853 = vmatpush1.bf16.msra.mxu0 0
      %2854 = vmatprep.subr.bf16.mxu0 0
      %2855 = vmatpush1.bf16.msra.mxu0 0
      %2856 = vmatprep.subr.bf16.mxu0 0
      %2857 = vmatpush1.bf16.msra.mxu0 %v2812
      %2858 = vmatprep.subr.bf16.mxu0 0
      %2859 = vmatpush1.bf16.msra.mxu0 %v2811
      %2860 = vmatprep.subr.bf16.mxu0 0
      %2861 = vmatpush1.bf16.msra.mxu0 %v2810
      %2862 = vmatprep.subr.bf16.mxu0 0
      %2863 = vmatpush1.bf16.msra.mxu0 %v2809
      %2864 = vmatprep.subr.bf16.mxu0 0
      %2865 = vmatpush1.bf16.msra.mxu0 %v2808
      %2866 = vmatprep.subr.bf16.mxu0 0
      %2867 = vmatpush1.bf16.msra.mxu0 %v2807
      %2868 = vmatprep.subr.bf16.mxu0 0
      %2869 = vmatpush2.bf16.msra.mxu0 0
      %2870 = vmatprep.subr.bf16.mxu0 0
      %2871 = vmatpush2.bf16.msra.mxu0 0
      %2872 = vmatprep.subr.bf16.mxu0 0
      %2873 = vmatpush2.bf16.msra.mxu0 0
      %2874 = vmatprep.subr.bf16.mxu0 0
      %2875 = vmatpush2.bf16.msra.mxu0 0
      %2876 = vmatprep.subr.bf16.mxu0 0
      %2877 = vmatpush2.bf16.msra.mxu0 0
      %2878 = vmatprep.subr.bf16.mxu0 0
      %2879 = vmatpush2.bf16.msra.mxu0 0
      %2880 = vmatprep.subr.bf16.mxu0 0
      %2881 = vmatpush2.bf16.msra.mxu0 0
      %2882 = vmatprep.subr.bf16.mxu0 0
      %2883 = vmatpush2.bf16.msra.mxu0 0
      %2884 = vmatprep.mubr.bf16.mxu0 0
      %2885 = vmatmul.mubr.bf16.gmra.mxu0 %v2820
      %v2886 = vpop.f32.mrf.mxu0
      %v2887 = vadd.f32 0.0, %v2886
      %v2888 = vpop.f32.mrf.mxu0
      %v2889 = vpop.f32.mrf.mxu0
      %v2890 = vadd.f32 0.0, %v2889
      %v2891 = vpop.f32.mrf.mxu0
      %2892 = vmatprep.mubr.bf16.mxu0 0
      %2893 = vmatmul.mubr.bf16.gmra.mxu0 %v2822
      %v2894 = vpop.f32.mrf.mxu0
      %v2895 = vadd.f32 0.0, %v2894
      %v2896 = vpop.f32.mrf.mxu0
      %v2897 = vpop.f32.mrf.mxu0
      %v2898 = vadd.f32 0.0, %v2897
      %v2899 = vpop.f32.mrf.mxu0
      %2900 = vmatprep.mubr.bf16.mxu0 0
      %2901 = vmatmul.mubr.bf16.gmra.mxu0 %v2824
      %v2902 = vpop.f32.mrf.mxu0
      %v2903 = vadd.f32 0.0, %v2902
      %v2904 = vpop.f32.mrf.mxu0
      %v2905 = vpop.f32.mrf.mxu0
      %v2906 = vadd.f32 0.0, %v2905
      %v2907 = vpop.f32.mrf.mxu0
      %2908 = vmatprep.mubr.bf16.mxu0 0
      %2909 = vmatmul.mubr.bf16.gmra.mxu0 %v2826
      %v2910 = vpop.f32.mrf.mxu0
      %v2911 = vadd.f32 0.0, %v2910
      %v2912 = vpop.f32.mrf.mxu0
      %v2913 = vpop.f32.mrf.mxu0
      %v2914 = vadd.f32 0.0, %v2913
      %v2915 = vpop.f32.mrf.mxu0
      %2916 = vmatprep.mubr.bf16.mxu0 0
      %2917 = vmatmul.mubr.bf16.gmra.mxu0 %v2828
      %v2918 = vpop.f32.mrf.mxu0
      %v2919 = vadd.f32 0.0, %v2918
      %v2920 = vpop.f32.mrf.mxu0
      %v2921 = vpop.f32.mrf.mxu0
      %v2922 = vadd.f32 0.0, %v2921
      %v2923 = vpop.f32.mrf.mxu0
      %2924 = vmatprep.mubr.bf16.mxu0 0
      %2925 = vmatmul.mubr.bf16.gmra.mxu0 %v2830
      %v2926 = vpop.f32.mrf.mxu0
      %v2927 = vadd.f32 0.0, %v2926
      %v2928 = vpop.f32.mrf.mxu0
      %v2929 = vpop.f32.mrf.mxu0
      %v2930 = vadd.f32 0.0, %v2929
      %v2931 = vpop.f32.mrf.mxu0
      %2932 = vmatprep.mubr.bf16.mxu0 0
      %2933 = vmatmul.mubr.bf16.gmra.mxu0 %v2832
      %v2934 = vpop.f32.mrf.mxu0
      %v2935 = vadd.f32 0.0, %v2934
      %v2936 = vpop.f32.mrf.mxu0
      %v2937 = vpop.f32.mrf.mxu0
      %v2938 = vadd.f32 0.0, %v2937
      %v2939 = vpop.f32.mrf.mxu0
      %2940 = vmatprep.mubr.bf16.mxu0 0
      %2941 = vmatmul.mubr.bf16.gmra.mxu0 %v2834
      %v2942 = vpop.f32.mrf.mxu0
      %v2943 = vadd.f32 0.0, %v2942
      %v2944 = vpop.f32.mrf.mxu0
      %v2945 = vpop.f32.mrf.mxu0
      %v2946 = vadd.f32 0.0, %v2945
      %v2947 = vpop.f32.mrf.mxu0
      %2948 = vmatprep.mubr.bf16.mxu0 0
      %2949 = vmatmul.mubr.bf16.gmra.mxu0 %v2836
      %v2950 = vpop.f32.mrf.mxu0
      %v2951 = vadd.f32 0.0, %v2950
      %v2952 = vpop.f32.mrf.mxu0
      %v2953 = vpop.f32.mrf.mxu0
      %v2954 = vadd.f32 0.0, %v2953
      %v2955 = vpop.f32.mrf.mxu0
      %2956 = vmatprep.mubr.bf16.mxu0 0
      %2957 = vmatmul.mubr.bf16.gmra.mxu0 %v2838
      %v2958 = vpop.f32.mrf.mxu0
      %v2959 = vadd.f32 0.0, %v2958
      %v2960 = vpop.f32.mrf.mxu0
      %v2961 = vpop.f32.mrf.mxu0
      %v2962 = vadd.f32 0.0, %v2961
      %v2963 = vpop.f32.mrf.mxu0
      %2964 = vmatprep.mubr.bf16.mxu0 0
      %2965 = vmatmul.mubr.bf16.gmra.mxu0 %v2840
      %v2966 = vpop.f32.mrf.mxu0
      %v2967 = vadd.f32 0.0, %v2966
      %v2968 = vpop.f32.mrf.mxu0
      %v2969 = vpop.f32.mrf.mxu0
      %v2970 = vadd.f32 0.0, %v2969
      %v2971 = vpop.f32.mrf.mxu0
      %2972 = vmatprep.mubr.bf16.mxu0 0
      %2973 = vmatmul.mubr.bf16.gmra.mxu0 %v2842
      %v2974 = vpop.f32.mrf.mxu0
      %v2975 = vadd.f32 0.0, %v2974
      %v2976 = vpop.f32.mrf.mxu0
      %v2977 = vpop.f32.mrf.mxu0
      %v2978 = vadd.f32 0.0, %v2977
      %v2979 = vpop.f32.mrf.mxu0
      %2980 = vmatprep.mubr.bf16.mxu0 0
      %2981 = vmatmul.mubr.bf16.gmra.mxu0 %v2844
      %v2982 = vpop.f32.mrf.mxu0
      %v2983 = vadd.f32 0.0, %v2982
      %v2984 = vpop.f32.mrf.mxu0
      %v2985 = vpop.f32.mrf.mxu0
      %v2986 = vadd.f32 0.0, %v2985
      %v2987 = vpop.f32.mrf.mxu0
      %2988 = vmatprep.mubr.bf16.mxu0 0
      %2989 = vmatmul.mubr.bf16.gmra.mxu0 %v2846
      %v2990 = vpop.f32.mrf.mxu0
      %v2991 = vadd.f32 0.0, %v2990
      %v2992 = vpop.f32.mrf.mxu0
      %v2993 = vpop.f32.mrf.mxu0
      %v2994 = vadd.f32 0.0, %v2993
      %v2995 = vpop.f32.mrf.mxu0
      %2996 = vmatprep.mubr.bf16.mxu0 0
      %2997 = vmatmul.mubr.bf16.gmra.mxu0 %v2848
      %v2998 = vpop.f32.mrf.mxu0
      %v2999 = vadd.f32 0.0, %v2998
      %v3000 = vpop.f32.mrf.mxu0
      %v3001 = vpop.f32.mrf.mxu0
      %v3002 = vadd.f32 0.0, %v3001
      %v3003 = vpop.f32.mrf.mxu0
      %3004 = vmatprep.mubr.bf16.mxu0 0
      %3005 = vmatmul.mubr.bf16.gmra.mxu0 %v2850
      %v3006 = vpop.f32.mrf.mxu0
      %v3007 = vpop.f32.mrf.mxu0
      %v3008 = vpop.f32.mrf.mxu0
      %v3009 = vpop.f32.mrf.mxu0
      %3010 = vdwg.mxu0
      %s3011 = scalar_lea.vmem %s3, 48
      %v3012 = vld [vmem:[%s3011] sm:$0xf]
      %v3013 = vld [vmem:[%s3011 + $0x4] sm:$0xf]
      %v3014 = vld [vmem:[%s3011 + $0x8] sm:$0xf]
      %v3015 = vld [vmem:[%s3011 + $0xc] sm:$0xf]
      %v3016 = vld [vmem:[%s3011 + $0x10] sm:$0xf]
      %v3017 = vld [vmem:[%s3011 + $0x14] sm:$0xf]
      %v3018 = vld [vmem:[%s3011 + $0x18] sm:$0xf]
      %v3019 = vld [vmem:[%s3011 + $0x1c] sm:$0xf]
      %v3020 = vld [vmem:[%s3011 + $0x20] sm:$0xf]
      %v3021 = vld [vmem:[%s3011 + $0x24] sm:$0xf]
      %v3022 = vld [vmem:[%s3011 + $0x28] sm:$0xf]
      %v3023 = vld [vmem:[%s3011 + $0x2c] sm:$0xf]
      %s3024 = scalar_lea.vmem %s3, 96
      %v3025 = vld [vmem:[%s3024] sm:$0xf]
      %v3026 = vld [vmem:[%s3024 + $0x4] sm:$0xf]
      %v3027 = vld [vmem:[%s3024 + $0x8] sm:$0xf]
      %v3028 = vld [vmem:[%s3024 + $0xc] sm:$0xf]
      %v3029 = vld [vmem:[%s3024 + $0x10] sm:$0xf]
      %v3030 = vld [vmem:[%s3024 + $0x14] sm:$0xf]
      %v3031 = vld [vmem:[%s3024 + $0x18] sm:$0xf]
      %v3032 = vld [vmem:[%s3024 + $0x1c] sm:$0xf]
      %v3033 = vld [vmem:[%s3024 + $0x20] sm:$0xf]
      %v3034 = vld [vmem:[%s3024 + $0x24] sm:$0xf]
      %v3035 = vld [vmem:[%s3024 + $0x28] sm:$0xf]
      %v3036 = vld [vmem:[%s3024 + $0x2c] sm:$0xf]
      %v3049 = vunpack.c.l.b16 %v3025
      %v3050 = vunpack.c.l.b16 %v3026
      %v3051 = vunpack.c.l.b16 %v3027
      %v3052 = vunpack.c.l.b16 %v3028
      %v3053 = vunpack.c.l.b16 %v3029
      %v3054 = vunpack.c.l.b16 %v3030
      %v3055 = vunpack.c.l.b16 %v3031
      %v3056 = vunpack.c.l.b16 %v3032
      %v3057 = vunpack.c.l.b16 %v3033
      %v3058 = vunpack.c.l.b16 %v3034
      %v3059 = vunpack.c.l.b16 %v3035
      %v3060 = vunpack.c.l.b16 %v3036
      %v3061 = vpack.c.b16 %v3050, %v3049
      %v3062 = vpack.c.b16 %v3052, %v3051
      %v3063 = vpack.c.b16 %v3054, %v3053
      %v3064 = vpack.c.b16 %v3056, %v3055
      %v3065 = vpack.c.b16 %v3058, %v3057
      %v3066 = vpack.c.b16 %v3060, %v3059
      %3073 = vmatprep.subr.bf16.mxu0 0
      %3074 = vmatpush1.bf16.msra.mxu0 0
      %3075 = vmatprep.subr.bf16.mxu0 0
      %3076 = vmatpush1.bf16.msra.mxu0 0
      %3077 = vmatprep.subr.bf16.mxu0 0
      %3078 = vmatpush1.bf16.msra.mxu0 %v3066
      %3079 = vmatprep.subr.bf16.mxu0 0
      %3080 = vmatpush1.bf16.msra.mxu0 %v3065
      %3081 = vmatprep.subr.bf16.mxu0 0
      %3082 = vmatpush1.bf16.msra.mxu0 %v3064
      %3083 = vmatprep.subr.bf16.mxu0 0
      %3084 = vmatpush1.bf16.msra.mxu0 %v3063
      %3085 = vmatprep.subr.bf16.mxu0 0
      %3086 = vmatpush1.bf16.msra.mxu0 %v3062
      %3087 = vmatprep.subr.bf16.mxu0 0
      %3088 = vmatpush1.bf16.msra.mxu0 %v3061
      %3089 = vmatprep.subr.bf16.mxu0 0
      %3090 = vmatpush2.bf16.msra.mxu0 0
      %3091 = vmatprep.subr.bf16.mxu0 0
      %3092 = vmatpush2.bf16.msra.mxu0 0
      %3093 = vmatprep.subr.bf16.mxu0 0
      %3094 = vmatpush2.bf16.msra.mxu0 0
      %3095 = vmatprep.subr.bf16.mxu0 0
      %3096 = vmatpush2.bf16.msra.mxu0 0
      %3097 = vmatprep.subr.bf16.mxu0 0
      %3098 = vmatpush2.bf16.msra.mxu0 0
      %3099 = vmatprep.subr.bf16.mxu0 0
      %3100 = vmatpush2.bf16.msra.mxu0 0
      %3101 = vmatprep.subr.bf16.mxu0 0
      %3102 = vmatpush2.bf16.msra.mxu0 0
      %3103 = vmatprep.subr.bf16.mxu0 0
      %3104 = vmatpush2.bf16.msra.mxu0 0
      %3105 = vmatprep.mubr.bf16.mxu0 0
      %3106 = vmatmul.mubr.bf16.gmra.mxu0 %v2820
      %v3107 = vpop.f32.mrf.mxu0
      %v3108 = vpop.f32.mrf.mxu0
      %v3109 = vpop.f32.mrf.mxu0
      %v3110 = vpop.f32.mrf.mxu0
      %3111 = vmatprep.mubr.bf16.mxu0 0
      %3112 = vmatmul.mubr.bf16.gmra.mxu0 %v2822
      %v3113 = vpop.f32.mrf.mxu0
      %v3114 = vadd.f32 0.0, %v3113
      %v3115 = vpop.f32.mrf.mxu0
      %v3116 = vpop.f32.mrf.mxu0
      %v3117 = vadd.f32 0.0, %v3116
      %v3118 = vpop.f32.mrf.mxu0
      %3119 = vmatprep.mubr.bf16.mxu0 0
      %3120 = vmatmul.mubr.bf16.gmra.mxu0 %v2824
      %v3121 = vpop.f32.mrf.mxu0
      %v3122 = vadd.f32 0.0, %v3121
      %v3123 = vpop.f32.mrf.mxu0
      %v3124 = vpop.f32.mrf.mxu0
      %v3125 = vadd.f32 0.0, %v3124
      %v3126 = vpop.f32.mrf.mxu0
      %3127 = vmatprep.mubr.bf16.mxu0 0
      %3128 = vmatmul.mubr.bf16.gmra.mxu0 %v2826
      %v3129 = vpop.f32.mrf.mxu0
      %v3130 = vadd.f32 0.0, %v3129
      %v3131 = vpop.f32.mrf.mxu0
      %v3132 = vpop.f32.mrf.mxu0
      %v3133 = vadd.f32 0.0, %v3132
      %v3134 = vpop.f32.mrf.mxu0
      %3135 = vmatprep.mubr.bf16.mxu0 0
      %3136 = vmatmul.mubr.bf16.gmra.mxu0 %v2828
      %v3137 = vpop.f32.mrf.mxu0
      %v3138 = vadd.f32 0.0, %v3137
      %v3139 = vpop.f32.mrf.mxu0
      %v3140 = vpop.f32.mrf.mxu0
      %v3141 = vadd.f32 0.0, %v3140
      %v3142 = vpop.f32.mrf.mxu0
      %3143 = vmatprep.mubr.bf16.mxu0 0
      %3144 = vmatmul.mubr.bf16.gmra.mxu0 %v2830
      %v3145 = vpop.f32.mrf.mxu0
      %v3146 = vadd.f32 0.0, %v3145
      %v3147 = vpop.f32.mrf.mxu0
      %v3148 = vpop.f32.mrf.mxu0
      %v3149 = vadd.f32 0.0, %v3148
      %v3150 = vpop.f32.mrf.mxu0
      %3151 = vmatprep.mubr.bf16.mxu0 0
      %3152 = vmatmul.mubr.bf16.gmra.mxu0 %v2832
      %v3153 = vpop.f32.mrf.mxu0
      %v3154 = vadd.f32 0.0, %v3153
      %v3155 = vpop.f32.mrf.mxu0
      %v3156 = vpop.f32.mrf.mxu0
      %v3157 = vadd.f32 0.0, %v3156
      %v3158 = vpop.f32.mrf.mxu0
      %3159 = vmatprep.mubr.bf16.mxu0 0
      %3160 = vmatmul.mubr.bf16.gmra.mxu0 %v2834
      %v3161 = vpop.f32.mrf.mxu0
      %v3162 = vadd.f32 0.0, %v3161
      %v3163 = vpop.f32.mrf.mxu0
      %v3164 = vpop.f32.mrf.mxu0
      %v3165 = vadd.f32 0.0, %v3164
      %v3166 = vpop.f32.mrf.mxu0
      %3167 = vmatprep.mubr.bf16.mxu0 0
      %3168 = vmatmul.mubr.bf16.gmra.mxu0 %v2836
      %v3169 = vpop.f32.mrf.mxu0
      %v3170 = vadd.f32 0.0, %v3169
      %v3171 = vpop.f32.mrf.mxu0
      %v3172 = vpop.f32.mrf.mxu0
      %v3173 = vadd.f32 0.0, %v3172
      %v3174 = vpop.f32.mrf.mxu0
      %3175 = vmatprep.mubr.bf16.mxu0 0
      %3176 = vmatmul.mubr.bf16.gmra.mxu0 %v2838
      %v3177 = vpop.f32.mrf.mxu0
      %v3178 = vadd.f32 0.0, %v3177
      %v3179 = vpop.f32.mrf.mxu0
      %v3180 = vpop.f32.mrf.mxu0
      %v3181 = vadd.f32 0.0, %v3180
      %v3182 = vpop.f32.mrf.mxu0
      %3183 = vmatprep.mubr.bf16.mxu0 0
      %3184 = vmatmul.mubr.bf16.gmra.mxu0 %v2840
      %v3185 = vpop.f32.mrf.mxu0
      %v3186 = vadd.f32 0.0, %v3185
      %v3187 = vpop.f32.mrf.mxu0
      %v3188 = vpop.f32.mrf.mxu0
      %v3189 = vadd.f32 0.0, %v3188
      %v3190 = vpop.f32.mrf.mxu0
      %3191 = vmatprep.mubr.bf16.mxu0 0
      %3192 = vmatmul.mubr.bf16.gmra.mxu0 %v2842
      %v3193 = vpop.f32.mrf.mxu0
      %v3194 = vadd.f32 0.0, %v3193
      %v3195 = vpop.f32.mrf.mxu0
      %v3196 = vpop.f32.mrf.mxu0
      %v3197 = vadd.f32 0.0, %v3196
      %v3198 = vpop.f32.mrf.mxu0
      %3199 = vmatprep.mubr.bf16.mxu0 0
      %3200 = vmatmul.mubr.bf16.gmra.mxu0 %v2844
      %v3201 = vpop.f32.mrf.mxu0
      %v3202 = vadd.f32 0.0, %v3201
      %v3203 = vpop.f32.mrf.mxu0
      %v3204 = vpop.f32.mrf.mxu0
      %v3205 = vadd.f32 0.0, %v3204
      %v3206 = vpop.f32.mrf.mxu0
      %3207 = vmatprep.mubr.bf16.mxu0 0
      %3208 = vmatmul.mubr.bf16.gmra.mxu0 %v2846
      %v3209 = vpop.f32.mrf.mxu0
      %v3210 = vadd.f32 0.0, %v3209
      %v3211 = vpop.f32.mrf.mxu0
      %v3212 = vpop.f32.mrf.mxu0
      %v3213 = vadd.f32 0.0, %v3212
      %v3214 = vpop.f32.mrf.mxu0
      %3215 = vmatprep.mubr.bf16.mxu0 0
      %3216 = vmatmul.mubr.bf16.gmra.mxu0 %v2848
      %v3217 = vpop.f32.mrf.mxu0
      %v3218 = vadd.f32 0.0, %v3217
      %v3219 = vpop.f32.mrf.mxu0
      %v3220 = vpop.f32.mrf.mxu0
      %v3221 = vadd.f32 0.0, %v3220
      %v3222 = vpop.f32.mrf.mxu0
      %3223 = vmatprep.mubr.bf16.mxu0 0
      %3224 = vmatmul.mubr.bf16.gmra.mxu0 %v2850
      %v3225 = vpop.f32.mrf.mxu0
      %v3226 = vadd.f32 0.0, %v3225
      %v3227 = vpop.f32.mrf.mxu0
      %v3228 = vpop.f32.mrf.mxu0
      %v3229 = vadd.f32 0.0, %v3228
      %v3230 = vpop.f32.mrf.mxu0
      %3231 = vdwg.mxu0
      %v3244 = vunpack.c.l.b16 %v3012
      %v3245 = vunpack.c.l.b16 %v3013
      %v3246 = vunpack.c.l.b16 %v3014
      %v3247 = vunpack.c.l.b16 %v3015
      %v3248 = vunpack.c.l.b16 %v3016
      %v3249 = vunpack.c.l.b16 %v3017
      %v3250 = vunpack.c.l.b16 %v3018
      %v3251 = vunpack.c.l.b16 %v3019
      %v3252 = vunpack.c.l.b16 %v3020
      %v3253 = vunpack.c.l.b16 %v3021
      %v3254 = vunpack.c.l.b16 %v3022
      %v3255 = vunpack.c.l.b16 %v3023
      %v3256 = vpack.c.b16 %v3245, %v3244
      %v3257 = vpack.c.b16 %v3247, %v3246
      %v3258 = vpack.c.b16 %v3249, %v3248
      %v3259 = vpack.c.b16 %v3251, %v3250
      %v3260 = vpack.c.b16 %v3253, %v3252
      %v3261 = vpack.c.b16 %v3255, %v3254
      %3268 = vmatprep.subr.bf16.mxu0 0
      %3269 = vmatpush1.bf16.msra.mxu0 0
      %3270 = vmatprep.subr.bf16.mxu0 0
      %3271 = vmatpush1.bf16.msra.mxu0 0
      %3272 = vmatprep.subr.bf16.mxu0 0
      %3273 = vmatpush1.bf16.msra.mxu0 %v3261
      %3274 = vmatprep.subr.bf16.mxu0 0
      %3275 = vmatpush1.bf16.msra.mxu0 %v3260
      %3276 = vmatprep.subr.bf16.mxu0 0
      %3277 = vmatpush1.bf16.msra.mxu0 %v3259
      %3278 = vmatprep.subr.bf16.mxu0 0
      %3279 = vmatpush1.bf16.msra.mxu0 %v3258
      %3280 = vmatprep.subr.bf16.mxu0 0
      %3281 = vmatpush1.bf16.msra.mxu0 %v3257
      %3282 = vmatprep.subr.bf16.mxu0 0
      %3283 = vmatpush1.bf16.msra.mxu0 %v3256
      %3284 = vmatprep.subr.bf16.mxu0 0
      %3285 = vmatpush2.bf16.msra.mxu0 0
      %3286 = vmatprep.subr.bf16.mxu0 0
      %3287 = vmatpush2.bf16.msra.mxu0 0
      %3288 = vmatprep.subr.bf16.mxu0 0
      %3289 = vmatpush2.bf16.msra.mxu0 0
      %3290 = vmatprep.subr.bf16.mxu0 0
      %3291 = vmatpush2.bf16.msra.mxu0 0
      %3292 = vmatprep.subr.bf16.mxu0 0
      %3293 = vmatpush2.bf16.msra.mxu0 0
      %3294 = vmatprep.subr.bf16.mxu0 0
      %3295 = vmatpush2.bf16.msra.mxu0 0
      %3296 = vmatprep.subr.bf16.mxu0 0
      %3297 = vmatpush2.bf16.msra.mxu0 0
      %3298 = vmatprep.subr.bf16.mxu0 0
      %3299 = vmatpush2.bf16.msra.mxu0 0
      %3300 = vmatprep.mubr.bf16.mxu0 0
      %3301 = vmatmul.mubr.bf16.gmra.mxu0 %v2820
      %v3302 = vpop.f32.mrf.mxu0
      %v3303 = vadd.f32 0.0, %v3302
      %v3304 = vpop.f32.mrf.mxu0
      %v3305 = vpop.f32.mrf.mxu0
      %v3306 = vadd.f32 0.0, %v3305
      %v3307 = vpop.f32.mrf.mxu0
      %3308 = vmatprep.mubr.bf16.mxu0 0
      %3309 = vmatmul.mubr.bf16.gmra.mxu0 %v2822
      %v3310 = vpop.f32.mrf.mxu0
      %v3311 = vadd.f32 %v2887, %v3310
      %v3312 = vpop.f32.mrf.mxu0
      %v3313 = vpop.f32.mrf.mxu0
      %v3314 = vadd.f32 %v2890, %v3313
      %v3315 = vpop.f32.mrf.mxu0
      %3316 = vmatprep.mubr.bf16.mxu0 0
      %3317 = vmatmul.mubr.bf16.gmra.mxu0 %v2824
      %v3318 = vpop.f32.mrf.mxu0
      %v3319 = vadd.f32 %v2895, %v3318
      %v3320 = vpop.f32.mrf.mxu0
      %v3321 = vpop.f32.mrf.mxu0
      %v3322 = vadd.f32 %v2898, %v3321
      %v3323 = vpop.f32.mrf.mxu0
      %3324 = vmatprep.mubr.bf16.mxu0 0
      %3325 = vmatmul.mubr.bf16.gmra.mxu0 %v2826
      %v3326 = vpop.f32.mrf.mxu0
      %v3327 = vadd.f32 %v2903, %v3326
      %v3328 = vpop.f32.mrf.mxu0
      %v3329 = vpop.f32.mrf.mxu0
      %v3330 = vadd.f32 %v2906, %v3329
      %v3331 = vpop.f32.mrf.mxu0
      %3332 = vmatprep.mubr.bf16.mxu0 0
      %3333 = vmatmul.mubr.bf16.gmra.mxu0 %v2828
      %v3334 = vpop.f32.mrf.mxu0
      %v3335 = vadd.f32 %v2911, %v3334
      %v3336 = vpop.f32.mrf.mxu0
      %v3337 = vpop.f32.mrf.mxu0
      %v3338 = vadd.f32 %v2914, %v3337
      %v3339 = vpop.f32.mrf.mxu0
      %3340 = vmatprep.mubr.bf16.mxu0 0
      %3341 = vmatmul.mubr.bf16.gmra.mxu0 %v2830
      %v3342 = vpop.f32.mrf.mxu0
      %v3343 = vadd.f32 %v2919, %v3342
      %v3344 = vpop.f32.mrf.mxu0
      %v3345 = vpop.f32.mrf.mxu0
      %v3346 = vadd.f32 %v2922, %v3345
      %v3347 = vpop.f32.mrf.mxu0
      %3348 = vmatprep.mubr.bf16.mxu0 0
      %3349 = vmatmul.mubr.bf16.gmra.mxu0 %v2832
      %v3350 = vpop.f32.mrf.mxu0
      %v3351 = vadd.f32 %v2927, %v3350
      %v3352 = vpop.f32.mrf.mxu0
      %v3353 = vpop.f32.mrf.mxu0
      %v3354 = vadd.f32 %v2930, %v3353
      %v3355 = vpop.f32.mrf.mxu0
      %3356 = vmatprep.mubr.bf16.mxu0 0
      %3357 = vmatmul.mubr.bf16.gmra.mxu0 %v2834
      %v3358 = vpop.f32.mrf.mxu0
      %v3359 = vadd.f32 %v2935, %v3358
      %v3360 = vpop.f32.mrf.mxu0
      %v3361 = vpop.f32.mrf.mxu0
      %v3362 = vadd.f32 %v2938, %v3361
      %v3363 = vpop.f32.mrf.mxu0
      %3364 = vmatprep.mubr.bf16.mxu0 0
      %3365 = vmatmul.mubr.bf16.gmra.mxu0 %v2836
      %v3366 = vpop.f32.mrf.mxu0
      %v3367 = vadd.f32 %v2943, %v3366
      %v3368 = vpop.f32.mrf.mxu0
      %v3369 = vpop.f32.mrf.mxu0
      %v3370 = vadd.f32 %v2946, %v3369
      %v3371 = vpop.f32.mrf.mxu0
      %3372 = vmatprep.mubr.bf16.mxu0 0
      %3373 = vmatmul.mubr.bf16.gmra.mxu0 %v2838
      %v3374 = vpop.f32.mrf.mxu0
      %v3375 = vadd.f32 %v2951, %v3374
      %v3376 = vpop.f32.mrf.mxu0
      %v3377 = vpop.f32.mrf.mxu0
      %v3378 = vadd.f32 %v2954, %v3377
      %v3379 = vpop.f32.mrf.mxu0
      %3380 = vmatprep.mubr.bf16.mxu0 0
      %3381 = vmatmul.mubr.bf16.gmra.mxu0 %v2840
      %v3382 = vpop.f32.mrf.mxu0
      %v3383 = vadd.f32 %v2959, %v3382
      %v3384 = vpop.f32.mrf.mxu0
      %v3385 = vpop.f32.mrf.mxu0
      %v3386 = vadd.f32 %v2962, %v3385
      %v3387 = vpop.f32.mrf.mxu0
      %3388 = vmatprep.mubr.bf16.mxu0 0
      %3389 = vmatmul.mubr.bf16.gmra.mxu0 %v2842
      %v3390 = vpop.f32.mrf.mxu0
      %v3391 = vadd.f32 %v2967, %v3390
      %v3392 = vpop.f32.mrf.mxu0
      %v3393 = vpop.f32.mrf.mxu0
      %v3394 = vadd.f32 %v2970, %v3393
      %v3395 = vpop.f32.mrf.mxu0
      %3396 = vmatprep.mubr.bf16.mxu0 0
      %3397 = vmatmul.mubr.bf16.gmra.mxu0 %v2844
      %v3398 = vpop.f32.mrf.mxu0
      %v3399 = vadd.f32 %v2975, %v3398
      %v3400 = vpop.f32.mrf.mxu0
      %v3401 = vpop.f32.mrf.mxu0
      %v3402 = vadd.f32 %v2978, %v3401
      %v3403 = vpop.f32.mrf.mxu0
      %3404 = vmatprep.mubr.bf16.mxu0 0
      %3405 = vmatmul.mubr.bf16.gmra.mxu0 %v2846
      %v3406 = vpop.f32.mrf.mxu0
      %v3407 = vadd.f32 %v2983, %v3406
      %v3408 = vpop.f32.mrf.mxu0
      %v3409 = vpop.f32.mrf.mxu0
      %v3410 = vadd.f32 %v2986, %v3409
      %v3411 = vpop.f32.mrf.mxu0
      %3412 = vmatprep.mubr.bf16.mxu0 0
      %3413 = vmatmul.mubr.bf16.gmra.mxu0 %v2848
      %v3414 = vpop.f32.mrf.mxu0
      %v3415 = vadd.f32 %v2991, %v3414
      %v3416 = vpop.f32.mrf.mxu0
      %v3417 = vpop.f32.mrf.mxu0
      %v3418 = vadd.f32 %v2994, %v3417
      %v3419 = vpop.f32.mrf.mxu0
      %3420 = vmatprep.mubr.bf16.mxu0 0
      %3421 = vmatmul.mubr.bf16.gmra.mxu0 %v2850
      %v3422 = vpop.f32.mrf.mxu0
      %v3423 = vadd.f32 %v2999, %v3422
      %v3424 = vpop.f32.mrf.mxu0
      %v3425 = vpop.f32.mrf.mxu0
      %v3426 = vadd.f32 %v3002, %v3425
      %v3427 = vpop.f32.mrf.mxu0
      %3428 = vdwg.mxu0
      %v3429 = vadd.f32 %v3303, %v3114
      %v3430 = vadd.f32 %v3306, %v3117
      %v3431 = vadd.f32 %v3311, %v3122
      %v3432 = vadd.f32 %v3314, %v3125
      %v3433 = vadd.f32 %v3319, %v3130
      %v3434 = vadd.f32 %v3322, %v3133
      %v3435 = vadd.f32 %v3327, %v3138
      %v3436 = vadd.f32 %v3330, %v3141
      %v3437 = vadd.f32 %v3335, %v3146
      %v3438 = vadd.f32 %v3338, %v3149
      %v3439 = vadd.f32 %v3343, %v3154
      %v3440 = vadd.f32 %v3346, %v3157
      %v3441 = vadd.f32 %v3351, %v3162
      %v3442 = vadd.f32 %v3354, %v3165
      %v3443 = vadd.f32 %v3359, %v3170
      %v3444 = vadd.f32 %v3362, %v3173
      %v3445 = vadd.f32 %v3367, %v3178
      %v3446 = vadd.f32 %v3370, %v3181
      %v3447 = vadd.f32 %v3375, %v3186
      %v3448 = vadd.f32 %v3378, %v3189
      %v3449 = vadd.f32 %v3383, %v3194
      %v3450 = vadd.f32 %v3386, %v3197
      %v3451 = vadd.f32 %v3391, %v3202
      %v3452 = vadd.f32 %v3394, %v3205
      %v3453 = vadd.f32 %v3399, %v3210
      %v3454 = vadd.f32 %v3402, %v3213
      %v3455 = vadd.f32 %v3407, %v3218
      %v3456 = vadd.f32 %v3410, %v3221
      %v3457 = vadd.f32 %v3415, %v3226
      %v3458 = vadd.f32 %v3418, %v3229
      %v3459 = vadd.f32 %v3423, 0.0
      %v3460 = vadd.f32 %v3426, 0.0
      %v3461 = vld [vmem:[%s4] sm:$0x1]
      %v3463 = vlaneseq
      %v3464 = vshrl.u32 %v3463, 7
      %v3465 = vsub.s32 0, %v3464
      %v3466 = vrot.slane %v3461, %v3465
      %v3468 = vadd.f32 %v3429, %v3466
      %v3469 = vadd.f32 %v3430, %v3466
      %v3470 = vadd.f32 %v3431, %v3466
      %v3471 = vadd.f32 %v3432, %v3466
      %v3472 = vadd.f32 %v3433, %v3466
      %v3473 = vadd.f32 %v3434, %v3466
      %v3474 = vadd.f32 %v3435, %v3466
      %v3475 = vadd.f32 %v3436, %v3466
      %v3476 = vadd.f32 %v3437, %v3466
      %v3477 = vadd.f32 %v3438, %v3466
      %v3478 = vadd.f32 %v3439, %v3466
      %v3479 = vadd.f32 %v3440, %v3466
      %v3480 = vadd.f32 %v3441, %v3466
      %v3481 = vadd.f32 %v3442, %v3466
      %v3482 = vadd.f32 %v3443, %v3466
      %v3483 = vadd.f32 %v3444, %v3466
      %v3484 = vadd.f32 %v3445, %v3466
      %v3485 = vadd.f32 %v3446, %v3466
      %v3486 = vadd.f32 %v3447, %v3466
      %v3487 = vadd.f32 %v3448, %v3466
      %v3488 = vadd.f32 %v3449, %v3466
      %v3489 = vadd.f32 %v3450, %v3466
      %v3490 = vadd.f32 %v3451, %v3466
      %v3491 = vadd.f32 %v3452, %v3466
      %v3492 = vadd.f32 %v3453, %v3466
      %v3493 = vadd.f32 %v3454, %v3466
      %v3494 = vadd.f32 %v3455, %v3466
      %v3495 = vadd.f32 %v3456, %v3466
      %v3496 = vadd.f32 %v3457, %v3466
      %v3497 = vadd.f32 %v3458, %v3466
      %v3498 = vadd.f32 %v3459, %v3466
      %v3499 = vadd.f32 %v3460, %v3466
      %3500 = vst.msk [vmem:[%s297] sm:$0xff] %vm2273, %v3468
      %3501 = vst.msk [vmem:[%s297 + $0x8] sm:$0xff] %vm2273, %v3469
      %3502 = vst.msk [vmem:[%s297 + $0x10] sm:$0xff] %vm2273, %v3470
      %3503 = vst.msk [vmem:[%s297 + $0x18] sm:$0xff] %vm2273, %v3471
      %3504 = vst.msk [vmem:[%s297 + $0x20] sm:$0xff] %vm2273, %v3472
      %3505 = vst.msk [vmem:[%s297 + $0x28] sm:$0xff] %vm2273, %v3473
      %3506 = vst.msk [vmem:[%s297 + $0x30] sm:$0xff] %vm2273, %v3474
      %3507 = vst.msk [vmem:[%s297 + $0x38] sm:$0xff] %vm2273, %v3475
      %3508 = vst.msk [vmem:[%s297 + $0x40] sm:$0xff] %vm2273, %v3476
      %3509 = vst.msk [vmem:[%s297 + $0x48] sm:$0xff] %vm2273, %v3477
      %3510 = vst.msk [vmem:[%s297 + $0x50] sm:$0xff] %vm2273, %v3478
      %3511 = vst.msk [vmem:[%s297 + $0x58] sm:$0xff] %vm2273, %v3479
      %3512 = vst.msk [vmem:[%s297 + $0x60] sm:$0xff] %vm2273, %v3480
      %3513 = vst.msk [vmem:[%s297 + $0x68] sm:$0xff] %vm2273, %v3481
      %3514 = vst.msk [vmem:[%s297 + $0x70] sm:$0xff] %vm2273, %v3482
      %3515 = vst.msk [vmem:[%s297 + $0x78] sm:$0xff] %vm2273, %v3483
      %3516 = vst.msk [vmem:[%s297 + $0x80] sm:$0xff] %vm2273, %v3484
      %3517 = vst.msk [vmem:[%s297 + $0x88] sm:$0xff] %vm2273, %v3485
      %3518 = vst.msk [vmem:[%s297 + $0x90] sm:$0xff] %vm2273, %v3486
      %3519 = vst.msk [vmem:[%s297 + $0x98] sm:$0xff] %vm2273, %v3487
      %3520 = vst.msk [vmem:[%s297 + $0xa0] sm:$0xff] %vm2273, %v3488
      %3521 = vst.msk [vmem:[%s297 + $0xa8] sm:$0xff] %vm2273, %v3489
      %3522 = vst.msk [vmem:[%s297 + $0xb0] sm:$0xff] %vm2273, %v3490
      %3523 = vst.msk [vmem:[%s297 + $0xb8] sm:$0xff] %vm2273, %v3491
      %3524 = vst.msk [vmem:[%s297 + $0xc0] sm:$0xff] %vm2273, %v3492
      %3525 = vst.msk [vmem:[%s297 + $0xc8] sm:$0xff] %vm2273, %v3493
      %3526 = vst.msk [vmem:[%s297 + $0xd0] sm:$0xff] %vm2273, %v3494
      %3527 = vst.msk [vmem:[%s297 + $0xd8] sm:$0xff] %vm2273, %v3495
      %3528 = vst.msk [vmem:[%s297 + $0xe0] sm:$0xff] %vm2273, %v3496
      %3529 = vst.msk [vmem:[%s297 + $0xe8] sm:$0xff] %vm2273, %v3497
      %3530 = vst.msk [vmem:[%s297 + $0xf0] sm:$0xff] %vm2273, %v3498
      %3531 = vst.msk [vmem:[%s297 + $0xf8] sm:$0xff] %vm2273, %v3499
      %v3532 = vsel %vm2273, %v3468, 0.0
      %v3533 = vsel %vm2273, %v3469, 0.0
      %v3534 = vadd.f32 %v3532, %v3533
      %v3535 = vsel %vm2273, %v3470, 0.0
      %v3536 = vadd.f32 %v3534, %v3535
      %v3537 = vsel %vm2273, %v3471, 0.0
      %v3538 = vadd.f32 %v3536, %v3537
      %v3539 = vsel %vm2273, %v3472, 0.0
      %v3540 = vadd.f32 %v3538, %v3539
      %v3541 = vsel %vm2273, %v3473, 0.0
      %v3542 = vadd.f32 %v3540, %v3541
      %v3543 = vsel %vm2273, %v3474, 0.0
      %v3544 = vadd.f32 %v3542, %v3543
      %v3545 = vsel %vm2273, %v3475, 0.0
      %v3546 = vadd.f32 %v3544, %v3545
      %v3547 = vsel %vm2273, %v3476, 0.0
      %v3548 = vadd.f32 %v3546, %v3547
      %v3549 = vsel %vm2273, %v3477, 0.0
      %v3550 = vadd.f32 %v3548, %v3549
      %v3551 = vsel %vm2273, %v3478, 0.0
      %v3552 = vadd.f32 %v3550, %v3551
      %v3553 = vsel %vm2273, %v3479, 0.0
      %v3554 = vadd.f32 %v3552, %v3553
      %v3555 = vsel %vm2273, %v3480, 0.0
      %v3556 = vadd.f32 %v3554, %v3555
      %v3557 = vsel %vm2273, %v3481, 0.0
      %v3558 = vadd.f32 %v3556, %v3557
      %v3559 = vsel %vm2273, %v3482, 0.0
      %v3560 = vadd.f32 %v3558, %v3559
      %v3561 = vsel %vm2273, %v3483, 0.0
      %v3562 = vadd.f32 %v3560, %v3561
      %v3563 = vsel %vm2273, %v3484, 0.0
      %v3564 = vadd.f32 %v3562, %v3563
      %v3565 = vsel %vm2273, %v3485, 0.0
      %v3566 = vadd.f32 %v3564, %v3565
      %v3567 = vsel %vm2273, %v3486, 0.0
      %v3568 = vadd.f32 %v3566, %v3567
      %v3569 = vsel %vm2273, %v3487, 0.0
      %v3570 = vadd.f32 %v3568, %v3569
      %v3571 = vsel %vm2273, %v3488, 0.0
      %v3572 = vadd.f32 %v3570, %v3571
      %v3573 = vsel %vm2273, %v3489, 0.0
      %v3574 = vadd.f32 %v3572, %v3573
      %v3575 = vsel %vm2273, %v3490, 0.0
      %v3576 = vadd.f32 %v3574, %v3575
      %v3577 = vsel %vm2273, %v3491, 0.0
      %v3578 = vadd.f32 %v3576, %v3577
      %v3579 = vsel %vm2273, %v3492, 0.0
      %v3580 = vadd.f32 %v3578, %v3579
      %v3581 = vsel %vm2273, %v3493, 0.0
      %v3582 = vadd.f32 %v3580, %v3581
      %v3583 = vsel %vm2273, %v3494, 0.0
      %v3584 = vadd.f32 %v3582, %v3583
      %v3585 = vsel %vm2273, %v3495, 0.0
      %v3586 = vadd.f32 %v3584, %v3585
      %v3587 = vsel %vm2273, %v3496, 0.0
      %v3588 = vadd.f32 %v3586, %v3587
      %v3589 = vsel %vm2273, %v3497, 0.0
      %v3590 = vadd.f32 %v3588, %v3589
      %v3591 = vsel %vm2273, %v3498, 0.0
      %v3592 = vadd.f32 %v3590, %v3591
      %v3593 = vsel %vm2273, %v3499, 0.0
      %v3594 = vadd.f32 %v3592, %v3593
      %v3595 = vrot.slane %v3594, 4
      %v3596 = vadd.f32 %v3594, %v3595
      %v3597 = vrot.slane %v3596, 2
      %v3598 = vadd.f32 %v3596, %v3597
      %v3599 = vrot.slane %v3598, 1
      %v3600 = vadd.f32 %v3598, %v3599
      %v3601 = vrcp.pop 256.0
      %v3602 = vmul.f32 %v3600, %v3601
      %v3603 = vsub.f32 %v3468, %v3602
      %v3604 = vsub.f32 %v3469, %v3602
      %v3605 = vsub.f32 %v3470, %v3602
      %v3606 = vsub.f32 %v3471, %v3602
      %v3607 = vsub.f32 %v3472, %v3602
      %v3608 = vsub.f32 %v3473, %v3602
      %v3609 = vsub.f32 %v3474, %v3602
      %v3610 = vsub.f32 %v3475, %v3602
      %v3611 = vsub.f32 %v3476, %v3602
      %v3612 = vsub.f32 %v3477, %v3602
      %v3613 = vsub.f32 %v3478, %v3602
      %v3614 = vsub.f32 %v3479, %v3602
      %v3615 = vsub.f32 %v3480, %v3602
      %v3616 = vsub.f32 %v3481, %v3602
      %v3617 = vsub.f32 %v3482, %v3602
      %v3618 = vsub.f32 %v3483, %v3602
      %v3619 = vsub.f32 %v3484, %v3602
      %v3620 = vsub.f32 %v3485, %v3602
      %v3621 = vsub.f32 %v3486, %v3602
      %v3622 = vsub.f32 %v3487, %v3602
      %v3623 = vsub.f32 %v3488, %v3602
      %v3624 = vsub.f32 %v3489, %v3602
      %v3625 = vsub.f32 %v3490, %v3602
      %v3626 = vsub.f32 %v3491, %v3602
      %v3627 = vsub.f32 %v3492, %v3602
      %v3628 = vsub.f32 %v3493, %v3602
      %v3629 = vsub.f32 %v3494, %v3602
      %v3630 = vsub.f32 %v3495, %v3602
      %v3631 = vsub.f32 %v3496, %v3602
      %v3632 = vsub.f32 %v3497, %v3602
      %v3633 = vsub.f32 %v3498, %v3602
      %v3634 = vsub.f32 %v3499, %v3602
      %v3635 = vmul.f32 %v3603, %v3603
      %v3636 = vmul.f32 %v3604, %v3604
      %v3637 = vmul.f32 %v3605, %v3605
      %v3638 = vmul.f32 %v3606, %v3606
      %v3639 = vmul.f32 %v3607, %v3607
      %v3640 = vmul.f32 %v3608, %v3608
      %v3641 = vmul.f32 %v3609, %v3609
      %v3642 = vmul.f32 %v3610, %v3610
      %v3643 = vmul.f32 %v3611, %v3611
      %v3644 = vmul.f32 %v3612, %v3612
      %v3645 = vmul.f32 %v3613, %v3613
      %v3646 = vmul.f32 %v3614, %v3614
      %v3647 = vmul.f32 %v3615, %v3615
      %v3648 = vmul.f32 %v3616, %v3616
      %v3649 = vmul.f32 %v3617, %v3617
      %v3650 = vmul.f32 %v3618, %v3618
      %v3651 = vmul.f32 %v3619, %v3619
      %v3652 = vmul.f32 %v3620, %v3620
      %v3653 = vmul.f32 %v3621, %v3621
      %v3654 = vmul.f32 %v3622, %v3622
      %v3655 = vmul.f32 %v3623, %v3623
      %v3656 = vmul.f32 %v3624, %v3624
      %v3657 = vmul.f32 %v3625, %v3625
      %v3658 = vmul.f32 %v3626, %v3626
      %v3659 = vmul.f32 %v3627, %v3627
      %v3660 = vmul.f32 %v3628, %v3628
      %v3661 = vmul.f32 %v3629, %v3629
      %v3662 = vmul.f32 %v3630, %v3630
      %v3663 = vmul.f32 %v3631, %v3631
      %v3664 = vmul.f32 %v3632, %v3632
      %v3665 = vmul.f32 %v3633, %v3633
      %v3666 = vmul.f32 %v3634, %v3634
      %v3667 = vsel %vm2273, %v3635, 0.0
      %v3668 = vsel %vm2273, %v3636, 0.0
      %v3669 = vadd.f32 %v3667, %v3668
      %v3670 = vsel %vm2273, %v3637, 0.0
      %v3671 = vadd.f32 %v3669, %v3670
      %v3672 = vsel %vm2273, %v3638, 0.0
      %v3673 = vadd.f32 %v3671, %v3672
      %v3674 = vsel %vm2273, %v3639, 0.0
      %v3675 = vadd.f32 %v3673, %v3674
      %v3676 = vsel %vm2273, %v3640, 0.0
      %v3677 = vadd.f32 %v3675, %v3676
      %v3678 = vsel %vm2273, %v3641, 0.0
      %v3679 = vadd.f32 %v3677, %v3678
      %v3680 = vsel %vm2273, %v3642, 0.0
      %v3681 = vadd.f32 %v3679, %v3680
      %v3682 = vsel %vm2273, %v3643, 0.0
      %v3683 = vadd.f32 %v3681, %v3682
      %v3684 = vsel %vm2273, %v3644, 0.0
      %v3685 = vadd.f32 %v3683, %v3684
      %v3686 = vsel %vm2273, %v3645, 0.0
      %v3687 = vadd.f32 %v3685, %v3686
      %v3688 = vsel %vm2273, %v3646, 0.0
      %v3689 = vadd.f32 %v3687, %v3688
      %v3690 = vsel %vm2273, %v3647, 0.0
      %v3691 = vadd.f32 %v3689, %v3690
      %v3692 = vsel %vm2273, %v3648, 0.0
      %v3693 = vadd.f32 %v3691, %v3692
      %v3694 = vsel %vm2273, %v3649, 0.0
      %v3695 = vadd.f32 %v3693, %v3694
      %v3696 = vsel %vm2273, %v3650, 0.0
      %v3697 = vadd.f32 %v3695, %v3696
      %v3698 = vsel %vm2273, %v3651, 0.0
      %v3699 = vadd.f32 %v3697, %v3698
      %v3700 = vsel %vm2273, %v3652, 0.0
      %v3701 = vadd.f32 %v3699, %v3700
      %v3702 = vsel %vm2273, %v3653, 0.0
      %v3703 = vadd.f32 %v3701, %v3702
      %v3704 = vsel %vm2273, %v3654, 0.0
      %v3705 = vadd.f32 %v3703, %v3704
      %v3706 = vsel %vm2273, %v3655, 0.0
      %v3707 = vadd.f32 %v3705, %v3706
      %v3708 = vsel %vm2273, %v3656, 0.0
      %v3709 = vadd.f32 %v3707, %v3708
      %v3710 = vsel %vm2273, %v3657, 0.0
      %v3711 = vadd.f32 %v3709, %v3710
      %v3712 = vsel %vm2273, %v3658, 0.0
      %v3713 = vadd.f32 %v3711, %v3712
      %v3714 = vsel %vm2273, %v3659, 0.0
      %v3715 = vadd.f32 %v3713, %v3714
      %v3716 = vsel %vm2273, %v3660, 0.0
      %v3717 = vadd.f32 %v3715, %v3716
      %v3718 = vsel %vm2273, %v3661, 0.0
      %v3719 = vadd.f32 %v3717, %v3718
      %v3720 = vsel %vm2273, %v3662, 0.0
      %v3721 = vadd.f32 %v3719, %v3720
      %v3722 = vsel %vm2273, %v3663, 0.0
      %v3723 = vadd.f32 %v3721, %v3722
      %v3724 = vsel %vm2273, %v3664, 0.0
      %v3725 = vadd.f32 %v3723, %v3724
      %v3726 = vsel %vm2273, %v3665, 0.0
      %v3727 = vadd.f32 %v3725, %v3726
      %v3728 = vsel %vm2273, %v3666, 0.0
      %v3729 = vadd.f32 %v3727, %v3728
      %v3730 = vrot.slane %v3729, 4
      %v3731 = vadd.f32 %v3729, %v3730
      %v3732 = vrot.slane %v3731, 2
      %v3733 = vadd.f32 %v3731, %v3732
      %v3734 = vrot.slane %v3733, 1
      %v3735 = vadd.f32 %v3733, %v3734
      %vm3736 = vcmask 1040384
      %v3737 = vsel %vm3736, %v3602, %v3735
      %vm3738 = vcmask 254976
      %3739 = vst.msk [vmem:[%s301] sm:$0x3] %vm3738, %v3737
      %p3740 = scmp.lt.s32.totalorder %s19, 1
      %s3741 = scalar_select %p3740, %s19, 1
      %s3742 = smul.addr %s3741, 32
      %s3743 = smul.addr %s3742, 8
      %s3744 = scalar_lea.vmem %s5, %s3743
      %p3745 = scmp.lt.s32.totalorder %s19, 1
      %s3746 = scalar_select %p3745, %s19, 1
      %s3747 = smul.addr %s3746, 32
      %s3748 = smul.addr %s3747, 8
      %s3749 = scalar_lea.vmem %s6, %s3748
      %p3750 = scmp.lt.s32.totalorder %s19, 1
      %s3751 = scalar_select %p3750, %s19, 1
      %s3752 = smul.addr %s3751, 2
      %s3753 = scalar_lea.vmem %s7, %s3752
      // Predicated region
      $region41: #{ftb_forward.2} parent=39 // pred_check
        %p3754 = pneg %p147
      $region42: #{ftb_forward.2} parent=39 // pred_check_branch
        %3756 = sbr.rel (%p3754) target = $region44
      $region43: #{ftb_forward.2} parent=39 // pred_region
        _
      $region44: #{ftb_forward.2} parent=39 // pred_fallthru
        _
      // Predicated region
      $region45: #{ftb_forward.2} parent=39 // pred_check
        %p3757 = pneg %p173
      $region46: #{ftb_forward.2} parent=39 // pred_check_branch
        %3759 = sbr.rel (%p3757) target = $region48
      $region47: #{ftb_forward.2} parent=39 // pred_region
        _
      $region48: #{ftb_forward.2} parent=39 // pred_fallthru
        _
      // Predicated region
      $region49: #{ftb_forward.2} parent=39 // pred_check
        %p3760 = pneg %p199
      $region50: #{ftb_forward.2} parent=39 // pred_check_branch
        %3762 = sbr.rel (%p3760) target = $region52
      $region51: #{ftb_forward.2} parent=39 // pred_region
        _
      $region52: #{ftb_forward.2} parent=39 // pred_fallthru
        _
    $region40: #{ftb_forward.2} parent=5 // pred_fallthru
      _
    %p3763 = scmp.le.s32.totalorder 2, %s14
    // Predicated region
    $region53: #{ftb_forward.2} parent=5 // pred_check
      %p3764 = pneg %p3763
    $region54: #{ftb_forward.2} parent=5 // pred_check_branch
      %3766 = sbr.rel (%p3764) target = $region56
    $region55: #{ftb_forward.2} parent=5 // pred_region
      %s3767 = ssub.s32 %s14, 2
      // Predicated region
      $region57: #{ftb_forward.2} parent=55 // pred_check
        %p3768 = pneg %p153
      $region58: #{ftb_forward.2} parent=55 // pred_check_branch
        %3770 = sbr.rel (%p3768) target = $region60
      $region59: #{ftb_forward.2} parent=55 // pred_region
        %p3771 = scmp.lt.s32.totalorder %s20, 1
        %s3772 = scalar_select %p3771, %s20, 1
        %s3773 = smul.addr %s3772, 32
        %s3774 = smul.addr %s3773, 8
        %s3775 = scalar_lea.vmem %s5, %s3774
      $region60: #{ftb_forward.2} parent=55 // pred_fallthru
        _
      // Predicated region
      $region61: #{ftb_forward.2} parent=55 // pred_check
        %p3776 = pneg %p179
      $region62: #{ftb_forward.2} parent=55 // pred_check_branch
        %3778 = sbr.rel (%p3776) target = $region64
      $region63: #{ftb_forward.2} parent=55 // pred_region
        %p3779 = scmp.lt.s32.totalorder %s20, 1
        %s3780 = scalar_select %p3779, %s20, 1
        %s3781 = smul.addr %s3780, 32
        %s3782 = smul.addr %s3781, 8
        %s3783 = scalar_lea.vmem %s6, %s3782
      $region64: #{ftb_forward.2} parent=55 // pred_fallthru
        _
      // Predicated region
      $region65: #{ftb_forward.2} parent=55 // pred_check
        %p3784 = pneg %p205
      $region66: #{ftb_forward.2} parent=55 // pred_check_branch
        %3786 = sbr.rel (%p3784) target = $region68
      $region67: #{ftb_forward.2} parent=55 // pred_region
        %p3787 = scmp.lt.s32.totalorder %s20, 1
        %s3788 = scalar_select %p3787, %s20, 1
        %s3789 = smul.addr %s3788, 2
        %s3790 = scalar_lea.vmem %s7, %s3789
      $region68: #{ftb_forward.2} parent=55 // pred_fallthru
        _
    $region56: #{ftb_forward.2} parent=5 // pred_fallthru
      _
  $region6: #{ftb_forward.2} parent=0 // loop_footer
    %s18 = sadd.s32 1, %s14
  $region7: #{ftb_forward.2} parent=0 // loop_footer_branch
    %13 = sbr.rel target = $region3
  $region8: #{ftb_forward.2} parent=0 // loop_exit
    _

</llo_original>
